<compile_context>
chip_gen: v5e
topology: v5e:2x2
jax: 0.10.0
libtpu: 0.0.40
codegen_flags: <defaults>
</compile_context>

<pallas_src>
import jax
import jax.numpy as jnp
from jax.experimental import pallas as pl
from jax.experimental.pallas import tpu as pltpu


def _lstm_kernel(x_ref, temb_ref, wih0_ref, b0_ref, wtext_ref, btext_ref,
                 b1_ref, bout_ref,
                 whh0_hbm, w1_hbm, wout_hbm,
                 out_ref, hn_ref, cn_ref,
                 h_all_ref, whh0_v, w1_v, wout_v, dma_sem):
    BP = temb_ref.shape[0]              # padded batch (sublane multiple)
    T = x_ref.shape[0] // BP
    H = whh0_v.shape[0]
    f32 = jnp.float32
    bf16 = jnp.bfloat16

    # --- staggered manual DMA for the big weights: start now, wait right
    #     before each first use so the transfer overlaps early compute.
    cp_whh0 = pltpu.make_async_copy(whh0_hbm, whh0_v, dma_sem.at[0])
    cp_w1 = pltpu.make_async_copy(w1_hbm, w1_v, dma_sem.at[1])
    cp_wout = pltpu.make_async_copy(wout_hbm, wout_v, dma_sem.at[2])
    cp_whh0.start()
    cp_w1.start()
    cp_wout.start()

    # --- initial state: h0[0] = text_condition_layer(text_embedding) ---
    h0 = (jnp.dot(temb_ref[...].astype(bf16), wtext_ref[...],
                  preferred_element_type=f32) + btext_ref[...])       # (BP, H)
    c0 = jnp.zeros((BP, H), f32)
    h1 = jnp.zeros((BP, H), f32)
    c1 = jnp.zeros((BP, H), f32)

    # --- hoisted layer-0 input projection (combined bias folded in) ---
    gx = (jnp.dot(x_ref[...].astype(bf16), wih0_ref[...],
                  preferred_element_type=f32) + b0_ref[...])          # (T*BP, 4H)

    # hoist the layer-1 bias broadcast out of the unrolled loop (no CSE of
    # broadcast_in_dim -> otherwise 8 copies land on the serial path).
    b1b = jnp.broadcast_to(b1_ref[...], (BP, 4 * H))

    def activations(gates):
        # gate column order is (i, f, o, g): one wide sigmoid + one tanh
        sig = jax.nn.sigmoid(gates[:, :3 * H])
        g = jnp.tanh(gates[:, 3 * H:])
        return sig[:, :H], sig[:, H:2 * H], sig[:, 2 * H:3 * H], g

    cp_whh0.wait()                      # needed for step 0, layer 0
    whh0 = whh0_v[...]
    w1 = None

    # --- fully unrolled recurrence (T=8), state carried in registers ---
    for t in range(T):
        # layer 0: only the recurrent matmul sits on the serial path
        gates0 = gx[t * BP:(t + 1) * BP, :] + jnp.dot(
            h0.astype(bf16), whh0, preferred_element_type=f32)
        i0, f0, o0, g0 = activations(gates0)
        c0 = f0 * c0 + i0 * g0
        h0 = o0 * jnp.tanh(c0)

        if t == 0:
            cp_w1.wait()                # first use of the fused layer-1 weight
            w1 = w1_v[...]

        # layer 1: single fused matmul on concat([h0_t, h1_prev])
        gates1 = jnp.dot(jnp.concatenate([h0, h1], axis=1).astype(bf16), w1,
                         preferred_element_type=f32) + b1b
        i1, f1, o1, g1 = activations(gates1)
        c1 = f1 * c1 + i1 * g1
        h1 = o1 * jnp.tanh(c1)

        # tile-aligned 8-row store into the per-step slab (no concat at end)
        h_all_ref[t * BP:(t + 1) * BP, :] = h1

    # --- deferred, lane-dense output projection: one matmul + one wide store ---
    cp_wout.wait()
    out_ref[...] = (jnp.dot(h_all_ref[...].astype(bf16), wout_v[...],
                            preferred_element_type=f32) + bout_ref[...])

    # final states written once
    hn_ref[0] = h0
    hn_ref[1] = h1
    cn_ref[0] = c0
    cn_ref[1] = c1


def _permute_gates(w):
    """Reorder gate blocks along the last axis: (i, f, g, o) -> (i, f, o, g)."""
    H = w.shape[-1] // 4
    return jnp.concatenate([w[..., :2 * H], w[..., 3 * H:], w[..., 2 * H:3 * H]],
                           axis=-1)


def temporal_coherence_forward(x, text_emb, params):
    """x: [B, T, D] f32, text_emb: [B, 512] f32. Returns (out, hn, cn)."""
    B, T, D = x.shape
    H = params["whh0"].shape[0]
    BP = ((B + 7) // 8) * 8            # batch padded to a sublane multiple
    DP = ((D + 127) // 128) * 128      # output lane dim padded to 128
    f32, bf16 = jnp.float32, jnp.bfloat16

    # Host-side weight plumbing: gate reorder, layer-1 fusion, bf16 cast
    # (activations stay f32; MXU accumulation stays f32 inside the kernel).
    wih0 = _permute_gates(params["wih0"]).astype(bf16)
    whh0 = _permute_gates(params["whh0"]).astype(bf16)
    b0 = _permute_gates(params["b0"]).astype(f32)
    w1 = jnp.concatenate([_permute_gates(params["wih1"]),
                          _permute_gates(params["whh1"])],
                         axis=0).astype(bf16)                       # (2H, 4H)
    b1 = _permute_gates(params["b1"]).astype(f32)
    wtext = params["wtext"].astype(bf16)
    btext = params["btext"].astype(f32)
    # pad the output projection to 128 lanes for a lane-dense final store
    wout = jnp.zeros((H, DP), f32).at[:, :D].set(params["wout"]).astype(bf16)
    bout = jnp.zeros((1, DP), f32).at[:, :D].set(params["bout"])

    # Pad the batch with zero rows and flatten time-major so each step's gate
    # block / h1-slab row slice is an aligned (8,·) tile view.
    x_p = jnp.zeros((BP, T, D), f32).at[:B].set(x)
    x_flat = jnp.swapaxes(x_p, 0, 1).reshape(T * BP, D)
    temb_p = jnp.zeros((BP, text_emb.shape[1]), f32).at[:B].set(text_emb)

    args = (x_flat, temb_p, wih0, b0, wtext, btext, b1, bout, whh0, w1, wout)

    vmem = lambda: pl.BlockSpec(memory_space=pltpu.MemorySpace.VMEM)
    hbm = lambda: pl.BlockSpec(memory_space=pl.ANY)   # manually DMA'd weights
    in_specs = [vmem() for _ in range(8)] + [hbm() for _ in range(3)]

    out_shape = (
        jax.ShapeDtypeStruct((T * BP, DP), f32),   # output (time-major flat)
        jax.ShapeDtypeStruct((2, BP, H), f32),     # hn
        jax.ShapeDtypeStruct((2, BP, H), f32),     # cn
    )
    scratch_shapes = [
        pltpu.VMEM((T * BP, H), f32),        # per-step h1 slab (aligned stores)
        pltpu.VMEM((H, 4 * H), bf16),        # whh0 landing buffer
        pltpu.VMEM((2 * H, 4 * H), bf16),    # fused layer-1 weight buffer
        pltpu.VMEM((H, DP), bf16),           # wout landing buffer
        pltpu.SemaphoreType.DMA((3,)),
    ]

    out_flat, hn, cn = pl.pallas_call(
        _lstm_kernel,
        out_shape=out_shape,
        in_specs=in_specs,
        out_specs=tuple(vmem() for _ in range(3)),
        scratch_shapes=scratch_shapes,
    )(*args)

    out = jnp.swapaxes(out_flat.reshape(T, BP, DP), 0, 1)[:B, :, :D]
    return out, hn[:, :B, :], cn[:, :B, :]


def make_params(key, D=16, H=128, text_dim=512):
    """Deterministic synthetic parameters, PyTorch LSTM layout, pre-transposed
    to (in_dim, out_dim); gate order (i, f, g, o); bias_ih + bias_hh combined."""
    ks = jax.random.split(key, 12)
    s = 0.1

    def rnd(k, shape):
        return s * jax.random.normal(k, shape, jnp.float32)

    w_ih0 = rnd(ks[0], (4 * H, D));  w_hh0 = rnd(ks[1], (4 * H, H))
    b_ih0 = rnd(ks[2], (4 * H,));    b_hh0 = rnd(ks[3], (4 * H,))
    w_ih1 = rnd(ks[4], (4 * H, H));  w_hh1 = rnd(ks[5], (4 * H, H))
    b_ih1 = rnd(ks[6], (4 * H,));    b_hh1 = rnd(ks[7], (4 * H,))
    w_out = rnd(ks[8], (D, H));      b_out = rnd(ks[9], (D,))
    w_txt = rnd(ks[10], (H, text_dim)); b_txt = rnd(ks[11], (H,))

    return dict(
        wih0=w_ih0.T, whh0=w_hh0.T, b0=(b_ih0 + b_hh0)[None, :],
        wih1=w_ih1.T, whh1=w_hh1.T, b1=(b_ih1 + b_hh1)[None, :],
        wout=w_out.T, bout=b_out[None, :],
        wtext=w_txt.T, btext=b_txt[None, :],
    )


def reference_forward(x, temb, p, matmul_dtype=jnp.float32):
    """Pure-JAX reference mirroring PyTorch nn.LSTM (eval) semantics.
    matmul_dtype=bfloat16 reproduces the kernel's bf16 MXU quantization
    (f32 accumulation) for a tight structural check."""
    B, T, D = x.shape
    H = p["whh0"].shape[0]
    f32 = jnp.float32
    md = matmul_dtype

    def mm(a, b):
        return jnp.dot(a.astype(md), b.astype(md), preferred_element_type=f32)

    h = [mm(temb, p["wtext"]) + p["btext"][0], jnp.zeros((B, H), f32)]
    c = [jnp.zeros((B, H), f32), jnp.zeros((B, H), f32)]

    def cell(x_t, h_prev, c_prev, wih, whh, b):
        g = mm(x_t, wih) + mm(h_prev, whh) + b
        i = jax.nn.sigmoid(g[:, :H]); f = jax.nn.sigmoid(g[:, H:2 * H])
        gg = jnp.tanh(g[:, 2 * H:3 * H]); o = jax.nn.sigmoid(g[:, 3 * H:])
        cn = f * c_prev + i * gg
        return o * jnp.tanh(cn), cn

    outs = []
    for t in range(T):
        h[0], c[0] = cell(x[:, t, :], h[0], c[0], p["wih0"], p["whh0"], p["b0"][0])
        h[1], c[1] = cell(h[0], h[1], c[1], p["wih1"], p["whh1"], p["b1"][0])
        outs.append(mm(h[1], p["wout"]) + p["bout"][0])
    return jnp.stack(outs, axis=1), jnp.stack(h), jnp.stack(c)


if __name__ == "__main__":
    B, T, D, H, TEXT = 2, 8, 16, 128, 512
    key = jax.random.PRNGKey(0)
    k_x, k_t, k_p = jax.random.split(key, 3)

    x = jax.random.normal(k_x, (B, T, D), jnp.float32)
    text_emb = jax.random.normal(k_t, (B, TEXT), jnp.float32)
    params = make_params(k_p, D=D, H=H, text_dim=TEXT)

    out, hn, cn = jax.block_until_ready(
        temporal_coherence_forward(x, text_emb, params))

    assert out.shape == (B, T, D) and hn.shape == (2, B, H) and cn.shape == (2, B, H)

    # Structural check: reference with the same bf16-quantized matmuls.
    q_out, q_hn, q_cn = reference_forward(x, text_emb, params,
                                          matmul_dtype=jnp.bfloat16)
    assert jnp.allclose(out, q_out, atol=1e-2, rtol=1e-2)
    assert jnp.allclose(hn, q_hn, atol=1e-2, rtol=1e-2)
    assert jnp.allclose(cn, q_cn, atol=1e-2, rtol=1e-2)

    # Drift check against the exact f32 spec (bounds bf16 weight quantization).
    f_out, f_hn, f_cn = reference_forward(x, text_emb, params)
    assert jnp.allclose(out, f_out, atol=1e-1, rtol=1e-1)
    assert jnp.allclose(hn, f_hn, atol=1e-1, rtol=1e-1)
    assert jnp.allclose(cn, f_cn, atol=1e-1, rtol=1e-1)

    print("KERNEL_OK")
</pallas_src>

<mosaic_0001>
module attributes {stable_mosaic.version = 11 : i64} {
  func.func @_lstm_kernel(%arg0: memref<64x16xf32, #tpu.memory_space<vmem>>, %arg1: memref<8x512xf32, #tpu.memory_space<vmem>>, %arg2: memref<16x512xbf16, #tpu.memory_space<vmem>>, %arg3: memref<1x512xf32, #tpu.memory_space<vmem>>, %arg4: memref<512x128xbf16, #tpu.memory_space<vmem>>, %arg5: memref<1x128xf32, #tpu.memory_space<vmem>>, %arg6: memref<1x512xf32, #tpu.memory_space<vmem>>, %arg7: memref<1x128xf32, #tpu.memory_space<vmem>>, %arg8: memref<128x512xbf16, #tpu.memory_space<any>>, %arg9: memref<256x512xbf16, #tpu.memory_space<any>>, %arg10: memref<128x128xbf16, #tpu.memory_space<any>>, %arg11: memref<64x128xf32, #tpu.memory_space<vmem>>, %arg12: memref<2x8x128xf32, #tpu.memory_space<vmem>>, %arg13: memref<2x8x128xf32, #tpu.memory_space<vmem>>, %arg14: memref<64x128xf32, #tpu.memory_space<vmem>>, %arg15: memref<128x512xbf16, #tpu.memory_space<vmem>>, %arg16: memref<256x512xbf16, #tpu.memory_space<vmem>>, %arg17: memref<128x128xbf16, #tpu.memory_space<vmem>>, %arg18: memref<3x!tpu.dma_semaphore, #tpu.memory_space<semaphore_mem>>) attributes {dimension_semantics = [], scalar_prefetch = 0 : i64, scratch_operands = 5 : i64, tpu.core_type = #tpu.core_type<tc>} {
    %c0_i32 = arith.constant 0 : i32
    %0 = tpu.memref_slice %arg18[%c0_i32] : memref<3x!tpu.dma_semaphore, #tpu.memory_space<semaphore_mem>> -> memref<1x!tpu.dma_semaphore, #tpu.memory_space<semaphore_mem>>
    %1 = tpu.memref_squeeze %0 : memref<1x!tpu.dma_semaphore, #tpu.memory_space<semaphore_mem>> -> memref<!tpu.dma_semaphore, #tpu.memory_space<semaphore_mem>>
    tpu.enqueue_dma source(%arg8 : memref<128x512xbf16, #tpu.memory_space<any>>) target(%arg15 : memref<128x512xbf16, #tpu.memory_space<vmem>>) target_semaphore(%1 : memref<!tpu.dma_semaphore, #tpu.memory_space<semaphore_mem>>)
    %c1_i32 = arith.constant 1 : i32
    %2 = tpu.memref_slice %arg18[%c1_i32] : memref<3x!tpu.dma_semaphore, #tpu.memory_space<semaphore_mem>> -> memref<1x!tpu.dma_semaphore, #tpu.memory_space<semaphore_mem>>
    %3 = tpu.memref_squeeze %2 : memref<1x!tpu.dma_semaphore, #tpu.memory_space<semaphore_mem>> -> memref<!tpu.dma_semaphore, #tpu.memory_space<semaphore_mem>>
    tpu.enqueue_dma source(%arg9 : memref<256x512xbf16, #tpu.memory_space<any>>) target(%arg16 : memref<256x512xbf16, #tpu.memory_space<vmem>>) target_semaphore(%3 : memref<!tpu.dma_semaphore, #tpu.memory_space<semaphore_mem>>)
    %c2_i32 = arith.constant 2 : i32
    %4 = tpu.memref_slice %arg18[%c2_i32] : memref<3x!tpu.dma_semaphore, #tpu.memory_space<semaphore_mem>> -> memref<1x!tpu.dma_semaphore, #tpu.memory_space<semaphore_mem>>
    %5 = tpu.memref_squeeze %4 : memref<1x!tpu.dma_semaphore, #tpu.memory_space<semaphore_mem>> -> memref<!tpu.dma_semaphore, #tpu.memory_space<semaphore_mem>>
    tpu.enqueue_dma source(%arg10 : memref<128x128xbf16, #tpu.memory_space<any>>) target(%arg17 : memref<128x128xbf16, #tpu.memory_space<vmem>>) target_semaphore(%5 : memref<!tpu.dma_semaphore, #tpu.memory_space<semaphore_mem>>)
    %c0 = arith.constant 0 : index
    %c0_0 = arith.constant 0 : index
    %6 = vector.load %arg1[%c0, %c0_0] : memref<8x512xf32, #tpu.memory_space<vmem>>, vector<8x512xf32>
    %7 = arith.truncf %6 : vector<8x512xf32> to vector<8x512xbf16>
    %c0_1 = arith.constant 0 : index
    %c0_2 = arith.constant 0 : index
    %8 = vector.load %arg4[%c0_1, %c0_2] : memref<512x128xbf16, #tpu.memory_space<vmem>>, vector<512x128xbf16>
    %cst = arith.constant dense<0.000000e+00> : vector<8x128xf32>
    %9 = tpu.matmul %7, %8, %cst {dimension_numbers = #tpu.dot_dimension_numbers<[1], [0], [0], [1], [0, 0, 1, 1], [], []>} : vector<8x512xbf16>, vector<512x128xbf16>, vector<8x128xf32> -> vector<8x128xf32>
    %c0_3 = arith.constant 0 : index
    %c0_4 = arith.constant 0 : index
    %10 = vector.load %arg5[%c0_3, %c0_4] : memref<1x128xf32, #tpu.memory_space<vmem>>, vector<1x128xf32>
    %11 = vector.broadcast %10 : vector<1x128xf32> to vector<8x128xf32>
    %12 = arith.addf %9, %11 : vector<8x128xf32>
    %cst_5 = arith.constant 0.000000e+00 : f32
    %13 = vector.broadcast %cst_5 : f32 to vector<8x128xf32>
    %cst_6 = arith.constant 0.000000e+00 : f32
    %14 = vector.broadcast %cst_6 : f32 to vector<8x128xf32>
    %cst_7 = arith.constant 0.000000e+00 : f32
    %15 = vector.broadcast %cst_7 : f32 to vector<8x128xf32>
    %c0_8 = arith.constant 0 : index
    %c0_9 = arith.constant 0 : index
    %16 = vector.load %arg0[%c0_8, %c0_9] : memref<64x16xf32, #tpu.memory_space<vmem>>, vector<64x16xf32>
    %17 = arith.truncf %16 : vector<64x16xf32> to vector<64x16xbf16>
    %c0_10 = arith.constant 0 : index
    %c0_11 = arith.constant 0 : index
    %18 = vector.load %arg2[%c0_10, %c0_11] : memref<16x512xbf16, #tpu.memory_space<vmem>>, vector<16x512xbf16>
    %cst_12 = arith.constant dense<0.000000e+00> : vector<64x512xf32>
    %19 = tpu.matmul %17, %18, %cst_12 {dimension_numbers = #tpu.dot_dimension_numbers<[1], [0], [0], [1], [0, 0, 1, 1], [], []>} : vector<64x16xbf16>, vector<16x512xbf16>, vector<64x512xf32> -> vector<64x512xf32>
    %c0_13 = arith.constant 0 : index
    %c0_14 = arith.constant 0 : index
    %20 = vector.load %arg3[%c0_13, %c0_14] : memref<1x512xf32, #tpu.memory_space<vmem>>, vector<1x512xf32>
    %21 = vector.broadcast %20 : vector<1x512xf32> to vector<64x512xf32>
    %22 = arith.addf %19, %21 : vector<64x512xf32>
    %c0_15 = arith.constant 0 : index
    %c0_16 = arith.constant 0 : index
    %23 = vector.load %arg6[%c0_15, %c0_16] : memref<1x512xf32, #tpu.memory_space<vmem>>, vector<1x512xf32>
    %24 = vector.shape_cast %23 : vector<1x512xf32> to vector<1x512xf32>
    %25 = vector.broadcast %24 : vector<1x512xf32> to vector<8x512xf32>
    %c0_i32_17 = arith.constant 0 : i32
    %26 = tpu.memref_slice %arg18[%c0_i32_17] : memref<3x!tpu.dma_semaphore, #tpu.memory_space<semaphore_mem>> -> memref<1x!tpu.dma_semaphore, #tpu.memory_space<semaphore_mem>>
    %27 = tpu.memref_squeeze %26 : memref<1x!tpu.dma_semaphore, #tpu.memory_space<semaphore_mem>> -> memref<!tpu.dma_semaphore, #tpu.memory_space<semaphore_mem>>
    tpu.wait_dma2 semaphore(%27 : memref<!tpu.dma_semaphore, #tpu.memory_space<semaphore_mem>>) src(%arg8 : memref<128x512xbf16, #tpu.memory_space<any>>) dst(%arg15 : memref<128x512xbf16, #tpu.memory_space<vmem>>)
    %c0_18 = arith.constant 0 : index
    %c0_19 = arith.constant 0 : index
    %28 = vector.load %arg15[%c0_18, %c0_19] : memref<128x512xbf16, #tpu.memory_space<vmem>>, vector<128x512xbf16>
    %29 = vector.extract_strided_slice %22 {offsets = [0, 0], sizes = [8, 512], strides = [1, 1]} : vector<64x512xf32> to vector<8x512xf32>
    %30 = arith.truncf %12 : vector<8x128xf32> to vector<8x128xbf16>
    %cst_20 = arith.constant dense<0.000000e+00> : vector<8x512xf32>
    %31 = tpu.matmul %30, %28, %cst_20 {dimension_numbers = #tpu.dot_dimension_numbers<[1], [0], [0], [1], [0, 0, 1, 1], [], []>} : vector<8x128xbf16>, vector<128x512xbf16>, vector<8x512xf32> -> vector<8x512xf32>
    %32 = arith.addf %29, %31 : vector<8x512xf32>
    %33 = vector.extract_strided_slice %32 {offsets = [0, 0], sizes = [8, 384], strides = [1, 1]} : vector<8x512xf32> to vector<8x384xf32>
    %34 = arith.negf %33 : vector<8x384xf32>
    %35 = math.exp %34 : vector<8x384xf32>
    %cst_21 = arith.constant 1.000000e+00 : f32
    %36 = vector.broadcast %cst_21 : f32 to vector<8x384xf32>
    %37 = arith.addf %36, %35 : vector<8x384xf32>
    %38 = arith.divf %36, %37 : vector<8x384xf32>
    %39 = vector.extract_strided_slice %32 {offsets = [0, 384], sizes = [8, 128], strides = [1, 1]} : vector<8x512xf32> to vector<8x128xf32>
    %40 = math.tanh %39 : vector<8x128xf32>
    %41 = vector.extract_strided_slice %38 {offsets = [0, 0], sizes = [8, 128], strides = [1, 1]} : vector<8x384xf32> to vector<8x128xf32>
    %42 = vector.extract_strided_slice %38 {offsets = [0, 128], sizes = [8, 128], strides = [1, 1]} : vector<8x384xf32> to vector<8x128xf32>
    %43 = vector.extract_strided_slice %38 {offsets = [0, 256], sizes = [8, 128], strides = [1, 1]} : vector<8x384xf32> to vector<8x128xf32>
    %44 = arith.mulf %42, %13 : vector<8x128xf32>
    %45 = arith.mulf %41, %40 : vector<8x128xf32>
    %46 = arith.addf %44, %45 : vector<8x128xf32>
    %47 = math.tanh %46 : vector<8x128xf32>
    %48 = arith.mulf %43, %47 : vector<8x128xf32>
    %c1_i32_22 = arith.constant 1 : i32
    %49 = tpu.memref_slice %arg18[%c1_i32_22] : memref<3x!tpu.dma_semaphore, #tpu.memory_space<semaphore_mem>> -> memref<1x!tpu.dma_semaphore, #tpu.memory_space<semaphore_mem>>
    %50 = tpu.memref_squeeze %49 : memref<1x!tpu.dma_semaphore, #tpu.memory_space<semaphore_mem>> -> memref<!tpu.dma_semaphore, #tpu.memory_space<semaphore_mem>>
    tpu.wait_dma2 semaphore(%50 : memref<!tpu.dma_semaphore, #tpu.memory_space<semaphore_mem>>) src(%arg9 : memref<256x512xbf16, #tpu.memory_space<any>>) dst(%arg16 : memref<256x512xbf16, #tpu.memory_space<vmem>>)
    %c0_23 = arith.constant 0 : index
    %c0_24 = arith.constant 0 : index
    %51 = vector.load %arg16[%c0_23, %c0_24] : memref<256x512xbf16, #tpu.memory_space<vmem>>, vector<256x512xbf16>
    %52 = tpu.concatenate %48, %14 in 1 : vector<8x128xf32>, vector<8x128xf32> -> vector<8x256xf32>
    %53 = arith.truncf %52 : vector<8x256xf32> to vector<8x256xbf16>
    %cst_25 = arith.constant dense<0.000000e+00> : vector<8x512xf32>
    %54 = tpu.matmul %53, %51, %cst_25 {dimension_numbers = #tpu.dot_dimension_numbers<[1], [0], [0], [1], [0, 0, 1, 1], [], []>} : vector<8x256xbf16>, vector<256x512xbf16>, vector<8x512xf32> -> vector<8x512xf32>
    %55 = arith.addf %54, %25 : vector<8x512xf32>
    %56 = vector.extract_strided_slice %55 {offsets = [0, 0], sizes = [8, 384], strides = [1, 1]} : vector<8x512xf32> to vector<8x384xf32>
    %57 = arith.negf %56 : vector<8x384xf32>
    %58 = math.exp %57 : vector<8x384xf32>
    %cst_26 = arith.constant 1.000000e+00 : f32
    %59 = vector.broadcast %cst_26 : f32 to vector<8x384xf32>
    %60 = arith.addf %59, %58 : vector<8x384xf32>
    %61 = arith.divf %59, %60 : vector<8x384xf32>
    %62 = vector.extract_strided_slice %55 {offsets = [0, 384], sizes = [8, 128], strides = [1, 1]} : vector<8x512xf32> to vector<8x128xf32>
    %63 = math.tanh %62 : vector<8x128xf32>
    %64 = vector.extract_strided_slice %61 {offsets = [0, 0], sizes = [8, 128], strides = [1, 1]} : vector<8x384xf32> to vector<8x128xf32>
    %65 = vector.extract_strided_slice %61 {offsets = [0, 128], sizes = [8, 128], strides = [1, 1]} : vector<8x384xf32> to vector<8x128xf32>
    %66 = vector.extract_strided_slice %61 {offsets = [0, 256], sizes = [8, 128], strides = [1, 1]} : vector<8x384xf32> to vector<8x128xf32>
    %67 = arith.mulf %65, %15 : vector<8x128xf32>
    %68 = arith.mulf %64, %63 : vector<8x128xf32>
    %69 = arith.addf %67, %68 : vector<8x128xf32>
    %70 = math.tanh %69 : vector<8x128xf32>
    %71 = arith.mulf %66, %70 : vector<8x128xf32>
    %c0_27 = arith.constant 0 : index
    %c0_28 = arith.constant 0 : index
    %72 = vector.load %arg14[%c0_27, %c0_28] : memref<64x128xf32, #tpu.memory_space<vmem>>, vector<8x128xf32>
    tpu.vector_store %arg14[%c0_27, %c0_28], %71 {strides = array<i32>} : memref<64x128xf32, #tpu.memory_space<vmem>>, vector<8x128xf32>,
    %73 = vector.extract_strided_slice %22 {offsets = [8, 0], sizes = [8, 512], strides = [1, 1]} : vector<64x512xf32> to vector<8x512xf32>
    %74 = arith.truncf %48 : vector<8x128xf32> to vector<8x128xbf16>
    %cst_29 = arith.constant dense<0.000000e+00> : vector<8x512xf32>
    %75 = tpu.matmul %74, %28, %cst_29 {dimension_numbers = #tpu.dot_dimension_numbers<[1], [0], [0], [1], [0, 0, 1, 1], [], []>} : vector<8x128xbf16>, vector<128x512xbf16>, vector<8x512xf32> -> vector<8x512xf32>
    %76 = arith.addf %73, %75 : vector<8x512xf32>
    %77 = vector.extract_strided_slice %76 {offsets = [0, 0], sizes = [8, 384], strides = [1, 1]} : vector<8x512xf32> to vector<8x384xf32>
    %78 = arith.negf %77 : vector<8x384xf32>
    %79 = math.exp %78 : vector<8x384xf32>
    %cst_30 = arith.constant 1.000000e+00 : f32
    %80 = vector.broadcast %cst_30 : f32 to vector<8x384xf32>
    %81 = arith.addf %80, %79 : vector<8x384xf32>
    %82 = arith.divf %80, %81 : vector<8x384xf32>
    %83 = vector.extract_strided_slice %76 {offsets = [0, 384], sizes = [8, 128], strides = [1, 1]} : vector<8x512xf32> to vector<8x128xf32>
    %84 = math.tanh %83 : vector<8x128xf32>
    %85 = vector.extract_strided_slice %82 {offsets = [0, 0], sizes = [8, 128], strides = [1, 1]} : vector<8x384xf32> to vector<8x128xf32>
    %86 = vector.extract_strided_slice %82 {offsets = [0, 128], sizes = [8, 128], strides = [1, 1]} : vector<8x384xf32> to vector<8x128xf32>
    %87 = vector.extract_strided_slice %82 {offsets = [0, 256], sizes = [8, 128], strides = [1, 1]} : vector<8x384xf32> to vector<8x128xf32>
    %88 = arith.mulf %86, %46 : vector<8x128xf32>
    %89 = arith.mulf %85, %84 : vector<8x128xf32>
    %90 = arith.addf %88, %89 : vector<8x128xf32>
    %91 = math.tanh %90 : vector<8x128xf32>
    %92 = arith.mulf %87, %91 : vector<8x128xf32>
    %93 = tpu.concatenate %92, %71 in 1 : vector<8x128xf32>, vector<8x128xf32> -> vector<8x256xf32>
    %94 = arith.truncf %93 : vector<8x256xf32> to vector<8x256xbf16>
    %cst_31 = arith.constant dense<0.000000e+00> : vector<8x512xf32>
    %95 = tpu.matmul %94, %51, %cst_31 {dimension_numbers = #tpu.dot_dimension_numbers<[1], [0], [0], [1], [0, 0, 1, 1], [], []>} : vector<8x256xbf16>, vector<256x512xbf16>, vector<8x512xf32> -> vector<8x512xf32>
    %96 = arith.addf %95, %25 : vector<8x512xf32>
    %97 = vector.extract_strided_slice %96 {offsets = [0, 0], sizes = [8, 384], strides = [1, 1]} : vector<8x512xf32> to vector<8x384xf32>
    %98 = arith.negf %97 : vector<8x384xf32>
    %99 = math.exp %98 : vector<8x384xf32>
    %cst_32 = arith.constant 1.000000e+00 : f32
    %100 = vector.broadcast %cst_32 : f32 to vector<8x384xf32>
    %101 = arith.addf %100, %99 : vector<8x384xf32>
    %102 = arith.divf %100, %101 : vector<8x384xf32>
    %103 = vector.extract_strided_slice %96 {offsets = [0, 384], sizes = [8, 128], strides = [1, 1]} : vector<8x512xf32> to vector<8x128xf32>
    %104 = math.tanh %103 : vector<8x128xf32>
    %105 = vector.extract_strided_slice %102 {offsets = [0, 0], sizes = [8, 128], strides = [1, 1]} : vector<8x384xf32> to vector<8x128xf32>
    %106 = vector.extract_strided_slice %102 {offsets = [0, 128], sizes = [8, 128], strides = [1, 1]} : vector<8x384xf32> to vector<8x128xf32>
    %107 = vector.extract_strided_slice %102 {offsets = [0, 256], sizes = [8, 128], strides = [1, 1]} : vector<8x384xf32> to vector<8x128xf32>
    %108 = arith.mulf %106, %69 : vector<8x128xf32>
    %109 = arith.mulf %105, %104 : vector<8x128xf32>
    %110 = arith.addf %108, %109 : vector<8x128xf32>
    %111 = math.tanh %110 : vector<8x128xf32>
    %112 = arith.mulf %107, %111 : vector<8x128xf32>
    %c8 = arith.constant 8 : index
    %c0_33 = arith.constant 0 : index
    %113 = vector.load %arg14[%c8, %c0_33] : memref<64x128xf32, #tpu.memory_space<vmem>>, vector<8x128xf32>
    tpu.vector_store %arg14[%c8, %c0_33], %112 {strides = array<i32>} : memref<64x128xf32, #tpu.memory_space<vmem>>, vector<8x128xf32>,
    %114 = vector.extract_strided_slice %22 {offsets = [16, 0], sizes = [8, 512], strides = [1, 1]} : vector<64x512xf32> to vector<8x512xf32>
    %115 = arith.truncf %92 : vector<8x128xf32> to vector<8x128xbf16>
    %cst_34 = arith.constant dense<0.000000e+00> : vector<8x512xf32>
    %116 = tpu.matmul %115, %28, %cst_34 {dimension_numbers = #tpu.dot_dimension_numbers<[1], [0], [0], [1], [0, 0, 1, 1], [], []>} : vector<8x128xbf16>, vector<128x512xbf16>, vector<8x512xf32> -> vector<8x512xf32>
    %117 = arith.addf %114, %116 : vector<8x512xf32>
    %118 = vector.extract_strided_slice %117 {offsets = [0, 0], sizes = [8, 384], strides = [1, 1]} : vector<8x512xf32> to vector<8x384xf32>
    %119 = arith.negf %118 : vector<8x384xf32>
    %120 = math.exp %119 : vector<8x384xf32>
    %cst_35 = arith.constant 1.000000e+00 : f32
    %121 = vector.broadcast %cst_35 : f32 to vector<8x384xf32>
    %122 = arith.addf %121, %120 : vector<8x384xf32>
    %123 = arith.divf %121, %122 : vector<8x384xf32>
    %124 = vector.extract_strided_slice %117 {offsets = [0, 384], sizes = [8, 128], strides = [1, 1]} : vector<8x512xf32> to vector<8x128xf32>
    %125 = math.tanh %124 : vector<8x128xf32>
    %126 = vector.extract_strided_slice %123 {offsets = [0, 0], sizes = [8, 128], strides = [1, 1]} : vector<8x384xf32> to vector<8x128xf32>
    %127 = vector.extract_strided_slice %123 {offsets = [0, 128], sizes = [8, 128], strides = [1, 1]} : vector<8x384xf32> to vector<8x128xf32>
    %128 = vector.extract_strided_slice %123 {offsets = [0, 256], sizes = [8, 128], strides = [1, 1]} : vector<8x384xf32> to vector<8x128xf32>
    %129 = arith.mulf %127, %90 : vector<8x128xf32>
    %130 = arith.mulf %126, %125 : vector<8x128xf32>
    %131 = arith.addf %129, %130 : vector<8x128xf32>
    %132 = math.tanh %131 : vector<8x128xf32>
    %133 = arith.mulf %128, %132 : vector<8x128xf32>
    %134 = tpu.concatenate %133, %112 in 1 : vector<8x128xf32>, vector<8x128xf32> -> vector<8x256xf32>
    %135 = arith.truncf %134 : vector<8x256xf32> to vector<8x256xbf16>
    %cst_36 = arith.constant dense<0.000000e+00> : vector<8x512xf32>
    %136 = tpu.matmul %135, %51, %cst_36 {dimension_numbers = #tpu.dot_dimension_numbers<[1], [0], [0], [1], [0, 0, 1, 1], [], []>} : vector<8x256xbf16>, vector<256x512xbf16>, vector<8x512xf32> -> vector<8x512xf32>
    %137 = arith.addf %136, %25 : vector<8x512xf32>
    %138 = vector.extract_strided_slice %137 {offsets = [0, 0], sizes = [8, 384], strides = [1, 1]} : vector<8x512xf32> to vector<8x384xf32>
    %139 = arith.negf %138 : vector<8x384xf32>
    %140 = math.exp %139 : vector<8x384xf32>
    %cst_37 = arith.constant 1.000000e+00 : f32
    %141 = vector.broadcast %cst_37 : f32 to vector<8x384xf32>
    %142 = arith.addf %141, %140 : vector<8x384xf32>
    %143 = arith.divf %141, %142 : vector<8x384xf32>
    %144 = vector.extract_strided_slice %137 {offsets = [0, 384], sizes = [8, 128], strides = [1, 1]} : vector<8x512xf32> to vector<8x128xf32>
    %145 = math.tanh %144 : vector<8x128xf32>
    %146 = vector.extract_strided_slice %143 {offsets = [0, 0], sizes = [8, 128], strides = [1, 1]} : vector<8x384xf32> to vector<8x128xf32>
    %147 = vector.extract_strided_slice %143 {offsets = [0, 128], sizes = [8, 128], strides = [1, 1]} : vector<8x384xf32> to vector<8x128xf32>
    %148 = vector.extract_strided_slice %143 {offsets = [0, 256], sizes = [8, 128], strides = [1, 1]} : vector<8x384xf32> to vector<8x128xf32>
    %149 = arith.mulf %147, %110 : vector<8x128xf32>
    %150 = arith.mulf %146, %145 : vector<8x128xf32>
    %151 = arith.addf %149, %150 : vector<8x128xf32>
    %152 = math.tanh %151 : vector<8x128xf32>
    %153 = arith.mulf %148, %152 : vector<8x128xf32>
    %c16 = arith.constant 16 : index
    %c0_38 = arith.constant 0 : index
    %154 = vector.load %arg14[%c16, %c0_38] : memref<64x128xf32, #tpu.memory_space<vmem>>, vector<8x128xf32>
    tpu.vector_store %arg14[%c16, %c0_38], %153 {strides = array<i32>} : memref<64x128xf32, #tpu.memory_space<vmem>>, vector<8x128xf32>,
    %155 = vector.extract_strided_slice %22 {offsets = [24, 0], sizes = [8, 512], strides = [1, 1]} : vector<64x512xf32> to vector<8x512xf32>
    %156 = arith.truncf %133 : vector<8x128xf32> to vector<8x128xbf16>
    %cst_39 = arith.constant dense<0.000000e+00> : vector<8x512xf32>
    %157 = tpu.matmul %156, %28, %cst_39 {dimension_numbers = #tpu.dot_dimension_numbers<[1], [0], [0], [1], [0, 0, 1, 1], [], []>} : vector<8x128xbf16>, vector<128x512xbf16>, vector<8x512xf32> -> vector<8x512xf32>
    %158 = arith.addf %155, %157 : vector<8x512xf32>
    %159 = vector.extract_strided_slice %158 {offsets = [0, 0], sizes = [8, 384], strides = [1, 1]} : vector<8x512xf32> to vector<8x384xf32>
    %160 = arith.negf %159 : vector<8x384xf32>
    %161 = math.exp %160 : vector<8x384xf32>
    %cst_40 = arith.constant 1.000000e+00 : f32
    %162 = vector.broadcast %cst_40 : f32 to vector<8x384xf32>
    %163 = arith.addf %162, %161 : vector<8x384xf32>
    %164 = arith.divf %162, %163 : vector<8x384xf32>
    %165 = vector.extract_strided_slice %158 {offsets = [0, 384], sizes = [8, 128], strides = [1, 1]} : vector<8x512xf32> to vector<8x128xf32>
    %166 = math.tanh %165 : vector<8x128xf32>
    %167 = vector.extract_strided_slice %164 {offsets = [0, 0], sizes = [8, 128], strides = [1, 1]} : vector<8x384xf32> to vector<8x128xf32>
    %168 = vector.extract_strided_slice %164 {offsets = [0, 128], sizes = [8, 128], strides = [1, 1]} : vector<8x384xf32> to vector<8x128xf32>
    %169 = vector.extract_strided_slice %164 {offsets = [0, 256], sizes = [8, 128], strides = [1, 1]} : vector<8x384xf32> to vector<8x128xf32>
    %170 = arith.mulf %168, %131 : vector<8x128xf32>
    %171 = arith.mulf %167, %166 : vector<8x128xf32>
    %172 = arith.addf %170, %171 : vector<8x128xf32>
    %173 = math.tanh %172 : vector<8x128xf32>
    %174 = arith.mulf %169, %173 : vector<8x128xf32>
    %175 = tpu.concatenate %174, %153 in 1 : vector<8x128xf32>, vector<8x128xf32> -> vector<8x256xf32>
    %176 = arith.truncf %175 : vector<8x256xf32> to vector<8x256xbf16>
    %cst_41 = arith.constant dense<0.000000e+00> : vector<8x512xf32>
    %177 = tpu.matmul %176, %51, %cst_41 {dimension_numbers = #tpu.dot_dimension_numbers<[1], [0], [0], [1], [0, 0, 1, 1], [], []>} : vector<8x256xbf16>, vector<256x512xbf16>, vector<8x512xf32> -> vector<8x512xf32>
    %178 = arith.addf %177, %25 : vector<8x512xf32>
    %179 = vector.extract_strided_slice %178 {offsets = [0, 0], sizes = [8, 384], strides = [1, 1]} : vector<8x512xf32> to vector<8x384xf32>
    %180 = arith.negf %179 : vector<8x384xf32>
    %181 = math.exp %180 : vector<8x384xf32>
    %cst_42 = arith.constant 1.000000e+00 : f32
    %182 = vector.broadcast %cst_42 : f32 to vector<8x384xf32>
    %183 = arith.addf %182, %181 : vector<8x384xf32>
    %184 = arith.divf %182, %183 : vector<8x384xf32>
    %185 = vector.extract_strided_slice %178 {offsets = [0, 384], sizes = [8, 128], strides = [1, 1]} : vector<8x512xf32> to vector<8x128xf32>
    %186 = math.tanh %185 : vector<8x128xf32>
    %187 = vector.extract_strided_slice %184 {offsets = [0, 0], sizes = [8, 128], strides = [1, 1]} : vector<8x384xf32> to vector<8x128xf32>
    %188 = vector.extract_strided_slice %184 {offsets = [0, 128], sizes = [8, 128], strides = [1, 1]} : vector<8x384xf32> to vector<8x128xf32>
    %189 = vector.extract_strided_slice %184 {offsets = [0, 256], sizes = [8, 128], strides = [1, 1]} : vector<8x384xf32> to vector<8x128xf32>
    %190 = arith.mulf %188, %151 : vector<8x128xf32>
    %191 = arith.mulf %187, %186 : vector<8x128xf32>
    %192 = arith.addf %190, %191 : vector<8x128xf32>
    %193 = math.tanh %192 : vector<8x128xf32>
    %194 = arith.mulf %189, %193 : vector<8x128xf32>
    %c24 = arith.constant 24 : index
    %c0_43 = arith.constant 0 : index
    %195 = vector.load %arg14[%c24, %c0_43] : memref<64x128xf32, #tpu.memory_space<vmem>>, vector<8x128xf32>
    tpu.vector_store %arg14[%c24, %c0_43], %194 {strides = array<i32>} : memref<64x128xf32, #tpu.memory_space<vmem>>, vector<8x128xf32>,
    %196 = vector.extract_strided_slice %22 {offsets = [32, 0], sizes = [8, 512], strides = [1, 1]} : vector<64x512xf32> to vector<8x512xf32>
    %197 = arith.truncf %174 : vector<8x128xf32> to vector<8x128xbf16>
    %cst_44 = arith.constant dense<0.000000e+00> : vector<8x512xf32>
    %198 = tpu.matmul %197, %28, %cst_44 {dimension_numbers = #tpu.dot_dimension_numbers<[1], [0], [0], [1], [0, 0, 1, 1], [], []>} : vector<8x128xbf16>, vector<128x512xbf16>, vector<8x512xf32> -> vector<8x512xf32>
    %199 = arith.addf %196, %198 : vector<8x512xf32>
    %200 = vector.extract_strided_slice %199 {offsets = [0, 0], sizes = [8, 384], strides = [1, 1]} : vector<8x512xf32> to vector<8x384xf32>
    %201 = arith.negf %200 : vector<8x384xf32>
    %202 = math.exp %201 : vector<8x384xf32>
    %cst_45 = arith.constant 1.000000e+00 : f32
    %203 = vector.broadcast %cst_45 : f32 to vector<8x384xf32>
    %204 = arith.addf %203, %202 : vector<8x384xf32>
    %205 = arith.divf %203, %204 : vector<8x384xf32>
    %206 = vector.extract_strided_slice %199 {offsets = [0, 384], sizes = [8, 128], strides = [1, 1]} : vector<8x512xf32> to vector<8x128xf32>
    %207 = math.tanh %206 : vector<8x128xf32>
    %208 = vector.extract_strided_slice %205 {offsets = [0, 0], sizes = [8, 128], strides = [1, 1]} : vector<8x384xf32> to vector<8x128xf32>
    %209 = vector.extract_strided_slice %205 {offsets = [0, 128], sizes = [8, 128], strides = [1, 1]} : vector<8x384xf32> to vector<8x128xf32>
    %210 = vector.extract_strided_slice %205 {offsets = [0, 256], sizes = [8, 128], strides = [1, 1]} : vector<8x384xf32> to vector<8x128xf32>
    %211 = arith.mulf %209, %172 : vector<8x128xf32>
    %212 = arith.mulf %208, %207 : vector<8x128xf32>
    %213 = arith.addf %211, %212 : vector<8x128xf32>
    %214 = math.tanh %213 : vector<8x128xf32>
    %215 = arith.mulf %210, %214 : vector<8x128xf32>
    %216 = tpu.concatenate %215, %194 in 1 : vector<8x128xf32>, vector<8x128xf32> -> vector<8x256xf32>
    %217 = arith.truncf %216 : vector<8x256xf32> to vector<8x256xbf16>
    %cst_46 = arith.constant dense<0.000000e+00> : vector<8x512xf32>
    %218 = tpu.matmul %217, %51, %cst_46 {dimension_numbers = #tpu.dot_dimension_numbers<[1], [0], [0], [1], [0, 0, 1, 1], [], []>} : vector<8x256xbf16>, vector<256x512xbf16>, vector<8x512xf32> -> vector<8x512xf32>
    %219 = arith.addf %218, %25 : vector<8x512xf32>
    %220 = vector.extract_strided_slice %219 {offsets = [0, 0], sizes = [8, 384], strides = [1, 1]} : vector<8x512xf32> to vector<8x384xf32>
    %221 = arith.negf %220 : vector<8x384xf32>
    %222 = math.exp %221 : vector<8x384xf32>
    %cst_47 = arith.constant 1.000000e+00 : f32
    %223 = vector.broadcast %cst_47 : f32 to vector<8x384xf32>
    %224 = arith.addf %223, %222 : vector<8x384xf32>
    %225 = arith.divf %223, %224 : vector<8x384xf32>
    %226 = vector.extract_strided_slice %219 {offsets = [0, 384], sizes = [8, 128], strides = [1, 1]} : vector<8x512xf32> to vector<8x128xf32>
    %227 = math.tanh %226 : vector<8x128xf32>
    %228 = vector.extract_strided_slice %225 {offsets = [0, 0], sizes = [8, 128], strides = [1, 1]} : vector<8x384xf32> to vector<8x128xf32>
    %229 = vector.extract_strided_slice %225 {offsets = [0, 128], sizes = [8, 128], strides = [1, 1]} : vector<8x384xf32> to vector<8x128xf32>
    %230 = vector.extract_strided_slice %225 {offsets = [0, 256], sizes = [8, 128], strides = [1, 1]} : vector<8x384xf32> to vector<8x128xf32>
    %231 = arith.mulf %229, %192 : vector<8x128xf32>
    %232 = arith.mulf %228, %227 : vector<8x128xf32>
    %233 = arith.addf %231, %232 : vector<8x128xf32>
    %234 = math.tanh %233 : vector<8x128xf32>
    %235 = arith.mulf %230, %234 : vector<8x128xf32>
    %c32 = arith.constant 32 : index
    %c0_48 = arith.constant 0 : index
    %236 = vector.load %arg14[%c32, %c0_48] : memref<64x128xf32, #tpu.memory_space<vmem>>, vector<8x128xf32>
    tpu.vector_store %arg14[%c32, %c0_48], %235 {strides = array<i32>} : memref<64x128xf32, #tpu.memory_space<vmem>>, vector<8x128xf32>,
    %237 = vector.extract_strided_slice %22 {offsets = [40, 0], sizes = [8, 512], strides = [1, 1]} : vector<64x512xf32> to vector<8x512xf32>
    %238 = arith.truncf %215 : vector<8x128xf32> to vector<8x128xbf16>
    %cst_49 = arith.constant dense<0.000000e+00> : vector<8x512xf32>
    %239 = tpu.matmul %238, %28, %cst_49 {dimension_numbers = #tpu.dot_dimension_numbers<[1], [0], [0], [1], [0, 0, 1, 1], [], []>} : vector<8x128xbf16>, vector<128x512xbf16>, vector<8x512xf32> -> vector<8x512xf32>
    %240 = arith.addf %237, %239 : vector<8x512xf32>
    %241 = vector.extract_strided_slice %240 {offsets = [0, 0], sizes = [8, 384], strides = [1, 1]} : vector<8x512xf32> to vector<8x384xf32>
    %242 = arith.negf %241 : vector<8x384xf32>
    %243 = math.exp %242 : vector<8x384xf32>
    %cst_50 = arith.constant 1.000000e+00 : f32
    %244 = vector.broadcast %cst_50 : f32 to vector<8x384xf32>
    %245 = arith.addf %244, %243 : vector<8x384xf32>
    %246 = arith.divf %244, %245 : vector<8x384xf32>
    %247 = vector.extract_strided_slice %240 {offsets = [0, 384], sizes = [8, 128], strides = [1, 1]} : vector<8x512xf32> to vector<8x128xf32>
    %248 = math.tanh %247 : vector<8x128xf32>
    %249 = vector.extract_strided_slice %246 {offsets = [0, 0], sizes = [8, 128], strides = [1, 1]} : vector<8x384xf32> to vector<8x128xf32>
    %250 = vector.extract_strided_slice %246 {offsets = [0, 128], sizes = [8, 128], strides = [1, 1]} : vector<8x384xf32> to vector<8x128xf32>
    %251 = vector.extract_strided_slice %246 {offsets = [0, 256], sizes = [8, 128], strides = [1, 1]} : vector<8x384xf32> to vector<8x128xf32>
    %252 = arith.mulf %250, %213 : vector<8x128xf32>
    %253 = arith.mulf %249, %248 : vector<8x128xf32>
    %254 = arith.addf %252, %253 : vector<8x128xf32>
    %255 = math.tanh %254 : vector<8x128xf32>
    %256 = arith.mulf %251, %255 : vector<8x128xf32>
    %257 = tpu.concatenate %256, %235 in 1 : vector<8x128xf32>, vector<8x128xf32> -> vector<8x256xf32>
    %258 = arith.truncf %257 : vector<8x256xf32> to vector<8x256xbf16>
    %cst_51 = arith.constant dense<0.000000e+00> : vector<8x512xf32>
    %259 = tpu.matmul %258, %51, %cst_51 {dimension_numbers = #tpu.dot_dimension_numbers<[1], [0], [0], [1], [0, 0, 1, 1], [], []>} : vector<8x256xbf16>, vector<256x512xbf16>, vector<8x512xf32> -> vector<8x512xf32>
    %260 = arith.addf %259, %25 : vector<8x512xf32>
    %261 = vector.extract_strided_slice %260 {offsets = [0, 0], sizes = [8, 384], strides = [1, 1]} : vector<8x512xf32> to vector<8x384xf32>
    %262 = arith.negf %261 : vector<8x384xf32>
    %263 = math.exp %262 : vector<8x384xf32>
    %cst_52 = arith.constant 1.000000e+00 : f32
    %264 = vector.broadcast %cst_52 : f32 to vector<8x384xf32>
    %265 = arith.addf %264, %263 : vector<8x384xf32>
    %266 = arith.divf %264, %265 : vector<8x384xf32>
    %267 = vector.extract_strided_slice %260 {offsets = [0, 384], sizes = [8, 128], strides = [1, 1]} : vector<8x512xf32> to vector<8x128xf32>
    %268 = math.tanh %267 : vector<8x128xf32>
    %269 = vector.extract_strided_slice %266 {offsets = [0, 0], sizes = [8, 128], strides = [1, 1]} : vector<8x384xf32> to vector<8x128xf32>
    %270 = vector.extract_strided_slice %266 {offsets = [0, 128], sizes = [8, 128], strides = [1, 1]} : vector<8x384xf32> to vector<8x128xf32>
    %271 = vector.extract_strided_slice %266 {offsets = [0, 256], sizes = [8, 128], strides = [1, 1]} : vector<8x384xf32> to vector<8x128xf32>
    %272 = arith.mulf %270, %233 : vector<8x128xf32>
    %273 = arith.mulf %269, %268 : vector<8x128xf32>
    %274 = arith.addf %272, %273 : vector<8x128xf32>
    %275 = math.tanh %274 : vector<8x128xf32>
    %276 = arith.mulf %271, %275 : vector<8x128xf32>
    %c40 = arith.constant 40 : index
    %c0_53 = arith.constant 0 : index
    %277 = vector.load %arg14[%c40, %c0_53] : memref<64x128xf32, #tpu.memory_space<vmem>>, vector<8x128xf32>
    tpu.vector_store %arg14[%c40, %c0_53], %276 {strides = array<i32>} : memref<64x128xf32, #tpu.memory_space<vmem>>, vector<8x128xf32>,
    %278 = vector.extract_strided_slice %22 {offsets = [48, 0], sizes = [8, 512], strides = [1, 1]} : vector<64x512xf32> to vector<8x512xf32>
    %279 = arith.truncf %256 : vector<8x128xf32> to vector<8x128xbf16>
    %cst_54 = arith.constant dense<0.000000e+00> : vector<8x512xf32>
    %280 = tpu.matmul %279, %28, %cst_54 {dimension_numbers = #tpu.dot_dimension_numbers<[1], [0], [0], [1], [0, 0, 1, 1], [], []>} : vector<8x128xbf16>, vector<128x512xbf16>, vector<8x512xf32> -> vector<8x512xf32>
    %281 = arith.addf %278, %280 : vector<8x512xf32>
    %282 = vector.extract_strided_slice %281 {offsets = [0, 0], sizes = [8, 384], strides = [1, 1]} : vector<8x512xf32> to vector<8x384xf32>
    %283 = arith.negf %282 : vector<8x384xf32>
    %284 = math.exp %283 : vector<8x384xf32>
    %cst_55 = arith.constant 1.000000e+00 : f32
    %285 = vector.broadcast %cst_55 : f32 to vector<8x384xf32>
    %286 = arith.addf %285, %284 : vector<8x384xf32>
    %287 = arith.divf %285, %286 : vector<8x384xf32>
    %288 = vector.extract_strided_slice %281 {offsets = [0, 384], sizes = [8, 128], strides = [1, 1]} : vector<8x512xf32> to vector<8x128xf32>
    %289 = math.tanh %288 : vector<8x128xf32>
    %290 = vector.extract_strided_slice %287 {offsets = [0, 0], sizes = [8, 128], strides = [1, 1]} : vector<8x384xf32> to vector<8x128xf32>
    %291 = vector.extract_strided_slice %287 {offsets = [0, 128], sizes = [8, 128], strides = [1, 1]} : vector<8x384xf32> to vector<8x128xf32>
    %292 = vector.extract_strided_slice %287 {offsets = [0, 256], sizes = [8, 128], strides = [1, 1]} : vector<8x384xf32> to vector<8x128xf32>
    %293 = arith.mulf %291, %254 : vector<8x128xf32>
    %294 = arith.mulf %290, %289 : vector<8x128xf32>
    %295 = arith.addf %293, %294 : vector<8x128xf32>
    %296 = math.tanh %295 : vector<8x128xf32>
    %297 = arith.mulf %292, %296 : vector<8x128xf32>
    %298 = tpu.concatenate %297, %276 in 1 : vector<8x128xf32>, vector<8x128xf32> -> vector<8x256xf32>
    %299 = arith.truncf %298 : vector<8x256xf32> to vector<8x256xbf16>
    %cst_56 = arith.constant dense<0.000000e+00> : vector<8x512xf32>
    %300 = tpu.matmul %299, %51, %cst_56 {dimension_numbers = #tpu.dot_dimension_numbers<[1], [0], [0], [1], [0, 0, 1, 1], [], []>} : vector<8x256xbf16>, vector<256x512xbf16>, vector<8x512xf32> -> vector<8x512xf32>
    %301 = arith.addf %300, %25 : vector<8x512xf32>
    %302 = vector.extract_strided_slice %301 {offsets = [0, 0], sizes = [8, 384], strides = [1, 1]} : vector<8x512xf32> to vector<8x384xf32>
    %303 = arith.negf %302 : vector<8x384xf32>
    %304 = math.exp %303 : vector<8x384xf32>
    %cst_57 = arith.constant 1.000000e+00 : f32
    %305 = vector.broadcast %cst_57 : f32 to vector<8x384xf32>
    %306 = arith.addf %305, %304 : vector<8x384xf32>
    %307 = arith.divf %305, %306 : vector<8x384xf32>
    %308 = vector.extract_strided_slice %301 {offsets = [0, 384], sizes = [8, 128], strides = [1, 1]} : vector<8x512xf32> to vector<8x128xf32>
    %309 = math.tanh %308 : vector<8x128xf32>
    %310 = vector.extract_strided_slice %307 {offsets = [0, 0], sizes = [8, 128], strides = [1, 1]} : vector<8x384xf32> to vector<8x128xf32>
    %311 = vector.extract_strided_slice %307 {offsets = [0, 128], sizes = [8, 128], strides = [1, 1]} : vector<8x384xf32> to vector<8x128xf32>
    %312 = vector.extract_strided_slice %307 {offsets = [0, 256], sizes = [8, 128], strides = [1, 1]} : vector<8x384xf32> to vector<8x128xf32>
    %313 = arith.mulf %311, %274 : vector<8x128xf32>
    %314 = arith.mulf %310, %309 : vector<8x128xf32>
    %315 = arith.addf %313, %314 : vector<8x128xf32>
    %316 = math.tanh %315 : vector<8x128xf32>
    %317 = arith.mulf %312, %316 : vector<8x128xf32>
    %c48 = arith.constant 48 : index
    %c0_58 = arith.constant 0 : index
    %318 = vector.load %arg14[%c48, %c0_58] : memref<64x128xf32, #tpu.memory_space<vmem>>, vector<8x128xf32>
    tpu.vector_store %arg14[%c48, %c0_58], %317 {strides = array<i32>} : memref<64x128xf32, #tpu.memory_space<vmem>>, vector<8x128xf32>,
    %319 = vector.extract_strided_slice %22 {offsets = [56, 0], sizes = [8, 512], strides = [1, 1]} : vector<64x512xf32> to vector<8x512xf32>
    %320 = arith.truncf %297 : vector<8x128xf32> to vector<8x128xbf16>
    %cst_59 = arith.constant dense<0.000000e+00> : vector<8x512xf32>
    %321 = tpu.matmul %320, %28, %cst_59 {dimension_numbers = #tpu.dot_dimension_numbers<[1], [0], [0], [1], [0, 0, 1, 1], [], []>} : vector<8x128xbf16>, vector<128x512xbf16>, vector<8x512xf32> -> vector<8x512xf32>
    %322 = arith.addf %319, %321 : vector<8x512xf32>
    %323 = vector.extract_strided_slice %322 {offsets = [0, 0], sizes = [8, 384], strides = [1, 1]} : vector<8x512xf32> to vector<8x384xf32>
    %324 = arith.negf %323 : vector<8x384xf32>
    %325 = math.exp %324 : vector<8x384xf32>
    %cst_60 = arith.constant 1.000000e+00 : f32
    %326 = vector.broadcast %cst_60 : f32 to vector<8x384xf32>
    %327 = arith.addf %326, %325 : vector<8x384xf32>
    %328 = arith.divf %326, %327 : vector<8x384xf32>
    %329 = vector.extract_strided_slice %322 {offsets = [0, 384], sizes = [8, 128], strides = [1, 1]} : vector<8x512xf32> to vector<8x128xf32>
    %330 = math.tanh %329 : vector<8x128xf32>
    %331 = vector.extract_strided_slice %328 {offsets = [0, 0], sizes = [8, 128], strides = [1, 1]} : vector<8x384xf32> to vector<8x128xf32>
    %332 = vector.extract_strided_slice %328 {offsets = [0, 128], sizes = [8, 128], strides = [1, 1]} : vector<8x384xf32> to vector<8x128xf32>
    %333 = vector.extract_strided_slice %328 {offsets = [0, 256], sizes = [8, 128], strides = [1, 1]} : vector<8x384xf32> to vector<8x128xf32>
    %334 = arith.mulf %332, %295 : vector<8x128xf32>
    %335 = arith.mulf %331, %330 : vector<8x128xf32>
    %336 = arith.addf %334, %335 : vector<8x128xf32>
    %337 = math.tanh %336 : vector<8x128xf32>
    %338 = arith.mulf %333, %337 : vector<8x128xf32>
    %339 = tpu.concatenate %338, %317 in 1 : vector<8x128xf32>, vector<8x128xf32> -> vector<8x256xf32>
    %340 = arith.truncf %339 : vector<8x256xf32> to vector<8x256xbf16>
    %cst_61 = arith.constant dense<0.000000e+00> : vector<8x512xf32>
    %341 = tpu.matmul %340, %51, %cst_61 {dimension_numbers = #tpu.dot_dimension_numbers<[1], [0], [0], [1], [0, 0, 1, 1], [], []>} : vector<8x256xbf16>, vector<256x512xbf16>, vector<8x512xf32> -> vector<8x512xf32>
    %342 = arith.addf %341, %25 : vector<8x512xf32>
    %343 = vector.extract_strided_slice %342 {offsets = [0, 0], sizes = [8, 384], strides = [1, 1]} : vector<8x512xf32> to vector<8x384xf32>
    %344 = arith.negf %343 : vector<8x384xf32>
    %345 = math.exp %344 : vector<8x384xf32>
    %cst_62 = arith.constant 1.000000e+00 : f32
    %346 = vector.broadcast %cst_62 : f32 to vector<8x384xf32>
    %347 = arith.addf %346, %345 : vector<8x384xf32>
    %348 = arith.divf %346, %347 : vector<8x384xf32>
    %349 = vector.extract_strided_slice %342 {offsets = [0, 384], sizes = [8, 128], strides = [1, 1]} : vector<8x512xf32> to vector<8x128xf32>
    %350 = math.tanh %349 : vector<8x128xf32>
    %351 = vector.extract_strided_slice %348 {offsets = [0, 0], sizes = [8, 128], strides = [1, 1]} : vector<8x384xf32> to vector<8x128xf32>
    %352 = vector.extract_strided_slice %348 {offsets = [0, 128], sizes = [8, 128], strides = [1, 1]} : vector<8x384xf32> to vector<8x128xf32>
    %353 = vector.extract_strided_slice %348 {offsets = [0, 256], sizes = [8, 128], strides = [1, 1]} : vector<8x384xf32> to vector<8x128xf32>
    %354 = arith.mulf %352, %315 : vector<8x128xf32>
    %355 = arith.mulf %351, %350 : vector<8x128xf32>
    %356 = arith.addf %354, %355 : vector<8x128xf32>
    %357 = math.tanh %356 : vector<8x128xf32>
    %358 = arith.mulf %353, %357 : vector<8x128xf32>
    %c56 = arith.constant 56 : index
    %c0_63 = arith.constant 0 : index
    %359 = vector.load %arg14[%c56, %c0_63] : memref<64x128xf32, #tpu.memory_space<vmem>>, vector<8x128xf32>
    tpu.vector_store %arg14[%c56, %c0_63], %358 {strides = array<i32>} : memref<64x128xf32, #tpu.memory_space<vmem>>, vector<8x128xf32>,
    %c2_i32_64 = arith.constant 2 : i32
    %360 = tpu.memref_slice %arg18[%c2_i32_64] : memref<3x!tpu.dma_semaphore, #tpu.memory_space<semaphore_mem>> -> memref<1x!tpu.dma_semaphore, #tpu.memory_space<semaphore_mem>>
    %361 = tpu.memref_squeeze %360 : memref<1x!tpu.dma_semaphore, #tpu.memory_space<semaphore_mem>> -> memref<!tpu.dma_semaphore, #tpu.memory_space<semaphore_mem>>
    tpu.wait_dma2 semaphore(%361 : memref<!tpu.dma_semaphore, #tpu.memory_space<semaphore_mem>>) src(%arg10 : memref<128x128xbf16, #tpu.memory_space<any>>) dst(%arg17 : memref<128x128xbf16, #tpu.memory_space<vmem>>)
    %c0_65 = arith.constant 0 : index
    %c0_66 = arith.constant 0 : index
    %362 = vector.load %arg14[%c0_65, %c0_66] : memref<64x128xf32, #tpu.memory_space<vmem>>, vector<64x128xf32>
    %363 = arith.truncf %362 : vector<64x128xf32> to vector<64x128xbf16>
    %c0_67 = arith.constant 0 : index
    %c0_68 = arith.constant 0 : index
    %364 = vector.load %arg17[%c0_67, %c0_68] : memref<128x128xbf16, #tpu.memory_space<vmem>>, vector<128x128xbf16>
    %cst_69 = arith.constant dense<0.000000e+00> : vector<64x128xf32>
    %365 = tpu.matmul %363, %364, %cst_69 {dimension_numbers = #tpu.dot_dimension_numbers<[1], [0], [0], [1], [0, 0, 1, 1], [], []>} : vector<64x128xbf16>, vector<128x128xbf16>, vector<64x128xf32> -> vector<64x128xf32>
    %c0_70 = arith.constant 0 : index
    %c0_71 = arith.constant 0 : index
    %366 = vector.load %arg7[%c0_70, %c0_71] : memref<1x128xf32, #tpu.memory_space<vmem>>, vector<1x128xf32>
    %367 = vector.broadcast %366 : vector<1x128xf32> to vector<64x128xf32>
    %368 = arith.addf %365, %367 : vector<64x128xf32>
    %c0_72 = arith.constant 0 : index
    %c0_73 = arith.constant 0 : index
    %369 = vector.load %arg11[%c0_72, %c0_73] : memref<64x128xf32, #tpu.memory_space<vmem>>, vector<64x128xf32>
    tpu.vector_store %arg11[%c0_72, %c0_73], %368 {strides = array<i32>} : memref<64x128xf32, #tpu.memory_space<vmem>>, vector<64x128xf32>,
    %c0_74 = arith.constant 0 : index
    %c0_75 = arith.constant 0 : index
    %c0_76 = arith.constant 0 : index
    %370 = vector.load %arg12[%c0_74, %c0_75, %c0_76] : memref<2x8x128xf32, #tpu.memory_space<vmem>>, vector<1x8x128xf32>
    %371 = vector.shape_cast %370 : vector<1x8x128xf32> to vector<8x128xf32>
    %372 = vector.shape_cast %338 : vector<8x128xf32> to vector<1x8x128xf32>
    tpu.vector_store %arg12[%c0_74, %c0_75, %c0_76], %372 {strides = array<i32>} : memref<2x8x128xf32, #tpu.memory_space<vmem>>, vector<1x8x128xf32>,
    %c1 = arith.constant 1 : index
    %c0_77 = arith.constant 0 : index
    %c0_78 = arith.constant 0 : index
    %373 = vector.load %arg12[%c1, %c0_77, %c0_78] : memref<2x8x128xf32, #tpu.memory_space<vmem>>, vector<1x8x128xf32>
    %374 = vector.shape_cast %373 : vector<1x8x128xf32> to vector<8x128xf32>
    %375 = vector.shape_cast %358 : vector<8x128xf32> to vector<1x8x128xf32>
    tpu.vector_store %arg12[%c1, %c0_77, %c0_78], %375 {strides = array<i32>} : memref<2x8x128xf32, #tpu.memory_space<vmem>>, vector<1x8x128xf32>,
    %c0_79 = arith.constant 0 : index
    %c0_80 = arith.constant 0 : index
    %c0_81 = arith.constant 0 : index
    %376 = vector.load %arg13[%c0_79, %c0_80, %c0_81] : memref<2x8x128xf32, #tpu.memory_space<vmem>>, vector<1x8x128xf32>
    %377 = vector.shape_cast %376 : vector<1x8x128xf32> to vector<8x128xf32>
    %378 = vector.shape_cast %336 : vector<8x128xf32> to vector<1x8x128xf32>
    tpu.vector_store %arg13[%c0_79, %c0_80, %c0_81], %378 {strides = array<i32>} : memref<2x8x128xf32, #tpu.memory_space<vmem>>, vector<1x8x128xf32>,
    %c1_82 = arith.constant 1 : index
    %c0_83 = arith.constant 0 : index
    %c0_84 = arith.constant 0 : index
    %379 = vector.load %arg13[%c1_82, %c0_83, %c0_84] : memref<2x8x128xf32, #tpu.memory_space<vmem>>, vector<1x8x128xf32>
    %380 = vector.shape_cast %379 : vector<1x8x128xf32> to vector<8x128xf32>
    %381 = vector.shape_cast %356 : vector<8x128xf32> to vector<1x8x128xf32>
    tpu.vector_store %arg13[%c1_82, %c0_83, %c0_84], %381 {strides = array<i32>} : memref<2x8x128xf32, #tpu.memory_space<vmem>>, vector<1x8x128xf32>,
    return
  }
}

</mosaic_0001>

<llo_original>
// kernel: tpu_custom_call.1
$region0: #{tpu_custom_call.1}
  #allocation0 [shape = 'u32[]', space=smem, size = 0x4, offset = 0x4, fixed_abs, tag = 'smem constant byte address 0x4 - core index']
  #allocation1 [shape = 'u32[72,128]{1,0:T(1,128)}', space=vmem, size = 0x9000, scoped, tag = 'internal scratch']
  #allocation2 [shape = 'f32[64,128]{1,0:T(8,128)}', space=vmem, size = 0x8000, scoped, tag = 'scratch operand']
  #allocation3 [shape = 'bf16[128,512]{1,0:T(8,128)(2,1)}', space=vmem, size = 0x20000, scoped, tag = 'scratch operand']
  #allocation4 [shape = 'bf16[256,512]{1,0:T(8,128)(2,1)}', space=vmem, size = 0x40000, scoped, tag = 'scratch operand']
  #allocation5 [shape = 'bf16[128,128]{1,0:T(8,128)(2,1)}', space=vmem, size = 0x8000, scoped, tag = 'scratch operand']
  #allocation6 [shape = 's32[3]{0}', space=sflag, size = 0xc, scoped, tag = 'scratch operand']
  #allocation17 [shape = 's32[]', space=sflag, size = 0x4, offset = 0, fixed_abs, tag = 'sflag constant byte address 0x0 - dummy sync flag']
  #allocation18 [shape = 's32[]', space=sflag, size = 0x4, offset = 0, fixed_abs, tag = 'sflag constant byte address 0x0 - dummy sync flag']
  #allocation19 [shape = 'u32[]', space=smem, size = 0x4, offset = 0x44, fixed_abs, tag = 'smem constant byte address 0x44 - assertion arg 0']
  #allocation20 [shape = 'u32[]', space=smem, size = 0x4, offset = 0x48, fixed_abs, tag = 'smem constant byte address 0x48 - assertion arg 1']
  #allocation21 [shape = 's32[]', space=sflag, size = 0x4, offset = 0, fixed_abs, tag = 'sflag constant byte address 0x0 - dummy sync flag']
  #allocation22 [shape = 's32[]', space=sflag, size = 0x4, offset = 0, fixed_abs, tag = 'sflag constant byte address 0x0 - dummy sync flag']
  #allocation23 [shape = 's32[]', space=sflag, size = 0x4, offset = 0, fixed_abs, tag = 'sflag constant byte address 0x0 - dummy sync flag']
  %s0 = inlined_call_operand.vmem [shape: f32[64,16], index: 0, kind: input, shape index: {}]
  %s1 = inlined_call_operand.hbm [shape: f32[8,512], index: 1, kind: input, shape index: {}]
  %s2 = inlined_call_operand.hbm [shape: bf16[16,512], index: 2, kind: input, shape index: {}]
  %s3 = inlined_call_operand.vmem [shape: f32[1,512], index: 3, kind: input, shape index: {}]
  %s4 = inlined_call_operand.hbm [shape: bf16[512,128], index: 4, kind: input, shape index: {}]
  %s5 = inlined_call_operand.vmem [shape: f32[1,128], index: 5, kind: input, shape index: {}]
  %s6 = inlined_call_operand.vmem [shape: f32[1,512], index: 6, kind: input, shape index: {}]
  %s7 = inlined_call_operand.vmem [shape: f32[1,128], index: 7, kind: input, shape index: {}]
  %s8 = inlined_call_operand.hbm [shape: bf16[128,512], index: 8, kind: input, shape index: {}]
  %s9 = inlined_call_operand.hbm [shape: bf16[256,512], index: 9, kind: input, shape index: {}]
  %s10 = inlined_call_operand.vmem [shape: bf16[128,128], index: 10, kind: input, shape index: {}]
  %s11 = inlined_call_operand.hbm [shape: f32[64,128], index: 11, kind: output, shape index: {0}]
  %s12 = inlined_call_operand.hbm [shape: f32[2,8,128], index: 12, kind: output, shape index: {1}]
  %s13 = inlined_call_operand.hbm [shape: f32[2,8,128], index: 13, kind: output, shape index: {2}]
  %14 = xla_tuple %s11, %s12, %s13
  %s15 = sld [smem:[#allocation0]]
  $region97: #{tpu_custom_call.1} parent=0
    _
  %s17 = ssub.s32 1, %s15
  %s18 = scalar_select 0, %s17, %s15
  $region1: #{tpu_custom_call.1} parent=0
    #allocation7 [shape = 'u8[16384]{0}', space=vmem, size = 0x4000, scoped, tag = 'input window, operand 1, single buffered']
    #allocation8 [shape = 's32[1]{0}', space=sflag, size = 0x4, scoped, tag = 'scoped memory for tpu_custom_call.1']
    #allocation9 [shape = 's32[1]{0}', space=sflag, size = 0x4, scoped, tag = 'scoped memory for tpu_custom_call.1']
    #allocation10 [shape = 'u8[16384]{0}', space=vmem, size = 0x4000, scoped, tag = 'input window, operand 2, single buffered']
    #allocation11 [shape = 's32[1]{0}', space=sflag, size = 0x4, scoped, tag = 'scoped memory for tpu_custom_call.1']
    #allocation12 [shape = 'u8[131072]{0}', space=vmem, size = 0x20000, scoped, tag = 'input window, operand 4, single buffered']
    #allocation13 [shape = 'u8[32768]{0}', space=vmem, size = 0x8000, scoped, tag = 'output window, operand 0, single buffered']
    #allocation14 [shape = 'u8[8192]{0}', space=vmem, size = 0x2000, scoped, tag = 'output window, operand 1, single buffered']
    #allocation15 [shape = 's32[1]{0}', space=sflag, size = 0x4, scoped, tag = 'scoped memory for tpu_custom_call.1']
    #allocation16 [shape = 'u8[8192]{0}', space=vmem, size = 0x2000, scoped, tag = 'output window, operand 2, single buffered']
    %19 = vsyncpa [#allocation8], 0
    %20 = vsyncpa [#allocation11], 0
    %21 = vsyncpa [#allocation9], 0
    %22 = vsyncpa [#allocation15], 0
    // Predicated region
    $region2: #{tpu_custom_call.1} parent=1 // pred_check
      _
    $region3: #{tpu_custom_call.1} parent=1 // pred_check_branch
      %24 = sbr.rel (0) target = $region5
    $region4: #{tpu_custom_call.1} parent=1 // pred_region
      _
    $region5: #{tpu_custom_call.1} parent=1 // pred_fallthru
      _
    // Predicated region
    $region6: #{tpu_custom_call.1} parent=1 // pred_check
      _
    $region7: #{tpu_custom_call.1} parent=1 // pred_check_branch
      %26 = sbr.rel (0) target = $region9
    $region8: #{tpu_custom_call.1} parent=1 // pred_region
      %28 = vsyncadd [#allocation8], 0
      %s30 = sshll.u32 %s1, 4
      %s31 = int_to_ptr.hbm [resolvable:$true] %s30
      %s32 = sshll.u32 [#allocation7], 4
      %s33 = int_to_ptr.vmem [resolvable:$true] %s32
      %35 = dma.hbm_to_vmem [thread:$0]  %s31, 512, %s33, [#allocation8]
    $region9: #{tpu_custom_call.1} parent=1 // pred_fallthru
      _
    // Predicated region
    $region10: #{tpu_custom_call.1} parent=1 // pred_check
      _
    $region11: #{tpu_custom_call.1} parent=1 // pred_check_branch
      %37 = sbr.rel (0) target = $region13
    $region12: #{tpu_custom_call.1} parent=1 // pred_region
      %39 = vsyncadd [#allocation11], 0
      %s40 = sshll.u32 %s2, 4
      %s41 = int_to_ptr.hbm [resolvable:$true] %s40
      %s42 = sshll.u32 [#allocation10], 4
      %s43 = int_to_ptr.vmem [resolvable:$true] %s42
      %48 = dma.hbm_to_vmem [thread:$0]  %s41, 512, %s43, [#allocation11], 256, 256, 16
    $region13: #{tpu_custom_call.1} parent=1 // pred_fallthru
      _
    // Predicated region
    $region14: #{tpu_custom_call.1} parent=1 // pred_check
      _
    $region15: #{tpu_custom_call.1} parent=1 // pred_check_branch
      %50 = sbr.rel (0) target = $region17
    $region16: #{tpu_custom_call.1} parent=1 // pred_region
      _
    $region17: #{tpu_custom_call.1} parent=1 // pred_fallthru
      _
    // Predicated region
    $region18: #{tpu_custom_call.1} parent=1 // pred_check
      _
    $region19: #{tpu_custom_call.1} parent=1 // pred_check_branch
      %52 = sbr.rel (0) target = $region21
    $region20: #{tpu_custom_call.1} parent=1 // pred_region
      %54 = vsyncadd [#allocation11], 0
      %s55 = sshll.u32 %s4, 4
      %s56 = int_to_ptr.hbm [resolvable:$true] %s55
      %s57 = sshll.u32 [#allocation12], 4
      %s58 = int_to_ptr.vmem [resolvable:$true] %s57
      %63 = dma.hbm_to_vmem [thread:$0]  %s56, 4096, %s58, [#allocation11], 64, 64, 4
    $region21: #{tpu_custom_call.1} parent=1 // pred_fallthru
      _
    // Predicated region
    $region22: #{tpu_custom_call.1} parent=1 // pred_check
      _
    $region23: #{tpu_custom_call.1} parent=1 // pred_check_branch
      %65 = sbr.rel (0) target = $region25
    $region24: #{tpu_custom_call.1} parent=1 // pred_region
      _
    $region25: #{tpu_custom_call.1} parent=1 // pred_fallthru
      _
    // Predicated region
    $region26: #{tpu_custom_call.1} parent=1 // pred_check
      _
    $region27: #{tpu_custom_call.1} parent=1 // pred_check_branch
      %67 = sbr.rel (0) target = $region29
    $region28: #{tpu_custom_call.1} parent=1 // pred_region
      _
    $region29: #{tpu_custom_call.1} parent=1 // pred_fallthru
      _
    // Predicated region
    $region30: #{tpu_custom_call.1} parent=1 // pred_check
      _
    $region31: #{tpu_custom_call.1} parent=1 // pred_check_branch
      %69 = sbr.rel (0) target = $region33
    $region32: #{tpu_custom_call.1} parent=1 // pred_region
      _
    $region33: #{tpu_custom_call.1} parent=1 // pred_fallthru
      _
    // Predicated region
    $region34: #{tpu_custom_call.1} parent=1 // pred_check
      _
    $region35: #{tpu_custom_call.1} parent=1 // pred_check_branch
      %71 = sbr.rel (0) target = $region37
    $region36: #{tpu_custom_call.1} parent=1 // pred_region
      %73 = dma.done [#allocation8], 512
    $region37: #{tpu_custom_call.1} parent=1 // pred_fallthru
      _
    // Predicated region
    $region38: #{tpu_custom_call.1} parent=1 // pred_check
      _
    $region39: #{tpu_custom_call.1} parent=1 // pred_check_branch
      %75 = sbr.rel (0) target = $region41
    $region40: #{tpu_custom_call.1} parent=1 // pred_region
      %77 = dma.done [#allocation11], 512
    $region41: #{tpu_custom_call.1} parent=1 // pred_fallthru
      _
    // Predicated region
    $region42: #{tpu_custom_call.1} parent=1 // pred_check
      _
    $region43: #{tpu_custom_call.1} parent=1 // pred_check_branch
      %79 = sbr.rel (0) target = $region45
    $region44: #{tpu_custom_call.1} parent=1 // pred_region
      %81 = dma.done [#allocation11], 4096
    $region45: #{tpu_custom_call.1} parent=1 // pred_fallthru
      _
    // Predicated region
    $region46: #{tpu_custom_call.1} parent=1 // pred_check
      _
    $region47: #{tpu_custom_call.1} parent=1 // pred_check_branch
      %84 = sbr.rel target = $region49
    $region48: #{tpu_custom_call.1} parent=1 // pred_region
      %85 = sst [smem:[#allocation19]] [#allocation18]
      %86 = sst [smem:[#allocation20]] [#allocation17]
    $region49: #{tpu_custom_call.1} parent=1 // pred_fallthru
      _
    %88 = shalt.err (0)
    %s90 = sshll.u32 %s8, 4
    %s91 = int_to_ptr.hbm [resolvable:$true] %s90
    %s92 = sshll.u32 [#allocation3], 4
    %s93 = int_to_ptr.vmem [resolvable:$true] %s92
    %95 = dma.hbm_to_vmem [thread:$0]  %s91, 4096, %s93, [#allocation6]
    %s96 = scalar_lea.sflag [#allocation6], 1
    // Predicated region
    $region50: #{tpu_custom_call.1} parent=1 // pred_check
      _
    $region51: #{tpu_custom_call.1} parent=1 // pred_check_branch
      %98 = sbr.rel target = $region53
    $region52: #{tpu_custom_call.1} parent=1 // pred_region
      %99 = sst [smem:[#allocation19]] [#allocation22]
      %100 = sst [smem:[#allocation20]] [#allocation21]
    $region53: #{tpu_custom_call.1} parent=1 // pred_fallthru
      _
    %102 = shalt.err (0)
    %s104 = sshll.u32 %s9, 4
    %s105 = int_to_ptr.hbm [resolvable:$true] %s104
    %s106 = sshll.u32 [#allocation4], 4
    %s107 = int_to_ptr.vmem [resolvable:$true] %s106
    %109 = dma.hbm_to_vmem [thread:$0]  %s105, 8192, %s107, %s96
    %s110 = scalar_lea.sflag [#allocation6], 2
    // Predicated region
    $region54: #{tpu_custom_call.1} parent=1 // pred_check
      _
    $region55: #{tpu_custom_call.1} parent=1 // pred_check_branch
      %112 = sbr.rel (0) target = $region57
    $region56: #{tpu_custom_call.1} parent=1 // pred_region
      loop: start=0, step=1, limit=1
      $region58: #{tpu_custom_call.1} parent=56 // loop_pre_header
        _
      $region59: #{tpu_custom_call.1} parent=56 // loop_header
        %s114 = sphi 0, %s118
        %p115 = scmp.ge.s32.totalorder %s114, 1
        %s119 = sphi %s10, %s10
        %s120 = sphi [#allocation5], [#allocation5]
      $region60: #{tpu_custom_call.1} parent=56 // loop_header_branch
        %117 = sbr.rel (%p115) target = $region64
      $region61: #{tpu_custom_call.1} parent=56 // loop_body
        %v121 = vld [vmem:[%s119] sm:$0xff]
        %122 = vst [vmem:[%s120] sm:$0xff] %v121
        %v123 = vld [vmem:[%s119 + $0x8] sm:$0xff]
        %124 = vst [vmem:[%s120 + $0x8] sm:$0xff] %v123
        %v125 = vld [vmem:[%s119 + $0x10] sm:$0xff]
        %126 = vst [vmem:[%s120 + $0x10] sm:$0xff] %v125
        %v127 = vld [vmem:[%s119 + $0x18] sm:$0xff]
        %128 = vst [vmem:[%s120 + $0x18] sm:$0xff] %v127
        %v129 = vld [vmem:[%s119 + $0x20] sm:$0xff]
        %130 = vst [vmem:[%s120 + $0x20] sm:$0xff] %v129
        %v131 = vld [vmem:[%s119 + $0x28] sm:$0xff]
        %132 = vst [vmem:[%s120 + $0x28] sm:$0xff] %v131
        %v133 = vld [vmem:[%s119 + $0x30] sm:$0xff]
        %134 = vst [vmem:[%s120 + $0x30] sm:$0xff] %v133
        %v135 = vld [vmem:[%s119 + $0x38] sm:$0xff]
        %136 = vst [vmem:[%s120 + $0x38] sm:$0xff] %v135
      $region62: #{tpu_custom_call.1} parent=56 // loop_footer
        %s118 = sadd.s32 1, %s114
      $region63: #{tpu_custom_call.1} parent=56 // loop_footer_branch
        %113 = sbr.rel target = $region59
      $region64: #{tpu_custom_call.1} parent=56 // loop_exit
        _
    $region57: #{tpu_custom_call.1} parent=1 // pred_fallthru
      _
    // Predicated region
    $region65: #{tpu_custom_call.1} parent=1 // pred_check
      _
    $region66: #{tpu_custom_call.1} parent=1 // pred_check_branch
      %138 = sbr.rel target = $region68
    $region67: #{tpu_custom_call.1} parent=1 // pred_region
      _
    $region68: #{tpu_custom_call.1} parent=1 // pred_fallthru
      _
    // Predicated region
    $region69: #{tpu_custom_call.1} parent=1 // pred_check
      _
    $region70: #{tpu_custom_call.1} parent=1 // pred_check_branch
      %141 = sbr.rel (0) target = $region72
    $region71: #{tpu_custom_call.1} parent=1 // pred_region
      %142 = vsyncadd %s110, 1024
    $region72: #{tpu_custom_call.1} parent=1 // pred_fallthru
      _
    %v143 = vld [vmem:[#allocation7] sm:$0xff]
    %v144 = vld [vmem:[#allocation7 + $0x8] sm:$0xff]
    %v145 = vld [vmem:[#allocation7 + $0x10] sm:$0xff]
    %v146 = vld [vmem:[#allocation7 + $0x18] sm:$0xff]
    %v147 = vpack.c.bf16 %v143, %v143
    %v148 = vpack.c.bf16 %v144, %v144
    %v149 = vpack.c.bf16 %v145, %v145
    %v150 = vpack.c.bf16 %v146, %v146
    %v151 = vld [vmem:[#allocation12] sm:$0xf]
    %v152 = vld [vmem:[#allocation12 + $0x4] sm:$0xf]
    %v153 = vld [vmem:[#allocation12 + $0x8] sm:$0xf]
    %v154 = vld [vmem:[#allocation12 + $0xc] sm:$0xf]
    %v155 = vld [vmem:[#allocation12 + $0x10] sm:$0xf]
    %v156 = vld [vmem:[#allocation12 + $0x14] sm:$0xf]
    %v157 = vld [vmem:[#allocation12 + $0x18] sm:$0xf]
    %v158 = vld [vmem:[#allocation12 + $0x1c] sm:$0xf]
    %v159 = vld [vmem:[#allocation12 + $0x20] sm:$0xf]
    %v160 = vld [vmem:[#allocation12 + $0x24] sm:$0xf]
    %v161 = vld [vmem:[#allocation12 + $0x28] sm:$0xf]
    %v162 = vld [vmem:[#allocation12 + $0x2c] sm:$0xf]
    %v163 = vld [vmem:[#allocation12 + $0x30] sm:$0xf]
    %v164 = vld [vmem:[#allocation12 + $0x34] sm:$0xf]
    %v165 = vld [vmem:[#allocation12 + $0x38] sm:$0xf]
    %v166 = vld [vmem:[#allocation12 + $0x3c] sm:$0xf]
    %v167 = vld [vmem:[#allocation12 + $0x40] sm:$0xf]
    %v168 = vld [vmem:[#allocation12 + $0x44] sm:$0xf]
    %v169 = vld [vmem:[#allocation12 + $0x48] sm:$0xf]
    %v170 = vld [vmem:[#allocation12 + $0x4c] sm:$0xf]
    %v171 = vld [vmem:[#allocation12 + $0x50] sm:$0xf]
    %v172 = vld [vmem:[#allocation12 + $0x54] sm:$0xf]
    %v173 = vld [vmem:[#allocation12 + $0x58] sm:$0xf]
    %v174 = vld [vmem:[#allocation12 + $0x5c] sm:$0xf]
    %v175 = vld [vmem:[#allocation12 + $0x60] sm:$0xf]
    %v176 = vld [vmem:[#allocation12 + $0x64] sm:$0xf]
    %v177 = vld [vmem:[#allocation12 + $0x68] sm:$0xf]
    %v178 = vld [vmem:[#allocation12 + $0x6c] sm:$0xf]
    %v179 = vld [vmem:[#allocation12 + $0x70] sm:$0xf]
    %v180 = vld [vmem:[#allocation12 + $0x74] sm:$0xf]
    %v181 = vld [vmem:[#allocation12 + $0x78] sm:$0xf]
    %v182 = vld [vmem:[#allocation12 + $0x7c] sm:$0xf]
    %v183 = vld [vmem:[#allocation12 + $0x80] sm:$0xf]
    %v184 = vld [vmem:[#allocation12 + $0x84] sm:$0xf]
    %v185 = vld [vmem:[#allocation12 + $0x88] sm:$0xf]
    %v186 = vld [vmem:[#allocation12 + $0x8c] sm:$0xf]
    %v187 = vld [vmem:[#allocation12 + $0x90] sm:$0xf]
    %v188 = vld [vmem:[#allocation12 + $0x94] sm:$0xf]
    %v189 = vld [vmem:[#allocation12 + $0x98] sm:$0xf]
    %v190 = vld [vmem:[#allocation12 + $0x9c] sm:$0xf]
    %v191 = vld [vmem:[#allocation12 + $0xa0] sm:$0xf]
    %v192 = vld [vmem:[#allocation12 + $0xa4] sm:$0xf]
    %v193 = vld [vmem:[#allocation12 + $0xa8] sm:$0xf]
    %v194 = vld [vmem:[#allocation12 + $0xac] sm:$0xf]
    %v195 = vld [vmem:[#allocation12 + $0xb0] sm:$0xf]
    %v196 = vld [vmem:[#allocation12 + $0xb4] sm:$0xf]
    %v197 = vld [vmem:[#allocation12 + $0xb8] sm:$0xf]
    %v198 = vld [vmem:[#allocation12 + $0xbc] sm:$0xf]
    %v199 = vld [vmem:[#allocation12 + $0xc0] sm:$0xf]
    %v200 = vld [vmem:[#allocation12 + $0xc4] sm:$0xf]
    %v201 = vld [vmem:[#allocation12 + $0xc8] sm:$0xf]
    %v202 = vld [vmem:[#allocation12 + $0xcc] sm:$0xf]
    %v203 = vld [vmem:[#allocation12 + $0xd0] sm:$0xf]
    %v204 = vld [vmem:[#allocation12 + $0xd4] sm:$0xf]
    %v205 = vld [vmem:[#allocation12 + $0xd8] sm:$0xf]
    %v206 = vld [vmem:[#allocation12 + $0xdc] sm:$0xf]
    %v207 = vld [vmem:[#allocation12 + $0xe0] sm:$0xf]
    %v208 = vld [vmem:[#allocation12 + $0xe4] sm:$0xf]
    %v209 = vld [vmem:[#allocation12 + $0xe8] sm:$0xf]
    %v210 = vld [vmem:[#allocation12 + $0xec] sm:$0xf]
    %v211 = vld [vmem:[#allocation12 + $0xf0] sm:$0xf]
    %v212 = vld [vmem:[#allocation12 + $0xf4] sm:$0xf]
    %v213 = vld [vmem:[#allocation12 + $0xf8] sm:$0xf]
    %v214 = vld [vmem:[#allocation12 + $0xfc] sm:$0xf]
    %v215 = vld [vmem:[%s5] sm:$0x1]
    %v217 = vperm.slane %v215, 0
    %v283 = vunpack.c.l.b16 %v151
    %v284 = vunpack.c.l.b16 %v152
    %v285 = vunpack.c.l.b16 %v153
    %v286 = vunpack.c.l.b16 %v154
    %v287 = vunpack.c.l.b16 %v155
    %v288 = vunpack.c.l.b16 %v156
    %v289 = vunpack.c.l.b16 %v157
    %v290 = vunpack.c.l.b16 %v158
    %v291 = vunpack.c.l.b16 %v159
    %v292 = vunpack.c.l.b16 %v160
    %v293 = vunpack.c.l.b16 %v161
    %v294 = vunpack.c.l.b16 %v162
    %v295 = vunpack.c.l.b16 %v163
    %v296 = vunpack.c.l.b16 %v164
    %v297 = vunpack.c.l.b16 %v165
    %v298 = vunpack.c.l.b16 %v166
    %v299 = vunpack.c.l.b16 %v167
    %v300 = vunpack.c.l.b16 %v168
    %v301 = vunpack.c.l.b16 %v169
    %v302 = vunpack.c.l.b16 %v170
    %v303 = vunpack.c.l.b16 %v171
    %v304 = vunpack.c.l.b16 %v172
    %v305 = vunpack.c.l.b16 %v173
    %v306 = vunpack.c.l.b16 %v174
    %v307 = vunpack.c.l.b16 %v175
    %v308 = vunpack.c.l.b16 %v176
    %v309 = vunpack.c.l.b16 %v177
    %v310 = vunpack.c.l.b16 %v178
    %v311 = vunpack.c.l.b16 %v179
    %v312 = vunpack.c.l.b16 %v180
    %v313 = vunpack.c.l.b16 %v181
    %v314 = vunpack.c.l.b16 %v182
    %v315 = vunpack.c.l.b16 %v183
    %v316 = vunpack.c.l.b16 %v184
    %v317 = vunpack.c.l.b16 %v185
    %v318 = vunpack.c.l.b16 %v186
    %v319 = vunpack.c.l.b16 %v187
    %v320 = vunpack.c.l.b16 %v188
    %v321 = vunpack.c.l.b16 %v189
    %v322 = vunpack.c.l.b16 %v190
    %v323 = vunpack.c.l.b16 %v191
    %v324 = vunpack.c.l.b16 %v192
    %v325 = vunpack.c.l.b16 %v193
    %v326 = vunpack.c.l.b16 %v194
    %v327 = vunpack.c.l.b16 %v195
    %v328 = vunpack.c.l.b16 %v196
    %v329 = vunpack.c.l.b16 %v197
    %v330 = vunpack.c.l.b16 %v198
    %v331 = vunpack.c.l.b16 %v199
    %v332 = vunpack.c.l.b16 %v200
    %v333 = vunpack.c.l.b16 %v201
    %v334 = vunpack.c.l.b16 %v202
    %v335 = vunpack.c.l.b16 %v203
    %v336 = vunpack.c.l.b16 %v204
    %v337 = vunpack.c.l.b16 %v205
    %v338 = vunpack.c.l.b16 %v206
    %v339 = vunpack.c.l.b16 %v207
    %v340 = vunpack.c.l.b16 %v208
    %v341 = vunpack.c.l.b16 %v209
    %v342 = vunpack.c.l.b16 %v210
    %v343 = vunpack.c.l.b16 %v211
    %v344 = vunpack.c.l.b16 %v212
    %v345 = vunpack.c.l.b16 %v213
    %v346 = vunpack.c.l.b16 %v214
    %v347 = vpack.c.b16 %v284, %v283
    %v348 = vpack.c.b16 %v286, %v285
    %v349 = vpack.c.b16 %v288, %v287
    %v350 = vpack.c.b16 %v290, %v289
    %v351 = vpack.c.b16 %v292, %v291
    %v352 = vpack.c.b16 %v294, %v293
    %v353 = vpack.c.b16 %v296, %v295
    %v354 = vpack.c.b16 %v298, %v297
    %v355 = vpack.c.b16 %v300, %v299
    %v356 = vpack.c.b16 %v302, %v301
    %v357 = vpack.c.b16 %v304, %v303
    %v358 = vpack.c.b16 %v306, %v305
    %v359 = vpack.c.b16 %v308, %v307
    %v360 = vpack.c.b16 %v310, %v309
    %v361 = vpack.c.b16 %v312, %v311
    %v362 = vpack.c.b16 %v314, %v313
    %v363 = vpack.c.b16 %v316, %v315
    %v364 = vpack.c.b16 %v318, %v317
    %v365 = vpack.c.b16 %v320, %v319
    %v366 = vpack.c.b16 %v322, %v321
    %v367 = vpack.c.b16 %v324, %v323
    %v368 = vpack.c.b16 %v326, %v325
    %v369 = vpack.c.b16 %v328, %v327
    %v370 = vpack.c.b16 %v330, %v329
    %v371 = vpack.c.b16 %v332, %v331
    %v372 = vpack.c.b16 %v334, %v333
    %v373 = vpack.c.b16 %v336, %v335
    %v374 = vpack.c.b16 %v338, %v337
    %v375 = vpack.c.b16 %v340, %v339
    %v376 = vpack.c.b16 %v342, %v341
    %v377 = vpack.c.b16 %v344, %v343
    %v378 = vpack.c.b16 %v346, %v345
    %411 = vmatpush.bf16.msra.mxu0 %v354
    %412 = vmatpush.bf16.msra.mxu0 %v353
    %413 = vmatpush.bf16.msra.mxu0 %v352
    %414 = vmatpush.bf16.msra.mxu0 %v351
    %415 = vmatpush.bf16.msra.mxu0 %v350
    %416 = vmatpush.bf16.msra.mxu0 %v349
    %417 = vmatpush.bf16.msra.mxu0 %v348
    %418 = vmatpush.bf16.msra.mxu0 %v347
    %419 = vmatmul.bf16.gmra.mxu0 %v147
    %v420 = vpop.f32.mrf.mxu0
    %v421 = vadd.f32 %v217, %v420
    %v422 = vpop.f32.mrf.mxu0
    %423 = vdwg.mxu0
    %424 = vmatpush.bf16.msra.mxu0 %v362
    %425 = vmatpush.bf16.msra.mxu0 %v361
    %426 = vmatpush.bf16.msra.mxu0 %v360
    %427 = vmatpush.bf16.msra.mxu0 %v359
    %428 = vmatpush.bf16.msra.mxu0 %v358
    %429 = vmatpush.bf16.msra.mxu0 %v357
    %430 = vmatpush.bf16.msra.mxu0 %v356
    %431 = vmatpush.bf16.msra.mxu0 %v355
    %432 = vmatmul.bf16.gmra.mxu0 %v148
    %v433 = vpop.f32.mrf.mxu0
    %v434 = vadd.f32 %v421, %v433
    %v435 = vpop.f32.mrf.mxu0
    %436 = vdwg.mxu0
    %437 = vmatpush.bf16.msra.mxu0 %v370
    %438 = vmatpush.bf16.msra.mxu0 %v369
    %439 = vmatpush.bf16.msra.mxu0 %v368
    %440 = vmatpush.bf16.msra.mxu0 %v367
    %441 = vmatpush.bf16.msra.mxu0 %v366
    %442 = vmatpush.bf16.msra.mxu0 %v365
    %443 = vmatpush.bf16.msra.mxu0 %v364
    %444 = vmatpush.bf16.msra.mxu0 %v363
    %445 = vmatmul.bf16.gmra.mxu0 %v149
    %v446 = vpop.f32.mrf.mxu0
    %v447 = vadd.f32 %v434, %v446
    %v448 = vpop.f32.mrf.mxu0
    %449 = vdwg.mxu0
    %450 = vmatpush.bf16.msra.mxu0 %v378
    %451 = vmatpush.bf16.msra.mxu0 %v377
    %452 = vmatpush.bf16.msra.mxu0 %v376
    %453 = vmatpush.bf16.msra.mxu0 %v375
    %454 = vmatpush.bf16.msra.mxu0 %v374
    %455 = vmatpush.bf16.msra.mxu0 %v373
    %456 = vmatpush.bf16.msra.mxu0 %v372
    %457 = vmatpush.bf16.msra.mxu0 %v371
    %458 = vmatmul.bf16.gmra.mxu0 %v150
    %v459 = vpop.f32.mrf.mxu0
    %v460 = vadd.f32 %v447, %v459
    %v461 = vpop.f32.mrf.mxu0
    %462 = vdwg.mxu0
    %v463 = vld [vmem:[%s0] sm:$0xff]
    %v464 = vld [vmem:[%s0 + $0x8] sm:$0xff]
    %v465 = vld [vmem:[%s0 + $0x10] sm:$0xff]
    %v466 = vld [vmem:[%s0 + $0x18] sm:$0xff]
    %v467 = vld [vmem:[%s0 + $0x20] sm:$0xff]
    %v468 = vld [vmem:[%s0 + $0x28] sm:$0xff]
    %v469 = vld [vmem:[%s0 + $0x30] sm:$0xff]
    %v470 = vld [vmem:[%s0 + $0x38] sm:$0xff]
    %v471 = vpack.c.bf16 %v464, %v463
    %v472 = vpack.c.bf16 %v466, %v465
    %v473 = vpack.c.bf16 %v468, %v467
    %v474 = vpack.c.bf16 %v470, %v469
    %v475 = vld [vmem:[#allocation10] sm:$0xff]
    %v476 = vld [vmem:[#allocation10 + $0x8] sm:$0xff]
    %v477 = vld [vmem:[#allocation10 + $0x10] sm:$0xff]
    %v478 = vld [vmem:[#allocation10 + $0x18] sm:$0xff]
    %v479 = vld [vmem:[%s3] sm:$0xf]
    %v481 = vperm.slane %v479, 0
    %v482 = vperm.slane %v479, 1
    %v483 = vperm.slane %v479, 2
    %v484 = vperm.slane %v479, 3
    %v493 = vunpack.c.l.b16 %v475
    %v494 = vunpack.c.h.b16 %v475
    %v495 = vunpack.c.l.b16 %v476
    %v496 = vunpack.c.h.b16 %v476
    %v497 = vunpack.c.l.b16 %v477
    %v498 = vunpack.c.h.b16 %v477
    %v499 = vunpack.c.l.b16 %v478
    %v500 = vunpack.c.h.b16 %v478
    %v501 = vpack.c.b16 %v497, %v493
    %v502 = vpack.c.b16 %v498, %v494
    %v503 = vpack.c.b16 %v499, %v495
    %v504 = vpack.c.b16 %v500, %v496
    %vm509 = vcmask 130048
    %v511 = vsel %vm509, %v471, 0
    %v514 = vsel %vm509, %v472, 0
    %v517 = vsel %vm509, %v473, 0
    %v520 = vsel %vm509, %v474, 0
    %522 = vmatpush.bf16.msra.mxu0 0
    %523 = vmatpush.bf16.msra.mxu0 0
    %524 = vmatpush.bf16.msra.mxu0 0
    %525 = vmatpush.bf16.msra.mxu0 0
    %526 = vmatpush.bf16.msra.mxu0 0
    %527 = vmatpush.bf16.msra.mxu0 0
    %528 = vmatpush.bf16.msra.mxu0 0
    %529 = vmatpush.bf16.msra.mxu0 %v501
    %530 = vmatmul.bf16.gmra.mxu0 %v511
    %v531 = vpop.f32.mrf.mxu0
    %v532 = vadd.f32 %v481, %v531
    %v533 = vpop.f32.mrf.mxu0
    %v534 = vadd.f32 %v481, %v533
    %535 = vmatmul.bf16.gmra.mxu0 %v514
    %v536 = vpop.f32.mrf.mxu0
    %v537 = vadd.f32 %v481, %v536
    %v538 = vpop.f32.mrf.mxu0
    %v539 = vadd.f32 %v481, %v538
    %540 = vmatmul.bf16.gmra.mxu0 %v517
    %v541 = vpop.f32.mrf.mxu0
    %v542 = vadd.f32 %v481, %v541
    %v543 = vpop.f32.mrf.mxu0
    %v544 = vadd.f32 %v481, %v543
    %545 = vmatmul.bf16.gmra.mxu0 %v520
    %v546 = vpop.f32.mrf.mxu0
    %v547 = vadd.f32 %v481, %v546
    %v548 = vpop.f32.mrf.mxu0
    %v549 = vadd.f32 %v481, %v548
    %550 = vdwg.mxu0
    %551 = vmatpush.bf16.msra.mxu0 0
    %552 = vmatpush.bf16.msra.mxu0 0
    %553 = vmatpush.bf16.msra.mxu0 0
    %554 = vmatpush.bf16.msra.mxu0 0
    %555 = vmatpush.bf16.msra.mxu0 0
    %556 = vmatpush.bf16.msra.mxu0 0
    %557 = vmatpush.bf16.msra.mxu0 0
    %558 = vmatpush.bf16.msra.mxu0 %v502
    %559 = vmatmul.bf16.gmra.mxu0 %v511
    %v560 = vpop.f32.mrf.mxu0
    %v561 = vadd.f32 %v482, %v560
    %v562 = vpop.f32.mrf.mxu0
    %v563 = vadd.f32 %v482, %v562
    %564 = vmatmul.bf16.gmra.mxu0 %v514
    %v565 = vpop.f32.mrf.mxu0
    %v566 = vadd.f32 %v482, %v565
    %v567 = vpop.f32.mrf.mxu0
    %v568 = vadd.f32 %v482, %v567
    %569 = vmatmul.bf16.gmra.mxu0 %v517
    %v570 = vpop.f32.mrf.mxu0
    %v571 = vadd.f32 %v482, %v570
    %v572 = vpop.f32.mrf.mxu0
    %v573 = vadd.f32 %v482, %v572
    %574 = vmatmul.bf16.gmra.mxu0 %v520
    %v575 = vpop.f32.mrf.mxu0
    %v576 = vadd.f32 %v482, %v575
    %v577 = vpop.f32.mrf.mxu0
    %v578 = vadd.f32 %v482, %v577
    %579 = vdwg.mxu0
    %580 = vmatpush.bf16.msra.mxu0 0
    %581 = vmatpush.bf16.msra.mxu0 0
    %582 = vmatpush.bf16.msra.mxu0 0
    %583 = vmatpush.bf16.msra.mxu0 0
    %584 = vmatpush.bf16.msra.mxu0 0
    %585 = vmatpush.bf16.msra.mxu0 0
    %586 = vmatpush.bf16.msra.mxu0 0
    %587 = vmatpush.bf16.msra.mxu0 %v503
    %588 = vmatmul.bf16.gmra.mxu0 %v511
    %v589 = vpop.f32.mrf.mxu0
    %v590 = vadd.f32 %v483, %v589
    %v591 = vpop.f32.mrf.mxu0
    %v592 = vadd.f32 %v483, %v591
    %593 = vmatmul.bf16.gmra.mxu0 %v514
    %v594 = vpop.f32.mrf.mxu0
    %v595 = vadd.f32 %v483, %v594
    %v596 = vpop.f32.mrf.mxu0
    %v597 = vadd.f32 %v483, %v596
    %598 = vmatmul.bf16.gmra.mxu0 %v517
    %v599 = vpop.f32.mrf.mxu0
    %v600 = vadd.f32 %v483, %v599
    %v601 = vpop.f32.mrf.mxu0
    %v602 = vadd.f32 %v483, %v601
    %603 = vmatmul.bf16.gmra.mxu0 %v520
    %v604 = vpop.f32.mrf.mxu0
    %v605 = vadd.f32 %v483, %v604
    %v606 = vpop.f32.mrf.mxu0
    %v607 = vadd.f32 %v483, %v606
    %608 = vdwg.mxu0
    %609 = vmatpush.bf16.msra.mxu0 0
    %610 = vmatpush.bf16.msra.mxu0 0
    %611 = vmatpush.bf16.msra.mxu0 0
    %612 = vmatpush.bf16.msra.mxu0 0
    %613 = vmatpush.bf16.msra.mxu0 0
    %614 = vmatpush.bf16.msra.mxu0 0
    %615 = vmatpush.bf16.msra.mxu0 0
    %616 = vmatpush.bf16.msra.mxu0 %v504
    %617 = vmatmul.bf16.gmra.mxu0 %v511
    %v618 = vpop.f32.mrf.mxu0
    %v619 = vadd.f32 %v484, %v618
    %v620 = vpop.f32.mrf.mxu0
    %v621 = vadd.f32 %v484, %v620
    %622 = vmatmul.bf16.gmra.mxu0 %v514
    %v623 = vpop.f32.mrf.mxu0
    %v624 = vadd.f32 %v484, %v623
    %v625 = vpop.f32.mrf.mxu0
    %v626 = vadd.f32 %v484, %v625
    %627 = vmatmul.bf16.gmra.mxu0 %v517
    %v628 = vpop.f32.mrf.mxu0
    %v629 = vadd.f32 %v484, %v628
    %v630 = vpop.f32.mrf.mxu0
    %v631 = vadd.f32 %v484, %v630
    %632 = vmatmul.bf16.gmra.mxu0 %v520
    %v633 = vpop.f32.mrf.mxu0
    %v634 = vadd.f32 %v484, %v633
    %v635 = vpop.f32.mrf.mxu0
    %v636 = vadd.f32 %v484, %v635
    %637 = vdwg.mxu0
    %v638 = vld [vmem:[%s6] sm:$0xf]
    %v640 = vperm.slane %v638, 0
    %v641 = vperm.slane %v638, 1
    %v642 = vperm.slane %v638, 2
    %v643 = vperm.slane %v638, 3
    %s648 = smul.u32 4, 16
    %s649 = smul.u32 %s648, 4
    %s650 = sshll.u32 %s649, 4
    %651 = dma.done [#allocation6], %s650
    %v652 = vld [vmem:[#allocation3] sm:$0xff]
    %v653 = vld [vmem:[#allocation3 + $0x8] sm:$0xff]
    %v654 = vld [vmem:[#allocation3 + $0x10] sm:$0xff]
    %v655 = vld [vmem:[#allocation3 + $0x18] sm:$0xff]
    %v656 = vld [vmem:[#allocation3 + $0x20] sm:$0xff]
    %v657 = vld [vmem:[#allocation3 + $0x28] sm:$0xff]
    %v658 = vld [vmem:[#allocation3 + $0x30] sm:$0xff]
    %v659 = vld [vmem:[#allocation3 + $0x38] sm:$0xff]
    %v660 = vld [vmem:[#allocation3 + $0x40] sm:$0xff]
    %v661 = vld [vmem:[#allocation3 + $0x48] sm:$0xff]
    %v662 = vld [vmem:[#allocation3 + $0x50] sm:$0xff]
    %v663 = vld [vmem:[#allocation3 + $0x58] sm:$0xff]
    %v664 = vld [vmem:[#allocation3 + $0x60] sm:$0xff]
    %v665 = vld [vmem:[#allocation3 + $0x68] sm:$0xff]
    %v666 = vld [vmem:[#allocation3 + $0x70] sm:$0xff]
    %v667 = vld [vmem:[#allocation3 + $0x78] sm:$0xff]
    %v668 = vld [vmem:[#allocation3 + $0x80] sm:$0xff]
    %v669 = vld [vmem:[#allocation3 + $0x88] sm:$0xff]
    %v670 = vld [vmem:[#allocation3 + $0x90] sm:$0xff]
    %v671 = vld [vmem:[#allocation3 + $0x98] sm:$0xff]
    %v672 = vld [vmem:[#allocation3 + $0xa0] sm:$0xff]
    %v673 = vld [vmem:[#allocation3 + $0xa8] sm:$0xff]
    %v674 = vld [vmem:[#allocation3 + $0xb0] sm:$0xff]
    %v675 = vld [vmem:[#allocation3 + $0xb8] sm:$0xff]
    %v676 = vld [vmem:[#allocation3 + $0xc0] sm:$0xff]
    %v677 = vld [vmem:[#allocation3 + $0xc8] sm:$0xff]
    %v678 = vld [vmem:[#allocation3 + $0xd0] sm:$0xff]
    %v679 = vld [vmem:[#allocation3 + $0xd8] sm:$0xff]
    %v680 = vld [vmem:[#allocation3 + $0xe0] sm:$0xff]
    %v681 = vld [vmem:[#allocation3 + $0xe8] sm:$0xff]
    %v682 = vld [vmem:[#allocation3 + $0xf0] sm:$0xff]
    %v683 = vld [vmem:[#allocation3 + $0xf8] sm:$0xff]
    %v684 = vpack.c.bf16 %v460, %v460
    %v717 = vunpack.c.l.b16 %v652
    %v718 = vunpack.c.h.b16 %v652
    %v719 = vunpack.c.l.b16 %v653
    %v720 = vunpack.c.h.b16 %v653
    %v721 = vunpack.c.l.b16 %v654
    %v722 = vunpack.c.h.b16 %v654
    %v723 = vunpack.c.l.b16 %v655
    %v724 = vunpack.c.h.b16 %v655
    %v725 = vunpack.c.l.b16 %v656
    %v726 = vunpack.c.h.b16 %v656
    %v727 = vunpack.c.l.b16 %v657
    %v728 = vunpack.c.h.b16 %v657
    %v729 = vunpack.c.l.b16 %v658
    %v730 = vunpack.c.h.b16 %v658
    %v731 = vunpack.c.l.b16 %v659
    %v732 = vunpack.c.h.b16 %v659
    %v733 = vunpack.c.l.b16 %v660
    %v734 = vunpack.c.h.b16 %v660
    %v735 = vunpack.c.l.b16 %v661
    %v736 = vunpack.c.h.b16 %v661
    %v737 = vunpack.c.l.b16 %v662
    %v738 = vunpack.c.h.b16 %v662
    %v739 = vunpack.c.l.b16 %v663
    %v740 = vunpack.c.h.b16 %v663
    %v741 = vunpack.c.l.b16 %v664
    %v742 = vunpack.c.h.b16 %v664
    %v743 = vunpack.c.l.b16 %v665
    %v744 = vunpack.c.h.b16 %v665
    %v745 = vunpack.c.l.b16 %v666
    %v746 = vunpack.c.h.b16 %v666
    %v747 = vunpack.c.l.b16 %v667
    %v748 = vunpack.c.h.b16 %v667
    %v749 = vunpack.c.l.b16 %v668
    %v750 = vunpack.c.h.b16 %v668
    %v751 = vunpack.c.l.b16 %v669
    %v752 = vunpack.c.h.b16 %v669
    %v753 = vunpack.c.l.b16 %v670
    %v754 = vunpack.c.h.b16 %v670
    %v755 = vunpack.c.l.b16 %v671
    %v756 = vunpack.c.h.b16 %v671
    %v757 = vunpack.c.l.b16 %v672
    %v758 = vunpack.c.h.b16 %v672
    %v759 = vunpack.c.l.b16 %v673
    %v760 = vunpack.c.h.b16 %v673
    %v761 = vunpack.c.l.b16 %v674
    %v762 = vunpack.c.h.b16 %v674
    %v763 = vunpack.c.l.b16 %v675
    %v764 = vunpack.c.h.b16 %v675
    %v765 = vunpack.c.l.b16 %v676
    %v766 = vunpack.c.h.b16 %v676
    %v767 = vunpack.c.l.b16 %v677
    %v768 = vunpack.c.h.b16 %v677
    %v769 = vunpack.c.l.b16 %v678
    %v770 = vunpack.c.h.b16 %v678
    %v771 = vunpack.c.l.b16 %v679
    %v772 = vunpack.c.h.b16 %v679
    %v773 = vunpack.c.l.b16 %v680
    %v774 = vunpack.c.h.b16 %v680
    %v775 = vunpack.c.l.b16 %v681
    %v776 = vunpack.c.h.b16 %v681
    %v777 = vunpack.c.l.b16 %v682
    %v778 = vunpack.c.h.b16 %v682
    %v779 = vunpack.c.l.b16 %v683
    %v780 = vunpack.c.h.b16 %v683
    %v781 = vpack.c.b16 %v721, %v717
    %v782 = vpack.c.b16 %v722, %v718
    %v783 = vpack.c.b16 %v723, %v719
    %v784 = vpack.c.b16 %v724, %v720
    %v785 = vpack.c.b16 %v729, %v725
    %v786 = vpack.c.b16 %v730, %v726
    %v787 = vpack.c.b16 %v731, %v727
    %v788 = vpack.c.b16 %v732, %v728
    %v789 = vpack.c.b16 %v737, %v733
    %v790 = vpack.c.b16 %v738, %v734
    %v791 = vpack.c.b16 %v739, %v735
    %v792 = vpack.c.b16 %v740, %v736
    %v793 = vpack.c.b16 %v745, %v741
    %v794 = vpack.c.b16 %v746, %v742
    %v795 = vpack.c.b16 %v747, %v743
    %v796 = vpack.c.b16 %v748, %v744
    %v797 = vpack.c.b16 %v753, %v749
    %v798 = vpack.c.b16 %v754, %v750
    %v799 = vpack.c.b16 %v755, %v751
    %v800 = vpack.c.b16 %v756, %v752
    %v801 = vpack.c.b16 %v761, %v757
    %v802 = vpack.c.b16 %v762, %v758
    %v803 = vpack.c.b16 %v763, %v759
    %v804 = vpack.c.b16 %v764, %v760
    %v805 = vpack.c.b16 %v769, %v765
    %v806 = vpack.c.b16 %v770, %v766
    %v807 = vpack.c.b16 %v771, %v767
    %v808 = vpack.c.b16 %v772, %v768
    %v809 = vpack.c.b16 %v777, %v773
    %v810 = vpack.c.b16 %v778, %v774
    %v811 = vpack.c.b16 %v779, %v775
    %v812 = vpack.c.b16 %v780, %v776
    %845 = vmatpush.bf16.msra.mxu0 %v809
    %846 = vmatpush.bf16.msra.mxu0 %v805
    %847 = vmatpush.bf16.msra.mxu0 %v801
    %848 = vmatpush.bf16.msra.mxu0 %v797
    %849 = vmatpush.bf16.msra.mxu0 %v793
    %850 = vmatpush.bf16.msra.mxu0 %v789
    %851 = vmatpush.bf16.msra.mxu0 %v785
    %852 = vmatpush.bf16.msra.mxu0 %v781
    %853 = vmatmul.bf16.gmra.mxu0 %v684
    %v854 = vpop.f32.mrf.mxu0
    %v855 = vadd.f32 0.0, %v854
    %v856 = vpop.f32.mrf.mxu0
    %857 = vdwg.mxu0
    %858 = vmatpush.bf16.msra.mxu0 %v810
    %859 = vmatpush.bf16.msra.mxu0 %v806
    %860 = vmatpush.bf16.msra.mxu0 %v802
    %861 = vmatpush.bf16.msra.mxu0 %v798
    %862 = vmatpush.bf16.msra.mxu0 %v794
    %863 = vmatpush.bf16.msra.mxu0 %v790
    %864 = vmatpush.bf16.msra.mxu0 %v786
    %865 = vmatpush.bf16.msra.mxu0 %v782
    %866 = vmatmul.bf16.gmra.mxu0 %v684
    %v867 = vpop.f32.mrf.mxu0
    %v868 = vadd.f32 0.0, %v867
    %v869 = vpop.f32.mrf.mxu0
    %870 = vdwg.mxu0
    %871 = vmatpush.bf16.msra.mxu0 %v811
    %872 = vmatpush.bf16.msra.mxu0 %v807
    %873 = vmatpush.bf16.msra.mxu0 %v803
    %874 = vmatpush.bf16.msra.mxu0 %v799
    %875 = vmatpush.bf16.msra.mxu0 %v795
    %876 = vmatpush.bf16.msra.mxu0 %v791
    %877 = vmatpush.bf16.msra.mxu0 %v787
    %878 = vmatpush.bf16.msra.mxu0 %v783
    %879 = vmatmul.bf16.gmra.mxu0 %v684
    %v880 = vpop.f32.mrf.mxu0
    %v881 = vadd.f32 0.0, %v880
    %v882 = vpop.f32.mrf.mxu0
    %883 = vdwg.mxu0
    %884 = vmatpush.bf16.msra.mxu0 %v812
    %885 = vmatpush.bf16.msra.mxu0 %v808
    %886 = vmatpush.bf16.msra.mxu0 %v804
    %887 = vmatpush.bf16.msra.mxu0 %v800
    %888 = vmatpush.bf16.msra.mxu0 %v796
    %889 = vmatpush.bf16.msra.mxu0 %v792
    %890 = vmatpush.bf16.msra.mxu0 %v788
    %891 = vmatpush.bf16.msra.mxu0 %v784
    %892 = vmatmul.bf16.gmra.mxu0 %v684
    %v893 = vpop.f32.mrf.mxu0
    %v894 = vadd.f32 0.0, %v893
    %v895 = vpop.f32.mrf.mxu0
    %896 = vdwg.mxu0
    %v897 = vadd.f32 %v532, %v855
    %v898 = vadd.f32 %v561, %v868
    %v899 = vadd.f32 %v590, %v881
    %v900 = vadd.f32 %v619, %v894
    %v901 = vxor.u32 %v897, 2147483648
    %v902 = vxor.u32 %v898, 2147483648
    %v903 = vxor.u32 %v899, 2147483648
    %v904 = vmul.f32 %v901, 1.442695
    %v905 = vpow.pop %v904
    %v906 = vmul.f32 %v902, 1.442695
    %v907 = vpow.pop %v906
    %v908 = vmul.f32 %v903, 1.442695
    %v909 = vpow.pop %v908
    %v910 = vadd.f32 %v905, 1.0
    %v911 = vadd.f32 %v907, 1.0
    %v912 = vadd.f32 %v909, 1.0
    %v913 = vrcp.pop %v910
    %v914 = vmul.f32 %v910, %v913
    %v915 = vsub.f32 1.0, %v914
    %v916 = vmul.f32 %v913, %v915
    %v917 = vadd.f32 %v913, %v916
    %vm918 = vweird.f32 %v910
    %vm919 = vweird.f32 %v913
    %vm920 = vmor %vm918, %vm919
    %v921 = vsel %vm920, %v913, %v917
    %v922 = vand.u32 2147483647, %v910
    %vm923 = vcmp.eq.f32.partialorder %v922, 8.507059e+37
    %v924 = vand.u32 %v910, 2147483648
    %v925 = vor.u32 1.1754944e-38, %v924
    %v926 = vsel %vm923, %v925, %v921
    %v927 = vmul.f32 1.0, %v926
    %v928 = vrcp.pop %v911
    %v929 = vmul.f32 %v911, %v928
    %v930 = vsub.f32 1.0, %v929
    %v931 = vmul.f32 %v928, %v930
    %v932 = vadd.f32 %v928, %v931
    %vm933 = vweird.f32 %v911
    %vm934 = vweird.f32 %v928
    %vm935 = vmor %vm933, %vm934
    %v936 = vsel %vm935, %v928, %v932
    %v937 = vand.u32 2147483647, %v911
    %vm938 = vcmp.eq.f32.partialorder %v937, 8.507059e+37
    %v939 = vand.u32 %v911, 2147483648
    %v940 = vor.u32 1.1754944e-38, %v939
    %v941 = vsel %vm938, %v940, %v936
    %v942 = vmul.f32 1.0, %v941
    %v943 = vrcp.pop %v912
    %v944 = vmul.f32 %v912, %v943
    %v945 = vsub.f32 1.0, %v944
    %v946 = vmul.f32 %v943, %v945
    %v947 = vadd.f32 %v943, %v946
    %vm948 = vweird.f32 %v912
    %vm949 = vweird.f32 %v943
    %vm950 = vmor %vm948, %vm949
    %v951 = vsel %vm950, %v943, %v947
    %v952 = vand.u32 2147483647, %v912
    %vm953 = vcmp.eq.f32.partialorder %v952, 8.507059e+37
    %v954 = vand.u32 %v912, 2147483648
    %v955 = vor.u32 1.1754944e-38, %v954
    %v956 = vsel %vm953, %v955, %v951
    %v957 = vmul.f32 1.0, %v956
    %v958 = vtanh.pop %v900
    %v959 = vmul.f32 %v942, 0.0
    %v960 = vmul.f32 %v927, %v958
    %v961 = vadd.f32 %v959, %v960
    %v962 = vtanh.pop %v961
    %v963 = vmul.f32 %v957, %v962
    %s964 = smul.u32 4, 32
    %s965 = smul.u32 %s964, 4
    %s966 = sshll.u32 %s965, 4
    %967 = dma.done %s96, %s966
    %v968 = vld [vmem:[#allocation4] sm:$0xff]
    %v969 = vld [vmem:[#allocation4 + $0x8] sm:$0xff]
    %v970 = vld [vmem:[#allocation4 + $0x10] sm:$0xff]
    %v971 = vld [vmem:[#allocation4 + $0x18] sm:$0xff]
    %v972 = vld [vmem:[#allocation4 + $0x20] sm:$0xff]
    %v973 = vld [vmem:[#allocation4 + $0x28] sm:$0xff]
    %v974 = vld [vmem:[#allocation4 + $0x30] sm:$0xff]
    %v975 = vld [vmem:[#allocation4 + $0x38] sm:$0xff]
    %v976 = vld [vmem:[#allocation4 + $0x40] sm:$0xff]
    %v977 = vld [vmem:[#allocation4 + $0x48] sm:$0xff]
    %v978 = vld [vmem:[#allocation4 + $0x50] sm:$0xff]
    %v979 = vld [vmem:[#allocation4 + $0x58] sm:$0xff]
    %v980 = vld [vmem:[#allocation4 + $0x60] sm:$0xff]
    %v981 = vld [vmem:[#allocation4 + $0x68] sm:$0xff]
    %v982 = vld [vmem:[#allocation4 + $0x70] sm:$0xff]
    %v983 = vld [vmem:[#allocation4 + $0x78] sm:$0xff]
    %v984 = vld [vmem:[#allocation4 + $0x80] sm:$0xff]
    %v985 = vld [vmem:[#allocation4 + $0x88] sm:$0xff]
    %v986 = vld [vmem:[#allocation4 + $0x90] sm:$0xff]
    %v987 = vld [vmem:[#allocation4 + $0x98] sm:$0xff]
    %v988 = vld [vmem:[#allocation4 + $0xa0] sm:$0xff]
    %v989 = vld [vmem:[#allocation4 + $0xa8] sm:$0xff]
    %v990 = vld [vmem:[#allocation4 + $0xb0] sm:$0xff]
    %v991 = vld [vmem:[#allocation4 + $0xb8] sm:$0xff]
    %v992 = vld [vmem:[#allocation4 + $0xc0] sm:$0xff]
    %v993 = vld [vmem:[#allocation4 + $0xc8] sm:$0xff]
    %v994 = vld [vmem:[#allocation4 + $0xd0] sm:$0xff]
    %v995 = vld [vmem:[#allocation4 + $0xd8] sm:$0xff]
    %v996 = vld [vmem:[#allocation4 + $0xe0] sm:$0xff]
    %v997 = vld [vmem:[#allocation4 + $0xe8] sm:$0xff]
    %v998 = vld [vmem:[#allocation4 + $0xf0] sm:$0xff]
    %v999 = vld [vmem:[#allocation4 + $0xf8] sm:$0xff]
    %v1000 = vld [vmem:[#allocation4 + $0x100] sm:$0xff]
    %v1001 = vld [vmem:[#allocation4 + $0x108] sm:$0xff]
    %v1002 = vld [vmem:[#allocation4 + $0x110] sm:$0xff]
    %v1003 = vld [vmem:[#allocation4 + $0x118] sm:$0xff]
    %v1004 = vld [vmem:[#allocation4 + $0x120] sm:$0xff]
    %v1005 = vld [vmem:[#allocation4 + $0x128] sm:$0xff]
    %v1006 = vld [vmem:[#allocation4 + $0x130] sm:$0xff]
    %v1007 = vld [vmem:[#allocation4 + $0x138] sm:$0xff]
    %v1008 = vld [vmem:[#allocation4 + $0x140] sm:$0xff]
    %v1009 = vld [vmem:[#allocation4 + $0x148] sm:$0xff]
    %v1010 = vld [vmem:[#allocation4 + $0x150] sm:$0xff]
    %v1011 = vld [vmem:[#allocation4 + $0x158] sm:$0xff]
    %v1012 = vld [vmem:[#allocation4 + $0x160] sm:$0xff]
    %v1013 = vld [vmem:[#allocation4 + $0x168] sm:$0xff]
    %v1014 = vld [vmem:[#allocation4 + $0x170] sm:$0xff]
    %v1015 = vld [vmem:[#allocation4 + $0x178] sm:$0xff]
    %v1016 = vld [vmem:[#allocation4 + $0x180] sm:$0xff]
    %v1017 = vld [vmem:[#allocation4 + $0x188] sm:$0xff]
    %v1018 = vld [vmem:[#allocation4 + $0x190] sm:$0xff]
    %v1019 = vld [vmem:[#allocation4 + $0x198] sm:$0xff]
    %v1020 = vld [vmem:[#allocation4 + $0x1a0] sm:$0xff]
    %v1021 = vld [vmem:[#allocation4 + $0x1a8] sm:$0xff]
    %v1022 = vld [vmem:[#allocation4 + $0x1b0] sm:$0xff]
    %v1023 = vld [vmem:[#allocation4 + $0x1b8] sm:$0xff]
    %v1024 = vld [vmem:[#allocation4 + $0x1c0] sm:$0xff]
    %v1025 = vld [vmem:[#allocation4 + $0x1c8] sm:$0xff]
    %v1026 = vld [vmem:[#allocation4 + $0x1d0] sm:$0xff]
    %v1027 = vld [vmem:[#allocation4 + $0x1d8] sm:$0xff]
    %v1028 = vld [vmem:[#allocation4 + $0x1e0] sm:$0xff]
    %v1029 = vld [vmem:[#allocation4 + $0x1e8] sm:$0xff]
    %v1030 = vld [vmem:[#allocation4 + $0x1f0] sm:$0xff]
    %v1031 = vld [vmem:[#allocation4 + $0x1f8] sm:$0xff]
    %v1032 = vpack.c.bf16 %v963, %v963
    %v1033 = vpack.c.bf16 0.0, 0.0
    %v1098 = vunpack.c.l.b16 %v968
    %v1099 = vunpack.c.h.b16 %v968
    %v1100 = vunpack.c.l.b16 %v969
    %v1101 = vunpack.c.h.b16 %v969
    %v1102 = vunpack.c.l.b16 %v970
    %v1103 = vunpack.c.h.b16 %v970
    %v1104 = vunpack.c.l.b16 %v971
    %v1105 = vunpack.c.h.b16 %v971
    %v1106 = vunpack.c.l.b16 %v972
    %v1107 = vunpack.c.h.b16 %v972
    %v1108 = vunpack.c.l.b16 %v973
    %v1109 = vunpack.c.h.b16 %v973
    %v1110 = vunpack.c.l.b16 %v974
    %v1111 = vunpack.c.h.b16 %v974
    %v1112 = vunpack.c.l.b16 %v975
    %v1113 = vunpack.c.h.b16 %v975
    %v1114 = vunpack.c.l.b16 %v976
    %v1115 = vunpack.c.h.b16 %v976
    %v1116 = vunpack.c.l.b16 %v977
    %v1117 = vunpack.c.h.b16 %v977
    %v1118 = vunpack.c.l.b16 %v978
    %v1119 = vunpack.c.h.b16 %v978
    %v1120 = vunpack.c.l.b16 %v979
    %v1121 = vunpack.c.h.b16 %v979
    %v1122 = vunpack.c.l.b16 %v980
    %v1123 = vunpack.c.h.b16 %v980
    %v1124 = vunpack.c.l.b16 %v981
    %v1125 = vunpack.c.h.b16 %v981
    %v1126 = vunpack.c.l.b16 %v982
    %v1127 = vunpack.c.h.b16 %v982
    %v1128 = vunpack.c.l.b16 %v983
    %v1129 = vunpack.c.h.b16 %v983
    %v1130 = vunpack.c.l.b16 %v984
    %v1131 = vunpack.c.h.b16 %v984
    %v1132 = vunpack.c.l.b16 %v985
    %v1133 = vunpack.c.h.b16 %v985
    %v1134 = vunpack.c.l.b16 %v986
    %v1135 = vunpack.c.h.b16 %v986
    %v1136 = vunpack.c.l.b16 %v987
    %v1137 = vunpack.c.h.b16 %v987
    %v1138 = vunpack.c.l.b16 %v988
    %v1139 = vunpack.c.h.b16 %v988
    %v1140 = vunpack.c.l.b16 %v989
    %v1141 = vunpack.c.h.b16 %v989
    %v1142 = vunpack.c.l.b16 %v990
    %v1143 = vunpack.c.h.b16 %v990
    %v1144 = vunpack.c.l.b16 %v991
    %v1145 = vunpack.c.h.b16 %v991
    %v1146 = vunpack.c.l.b16 %v992
    %v1147 = vunpack.c.h.b16 %v992
    %v1148 = vunpack.c.l.b16 %v993
    %v1149 = vunpack.c.h.b16 %v993
    %v1150 = vunpack.c.l.b16 %v994
    %v1151 = vunpack.c.h.b16 %v994
    %v1152 = vunpack.c.l.b16 %v995
    %v1153 = vunpack.c.h.b16 %v995
    %v1154 = vunpack.c.l.b16 %v996
    %v1155 = vunpack.c.h.b16 %v996
    %v1156 = vunpack.c.l.b16 %v997
    %v1157 = vunpack.c.h.b16 %v997
    %v1158 = vunpack.c.l.b16 %v998
    %v1159 = vunpack.c.h.b16 %v998
    %v1160 = vunpack.c.l.b16 %v999
    %v1161 = vunpack.c.h.b16 %v999
    %v1162 = vunpack.c.l.b16 %v1000
    %v1163 = vunpack.c.h.b16 %v1000
    %v1164 = vunpack.c.l.b16 %v1001
    %v1165 = vunpack.c.h.b16 %v1001
    %v1166 = vunpack.c.l.b16 %v1002
    %v1167 = vunpack.c.h.b16 %v1002
    %v1168 = vunpack.c.l.b16 %v1003
    %v1169 = vunpack.c.h.b16 %v1003
    %v1170 = vunpack.c.l.b16 %v1004
    %v1171 = vunpack.c.h.b16 %v1004
    %v1172 = vunpack.c.l.b16 %v1005
    %v1173 = vunpack.c.h.b16 %v1005
    %v1174 = vunpack.c.l.b16 %v1006
    %v1175 = vunpack.c.h.b16 %v1006
    %v1176 = vunpack.c.l.b16 %v1007
    %v1177 = vunpack.c.h.b16 %v1007
    %v1178 = vunpack.c.l.b16 %v1008
    %v1179 = vunpack.c.h.b16 %v1008
    %v1180 = vunpack.c.l.b16 %v1009
    %v1181 = vunpack.c.h.b16 %v1009
    %v1182 = vunpack.c.l.b16 %v1010
    %v1183 = vunpack.c.h.b16 %v1010
    %v1184 = vunpack.c.l.b16 %v1011
    %v1185 = vunpack.c.h.b16 %v1011
    %v1186 = vunpack.c.l.b16 %v1012
    %v1187 = vunpack.c.h.b16 %v1012
    %v1188 = vunpack.c.l.b16 %v1013
    %v1189 = vunpack.c.h.b16 %v1013
    %v1190 = vunpack.c.l.b16 %v1014
    %v1191 = vunpack.c.h.b16 %v1014
    %v1192 = vunpack.c.l.b16 %v1015
    %v1193 = vunpack.c.h.b16 %v1015
    %v1194 = vunpack.c.l.b16 %v1016
    %v1195 = vunpack.c.h.b16 %v1016
    %v1196 = vunpack.c.l.b16 %v1017
    %v1197 = vunpack.c.h.b16 %v1017
    %v1198 = vunpack.c.l.b16 %v1018
    %v1199 = vunpack.c.h.b16 %v1018
    %v1200 = vunpack.c.l.b16 %v1019
    %v1201 = vunpack.c.h.b16 %v1019
    %v1202 = vunpack.c.l.b16 %v1020
    %v1203 = vunpack.c.h.b16 %v1020
    %v1204 = vunpack.c.l.b16 %v1021
    %v1205 = vunpack.c.h.b16 %v1021
    %v1206 = vunpack.c.l.b16 %v1022
    %v1207 = vunpack.c.h.b16 %v1022
    %v1208 = vunpack.c.l.b16 %v1023
    %v1209 = vunpack.c.h.b16 %v1023
    %v1210 = vunpack.c.l.b16 %v1024
    %v1211 = vunpack.c.h.b16 %v1024
    %v1212 = vunpack.c.l.b16 %v1025
    %v1213 = vunpack.c.h.b16 %v1025
    %v1214 = vunpack.c.l.b16 %v1026
    %v1215 = vunpack.c.h.b16 %v1026
    %v1216 = vunpack.c.l.b16 %v1027
    %v1217 = vunpack.c.h.b16 %v1027
    %v1218 = vunpack.c.l.b16 %v1028
    %v1219 = vunpack.c.h.b16 %v1028
    %v1220 = vunpack.c.l.b16 %v1029
    %v1221 = vunpack.c.h.b16 %v1029
    %v1222 = vunpack.c.l.b16 %v1030
    %v1223 = vunpack.c.h.b16 %v1030
    %v1224 = vunpack.c.l.b16 %v1031
    %v1225 = vunpack.c.h.b16 %v1031
    %v1226 = vpack.c.b16 %v1102, %v1098
    %v1227 = vpack.c.b16 %v1103, %v1099
    %v1228 = vpack.c.b16 %v1104, %v1100
    %v1229 = vpack.c.b16 %v1105, %v1101
    %v1230 = vpack.c.b16 %v1110, %v1106
    %v1231 = vpack.c.b16 %v1111, %v1107
    %v1232 = vpack.c.b16 %v1112, %v1108
    %v1233 = vpack.c.b16 %v1113, %v1109
    %v1234 = vpack.c.b16 %v1118, %v1114
    %v1235 = vpack.c.b16 %v1119, %v1115
    %v1236 = vpack.c.b16 %v1120, %v1116
    %v1237 = vpack.c.b16 %v1121, %v1117
    %v1238 = vpack.c.b16 %v1126, %v1122
    %v1239 = vpack.c.b16 %v1127, %v1123
    %v1240 = vpack.c.b16 %v1128, %v1124
    %v1241 = vpack.c.b16 %v1129, %v1125
    %v1242 = vpack.c.b16 %v1134, %v1130
    %v1243 = vpack.c.b16 %v1135, %v1131
    %v1244 = vpack.c.b16 %v1136, %v1132
    %v1245 = vpack.c.b16 %v1137, %v1133
    %v1246 = vpack.c.b16 %v1142, %v1138
    %v1247 = vpack.c.b16 %v1143, %v1139
    %v1248 = vpack.c.b16 %v1144, %v1140
    %v1249 = vpack.c.b16 %v1145, %v1141
    %v1250 = vpack.c.b16 %v1150, %v1146
    %v1251 = vpack.c.b16 %v1151, %v1147
    %v1252 = vpack.c.b16 %v1152, %v1148
    %v1253 = vpack.c.b16 %v1153, %v1149
    %v1254 = vpack.c.b16 %v1158, %v1154
    %v1255 = vpack.c.b16 %v1159, %v1155
    %v1256 = vpack.c.b16 %v1160, %v1156
    %v1257 = vpack.c.b16 %v1161, %v1157
    %v1258 = vpack.c.b16 %v1166, %v1162
    %v1259 = vpack.c.b16 %v1167, %v1163
    %v1260 = vpack.c.b16 %v1168, %v1164
    %v1261 = vpack.c.b16 %v1169, %v1165
    %v1262 = vpack.c.b16 %v1174, %v1170
    %v1263 = vpack.c.b16 %v1175, %v1171
    %v1264 = vpack.c.b16 %v1176, %v1172
    %v1265 = vpack.c.b16 %v1177, %v1173
    %v1266 = vpack.c.b16 %v1182, %v1178
    %v1267 = vpack.c.b16 %v1183, %v1179
    %v1268 = vpack.c.b16 %v1184, %v1180
    %v1269 = vpack.c.b16 %v1185, %v1181
    %v1270 = vpack.c.b16 %v1190, %v1186
    %v1271 = vpack.c.b16 %v1191, %v1187
    %v1272 = vpack.c.b16 %v1192, %v1188
    %v1273 = vpack.c.b16 %v1193, %v1189
    %v1274 = vpack.c.b16 %v1198, %v1194
    %v1275 = vpack.c.b16 %v1199, %v1195
    %v1276 = vpack.c.b16 %v1200, %v1196
    %v1277 = vpack.c.b16 %v1201, %v1197
    %v1278 = vpack.c.b16 %v1206, %v1202
    %v1279 = vpack.c.b16 %v1207, %v1203
    %v1280 = vpack.c.b16 %v1208, %v1204
    %v1281 = vpack.c.b16 %v1209, %v1205
    %v1282 = vpack.c.b16 %v1214, %v1210
    %v1283 = vpack.c.b16 %v1215, %v1211
    %v1284 = vpack.c.b16 %v1216, %v1212
    %v1285 = vpack.c.b16 %v1217, %v1213
    %v1286 = vpack.c.b16 %v1222, %v1218
    %v1287 = vpack.c.b16 %v1223, %v1219
    %v1288 = vpack.c.b16 %v1224, %v1220
    %v1289 = vpack.c.b16 %v1225, %v1221
    %1354 = vmatpush.bf16.msra.mxu0 %v1254
    %1355 = vmatpush.bf16.msra.mxu0 %v1250
    %1356 = vmatpush.bf16.msra.mxu0 %v1246
    %1357 = vmatpush.bf16.msra.mxu0 %v1242
    %1358 = vmatpush.bf16.msra.mxu0 %v1238
    %1359 = vmatpush.bf16.msra.mxu0 %v1234
    %1360 = vmatpush.bf16.msra.mxu0 %v1230
    %1361 = vmatpush.bf16.msra.mxu0 %v1226
    %1362 = vmatmul.bf16.gmra.mxu0 %v1032
    %v1363 = vpop.f32.mrf.mxu0
    %v1364 = vadd.f32 %v640, %v1363
    %v1365 = vpop.f32.mrf.mxu0
    %1366 = vdwg.mxu0
    %1367 = vmatpush.bf16.msra.mxu0 %v1286
    %1368 = vmatpush.bf16.msra.mxu0 %v1282
    %1369 = vmatpush.bf16.msra.mxu0 %v1278
    %1370 = vmatpush.bf16.msra.mxu0 %v1274
    %1371 = vmatpush.bf16.msra.mxu0 %v1270
    %1372 = vmatpush.bf16.msra.mxu0 %v1266
    %1373 = vmatpush.bf16.msra.mxu0 %v1262
    %1374 = vmatpush.bf16.msra.mxu0 %v1258
    %1375 = vmatmul.bf16.gmra.mxu0 %v1033
    %v1376 = vpop.f32.mrf.mxu0
    %v1377 = vadd.f32 %v1364, %v1376
    %v1378 = vpop.f32.mrf.mxu0
    %1379 = vdwg.mxu0
    %1380 = vmatpush.bf16.msra.mxu0 %v1255
    %1381 = vmatpush.bf16.msra.mxu0 %v1251
    %1382 = vmatpush.bf16.msra.mxu0 %v1247
    %1383 = vmatpush.bf16.msra.mxu0 %v1243
    %1384 = vmatpush.bf16.msra.mxu0 %v1239
    %1385 = vmatpush.bf16.msra.mxu0 %v1235
    %1386 = vmatpush.bf16.msra.mxu0 %v1231
    %1387 = vmatpush.bf16.msra.mxu0 %v1227
    %1388 = vmatmul.bf16.gmra.mxu0 %v1032
    %v1389 = vpop.f32.mrf.mxu0
    %v1390 = vadd.f32 %v641, %v1389
    %v1391 = vpop.f32.mrf.mxu0
    %1392 = vdwg.mxu0
    %1393 = vmatpush.bf16.msra.mxu0 %v1287
    %1394 = vmatpush.bf16.msra.mxu0 %v1283
    %1395 = vmatpush.bf16.msra.mxu0 %v1279
    %1396 = vmatpush.bf16.msra.mxu0 %v1275
    %1397 = vmatpush.bf16.msra.mxu0 %v1271
    %1398 = vmatpush.bf16.msra.mxu0 %v1267
    %1399 = vmatpush.bf16.msra.mxu0 %v1263
    %1400 = vmatpush.bf16.msra.mxu0 %v1259
    %1401 = vmatmul.bf16.gmra.mxu0 %v1033
    %v1402 = vpop.f32.mrf.mxu0
    %v1403 = vadd.f32 %v1390, %v1402
    %v1404 = vpop.f32.mrf.mxu0
    %1405 = vdwg.mxu0
    %1406 = vmatpush.bf16.msra.mxu0 %v1256
    %1407 = vmatpush.bf16.msra.mxu0 %v1252
    %1408 = vmatpush.bf16.msra.mxu0 %v1248
    %1409 = vmatpush.bf16.msra.mxu0 %v1244
    %1410 = vmatpush.bf16.msra.mxu0 %v1240
    %1411 = vmatpush.bf16.msra.mxu0 %v1236
    %1412 = vmatpush.bf16.msra.mxu0 %v1232
    %1413 = vmatpush.bf16.msra.mxu0 %v1228
    %1414 = vmatmul.bf16.gmra.mxu0 %v1032
    %v1415 = vpop.f32.mrf.mxu0
    %v1416 = vadd.f32 %v642, %v1415
    %v1417 = vpop.f32.mrf.mxu0
    %1418 = vdwg.mxu0
    %1419 = vmatpush.bf16.msra.mxu0 %v1288
    %1420 = vmatpush.bf16.msra.mxu0 %v1284
    %1421 = vmatpush.bf16.msra.mxu0 %v1280
    %1422 = vmatpush.bf16.msra.mxu0 %v1276
    %1423 = vmatpush.bf16.msra.mxu0 %v1272
    %1424 = vmatpush.bf16.msra.mxu0 %v1268
    %1425 = vmatpush.bf16.msra.mxu0 %v1264
    %1426 = vmatpush.bf16.msra.mxu0 %v1260
    %1427 = vmatmul.bf16.gmra.mxu0 %v1033
    %v1428 = vpop.f32.mrf.mxu0
    %v1429 = vadd.f32 %v1416, %v1428
    %v1430 = vpop.f32.mrf.mxu0
    %1431 = vdwg.mxu0
    %1432 = vmatpush.bf16.msra.mxu0 %v1257
    %1433 = vmatpush.bf16.msra.mxu0 %v1253
    %1434 = vmatpush.bf16.msra.mxu0 %v1249
    %1435 = vmatpush.bf16.msra.mxu0 %v1245
    %1436 = vmatpush.bf16.msra.mxu0 %v1241
    %1437 = vmatpush.bf16.msra.mxu0 %v1237
    %1438 = vmatpush.bf16.msra.mxu0 %v1233
    %1439 = vmatpush.bf16.msra.mxu0 %v1229
    %1440 = vmatmul.bf16.gmra.mxu0 %v1032
    %v1441 = vpop.f32.mrf.mxu0
    %v1442 = vadd.f32 %v643, %v1441
    %v1443 = vpop.f32.mrf.mxu0
    %1444 = vdwg.mxu0
    %1445 = vmatpush.bf16.msra.mxu0 %v1289
    %1446 = vmatpush.bf16.msra.mxu0 %v1285
    %1447 = vmatpush.bf16.msra.mxu0 %v1281
    %1448 = vmatpush.bf16.msra.mxu0 %v1277
    %1449 = vmatpush.bf16.msra.mxu0 %v1273
    %1450 = vmatpush.bf16.msra.mxu0 %v1269
    %1451 = vmatpush.bf16.msra.mxu0 %v1265
    %1452 = vmatpush.bf16.msra.mxu0 %v1261
    %1453 = vmatmul.bf16.gmra.mxu0 %v1033
    %v1454 = vpop.f32.mrf.mxu0
    %v1455 = vadd.f32 %v1442, %v1454
    %v1456 = vpop.f32.mrf.mxu0
    %1457 = vdwg.mxu0
    %v1458 = vxor.u32 %v1377, 2147483648
    %v1459 = vxor.u32 %v1403, 2147483648
    %v1460 = vxor.u32 %v1429, 2147483648
    %v1461 = vmul.f32 %v1458, 1.442695
    %v1462 = vpow.pop %v1461
    %v1463 = vmul.f32 %v1459, 1.442695
    %v1464 = vpow.pop %v1463
    %v1465 = vmul.f32 %v1460, 1.442695
    %v1466 = vpow.pop %v1465
    %v1467 = vadd.f32 %v1462, 1.0
    %v1468 = vadd.f32 %v1464, 1.0
    %v1469 = vadd.f32 %v1466, 1.0
    %v1470 = vrcp.pop %v1467
    %v1471 = vmul.f32 %v1467, %v1470
    %v1472 = vsub.f32 1.0, %v1471
    %v1473 = vmul.f32 %v1470, %v1472
    %v1474 = vadd.f32 %v1470, %v1473
    %vm1475 = vweird.f32 %v1467
    %vm1476 = vweird.f32 %v1470
    %vm1477 = vmor %vm1475, %vm1476
    %v1478 = vsel %vm1477, %v1470, %v1474
    %v1479 = vand.u32 2147483647, %v1467
    %vm1480 = vcmp.eq.f32.partialorder %v1479, 8.507059e+37
    %v1481 = vand.u32 %v1467, 2147483648
    %v1482 = vor.u32 1.1754944e-38, %v1481
    %v1483 = vsel %vm1480, %v1482, %v1478
    %v1484 = vmul.f32 1.0, %v1483
    %v1485 = vrcp.pop %v1468
    %v1486 = vmul.f32 %v1468, %v1485
    %v1487 = vsub.f32 1.0, %v1486
    %v1488 = vmul.f32 %v1485, %v1487
    %v1489 = vadd.f32 %v1485, %v1488
    %vm1490 = vweird.f32 %v1468
    %vm1491 = vweird.f32 %v1485
    %vm1492 = vmor %vm1490, %vm1491
    %v1493 = vsel %vm1492, %v1485, %v1489
    %v1494 = vand.u32 2147483647, %v1468
    %vm1495 = vcmp.eq.f32.partialorder %v1494, 8.507059e+37
    %v1496 = vand.u32 %v1468, 2147483648
    %v1497 = vor.u32 1.1754944e-38, %v1496
    %v1498 = vsel %vm1495, %v1497, %v1493
    %v1499 = vmul.f32 1.0, %v1498
    %v1500 = vrcp.pop %v1469
    %v1501 = vmul.f32 %v1469, %v1500
    %v1502 = vsub.f32 1.0, %v1501
    %v1503 = vmul.f32 %v1500, %v1502
    %v1504 = vadd.f32 %v1500, %v1503
    %vm1505 = vweird.f32 %v1469
    %vm1506 = vweird.f32 %v1500
    %vm1507 = vmor %vm1505, %vm1506
    %v1508 = vsel %vm1507, %v1500, %v1504
    %v1509 = vand.u32 2147483647, %v1469
    %vm1510 = vcmp.eq.f32.partialorder %v1509, 8.507059e+37
    %v1511 = vand.u32 %v1469, 2147483648
    %v1512 = vor.u32 1.1754944e-38, %v1511
    %v1513 = vsel %vm1510, %v1512, %v1508
    %v1514 = vmul.f32 1.0, %v1513
    %v1515 = vtanh.pop %v1455
    %v1516 = vmul.f32 %v1499, 0.0
    %v1517 = vmul.f32 %v1484, %v1515
    %v1518 = vadd.f32 %v1516, %v1517
    %v1519 = vtanh.pop %v1518
    %v1520 = vmul.f32 %v1514, %v1519
    %1521 = vst [vmem:[#allocation2] sm:$0xff] %v1520
    %1522 = vmatpush.bf16.msra.mxu0 %v809
    %1523 = vmatpush.bf16.msra.mxu0 %v805
    %1524 = vmatpush.bf16.msra.mxu0 %v801
    %1525 = vmatpush.bf16.msra.mxu0 %v797
    %1526 = vmatpush.bf16.msra.mxu0 %v793
    %1527 = vmatpush.bf16.msra.mxu0 %v789
    %1528 = vmatpush.bf16.msra.mxu0 %v785
    %1529 = vmatpush.bf16.msra.mxu0 %v781
    %1530 = vmatmul.bf16.gmra.mxu0 %v1032
    %v1531 = vpop.f32.mrf.mxu0
    %v1532 = vadd.f32 0.0, %v1531
    %v1533 = vpop.f32.mrf.mxu0
    %1534 = vdwg.mxu0
    %1535 = vmatpush.bf16.msra.mxu0 %v810
    %1536 = vmatpush.bf16.msra.mxu0 %v806
    %1537 = vmatpush.bf16.msra.mxu0 %v802
    %1538 = vmatpush.bf16.msra.mxu0 %v798
    %1539 = vmatpush.bf16.msra.mxu0 %v794
    %1540 = vmatpush.bf16.msra.mxu0 %v790
    %1541 = vmatpush.bf16.msra.mxu0 %v786
    %1542 = vmatpush.bf16.msra.mxu0 %v782
    %1543 = vmatmul.bf16.gmra.mxu0 %v1032
    %v1544 = vpop.f32.mrf.mxu0
    %v1545 = vadd.f32 0.0, %v1544
    %v1546 = vpop.f32.mrf.mxu0
    %1547 = vdwg.mxu0
    %1548 = vmatpush.bf16.msra.mxu0 %v811
    %1549 = vmatpush.bf16.msra.mxu0 %v807
    %1550 = vmatpush.bf16.msra.mxu0 %v803
    %1551 = vmatpush.bf16.msra.mxu0 %v799
    %1552 = vmatpush.bf16.msra.mxu0 %v795
    %1553 = vmatpush.bf16.msra.mxu0 %v791
    %1554 = vmatpush.bf16.msra.mxu0 %v787
    %1555 = vmatpush.bf16.msra.mxu0 %v783
    %1556 = vmatmul.bf16.gmra.mxu0 %v1032
    %v1557 = vpop.f32.mrf.mxu0
    %v1558 = vadd.f32 0.0, %v1557
    %v1559 = vpop.f32.mrf.mxu0
    %1560 = vdwg.mxu0
    %1561 = vmatpush.bf16.msra.mxu0 %v812
    %1562 = vmatpush.bf16.msra.mxu0 %v808
    %1563 = vmatpush.bf16.msra.mxu0 %v804
    %1564 = vmatpush.bf16.msra.mxu0 %v800
    %1565 = vmatpush.bf16.msra.mxu0 %v796
    %1566 = vmatpush.bf16.msra.mxu0 %v792
    %1567 = vmatpush.bf16.msra.mxu0 %v788
    %1568 = vmatpush.bf16.msra.mxu0 %v784
    %1569 = vmatmul.bf16.gmra.mxu0 %v1032
    %v1570 = vpop.f32.mrf.mxu0
    %v1571 = vadd.f32 0.0, %v1570
    %v1572 = vpop.f32.mrf.mxu0
    %1573 = vdwg.mxu0
    %v1574 = vadd.f32 %v534, %v1532
    %v1575 = vadd.f32 %v563, %v1545
    %v1576 = vadd.f32 %v592, %v1558
    %v1577 = vadd.f32 %v621, %v1571
    %v1578 = vxor.u32 %v1574, 2147483648
    %v1579 = vxor.u32 %v1575, 2147483648
    %v1580 = vxor.u32 %v1576, 2147483648
    %v1581 = vmul.f32 %v1578, 1.442695
    %v1582 = vpow.pop %v1581
    %v1583 = vmul.f32 %v1579, 1.442695
    %v1584 = vpow.pop %v1583
    %v1585 = vmul.f32 %v1580, 1.442695
    %v1586 = vpow.pop %v1585
    %v1587 = vadd.f32 %v1582, 1.0
    %v1588 = vadd.f32 %v1584, 1.0
    %v1589 = vadd.f32 %v1586, 1.0
    %v1590 = vrcp.pop %v1587
    %v1591 = vmul.f32 %v1587, %v1590
    %v1592 = vsub.f32 1.0, %v1591
    %v1593 = vmul.f32 %v1590, %v1592
    %v1594 = vadd.f32 %v1590, %v1593
    %vm1595 = vweird.f32 %v1587
    %vm1596 = vweird.f32 %v1590
    %vm1597 = vmor %vm1595, %vm1596
    %v1598 = vsel %vm1597, %v1590, %v1594
    %v1599 = vand.u32 2147483647, %v1587
    %vm1600 = vcmp.eq.f32.partialorder %v1599, 8.507059e+37
    %v1601 = vand.u32 %v1587, 2147483648
    %v1602 = vor.u32 1.1754944e-38, %v1601
    %v1603 = vsel %vm1600, %v1602, %v1598
    %v1604 = vmul.f32 1.0, %v1603
    %v1605 = vrcp.pop %v1588
    %v1606 = vmul.f32 %v1588, %v1605
    %v1607 = vsub.f32 1.0, %v1606
    %v1608 = vmul.f32 %v1605, %v1607
    %v1609 = vadd.f32 %v1605, %v1608
    %vm1610 = vweird.f32 %v1588
    %vm1611 = vweird.f32 %v1605
    %vm1612 = vmor %vm1610, %vm1611
    %v1613 = vsel %vm1612, %v1605, %v1609
    %v1614 = vand.u32 2147483647, %v1588
    %vm1615 = vcmp.eq.f32.partialorder %v1614, 8.507059e+37
    %v1616 = vand.u32 %v1588, 2147483648
    %v1617 = vor.u32 1.1754944e-38, %v1616
    %v1618 = vsel %vm1615, %v1617, %v1613
    %v1619 = vmul.f32 1.0, %v1618
    %v1620 = vrcp.pop %v1589
    %v1621 = vmul.f32 %v1589, %v1620
    %v1622 = vsub.f32 1.0, %v1621
    %v1623 = vmul.f32 %v1620, %v1622
    %v1624 = vadd.f32 %v1620, %v1623
    %vm1625 = vweird.f32 %v1589
    %vm1626 = vweird.f32 %v1620
    %vm1627 = vmor %vm1625, %vm1626
    %v1628 = vsel %vm1627, %v1620, %v1624
    %v1629 = vand.u32 2147483647, %v1589
    %vm1630 = vcmp.eq.f32.partialorder %v1629, 8.507059e+37
    %v1631 = vand.u32 %v1589, 2147483648
    %v1632 = vor.u32 1.1754944e-38, %v1631
    %v1633 = vsel %vm1630, %v1632, %v1628
    %v1634 = vmul.f32 1.0, %v1633
    %v1635 = vtanh.pop %v1577
    %v1636 = vmul.f32 %v1619, %v961
    %v1637 = vmul.f32 %v1604, %v1635
    %v1638 = vadd.f32 %v1636, %v1637
    %v1639 = vtanh.pop %v1638
    %v1640 = vmul.f32 %v1634, %v1639
    %v1641 = vpack.c.bf16 %v1640, %v1640
    %v1642 = vpack.c.bf16 %v1520, %v1520
    %1643 = vmatpush.bf16.msra.mxu0 %v1254
    %1644 = vmatpush.bf16.msra.mxu0 %v1250
    %1645 = vmatpush.bf16.msra.mxu0 %v1246
    %1646 = vmatpush.bf16.msra.mxu0 %v1242
    %1647 = vmatpush.bf16.msra.mxu0 %v1238
    %1648 = vmatpush.bf16.msra.mxu0 %v1234
    %1649 = vmatpush.bf16.msra.mxu0 %v1230
    %1650 = vmatpush.bf16.msra.mxu0 %v1226
    %1651 = vmatmul.bf16.gmra.mxu0 %v1641
    %v1652 = vpop.f32.mrf.mxu0
    %v1653 = vadd.f32 %v640, %v1652
    %v1654 = vpop.f32.mrf.mxu0
    %1655 = vdwg.mxu0
    %1656 = vmatpush.bf16.msra.mxu0 %v1286
    %1657 = vmatpush.bf16.msra.mxu0 %v1282
    %1658 = vmatpush.bf16.msra.mxu0 %v1278
    %1659 = vmatpush.bf16.msra.mxu0 %v1274
    %1660 = vmatpush.bf16.msra.mxu0 %v1270
    %1661 = vmatpush.bf16.msra.mxu0 %v1266
    %1662 = vmatpush.bf16.msra.mxu0 %v1262
    %1663 = vmatpush.bf16.msra.mxu0 %v1258
    %1664 = vmatmul.bf16.gmra.mxu0 %v1642
    %v1665 = vpop.f32.mrf.mxu0
    %v1666 = vadd.f32 %v1653, %v1665
    %v1667 = vpop.f32.mrf.mxu0
    %1668 = vdwg.mxu0
    %1669 = vmatpush.bf16.msra.mxu0 %v1255
    %1670 = vmatpush.bf16.msra.mxu0 %v1251
    %1671 = vmatpush.bf16.msra.mxu0 %v1247
    %1672 = vmatpush.bf16.msra.mxu0 %v1243
    %1673 = vmatpush.bf16.msra.mxu0 %v1239
    %1674 = vmatpush.bf16.msra.mxu0 %v1235
    %1675 = vmatpush.bf16.msra.mxu0 %v1231
    %1676 = vmatpush.bf16.msra.mxu0 %v1227
    %1677 = vmatmul.bf16.gmra.mxu0 %v1641
    %v1678 = vpop.f32.mrf.mxu0
    %v1679 = vadd.f32 %v641, %v1678
    %v1680 = vpop.f32.mrf.mxu0
    %1681 = vdwg.mxu0
    %1682 = vmatpush.bf16.msra.mxu0 %v1287
    %1683 = vmatpush.bf16.msra.mxu0 %v1283
    %1684 = vmatpush.bf16.msra.mxu0 %v1279
    %1685 = vmatpush.bf16.msra.mxu0 %v1275
    %1686 = vmatpush.bf16.msra.mxu0 %v1271
    %1687 = vmatpush.bf16.msra.mxu0 %v1267
    %1688 = vmatpush.bf16.msra.mxu0 %v1263
    %1689 = vmatpush.bf16.msra.mxu0 %v1259
    %1690 = vmatmul.bf16.gmra.mxu0 %v1642
    %v1691 = vpop.f32.mrf.mxu0
    %v1692 = vadd.f32 %v1679, %v1691
    %v1693 = vpop.f32.mrf.mxu0
    %1694 = vdwg.mxu0
    %1695 = vmatpush.bf16.msra.mxu0 %v1256
    %1696 = vmatpush.bf16.msra.mxu0 %v1252
    %1697 = vmatpush.bf16.msra.mxu0 %v1248
    %1698 = vmatpush.bf16.msra.mxu0 %v1244
    %1699 = vmatpush.bf16.msra.mxu0 %v1240
    %1700 = vmatpush.bf16.msra.mxu0 %v1236
    %1701 = vmatpush.bf16.msra.mxu0 %v1232
    %1702 = vmatpush.bf16.msra.mxu0 %v1228
    %1703 = vmatmul.bf16.gmra.mxu0 %v1641
    %v1704 = vpop.f32.mrf.mxu0
    %v1705 = vadd.f32 %v642, %v1704
    %v1706 = vpop.f32.mrf.mxu0
    %1707 = vdwg.mxu0
    %1708 = vmatpush.bf16.msra.mxu0 %v1288
    %1709 = vmatpush.bf16.msra.mxu0 %v1284
    %1710 = vmatpush.bf16.msra.mxu0 %v1280
    %1711 = vmatpush.bf16.msra.mxu0 %v1276
    %1712 = vmatpush.bf16.msra.mxu0 %v1272
    %1713 = vmatpush.bf16.msra.mxu0 %v1268
    %1714 = vmatpush.bf16.msra.mxu0 %v1264
    %1715 = vmatpush.bf16.msra.mxu0 %v1260
    %1716 = vmatmul.bf16.gmra.mxu0 %v1642
    %v1717 = vpop.f32.mrf.mxu0
    %v1718 = vadd.f32 %v1705, %v1717
    %v1719 = vpop.f32.mrf.mxu0
    %1720 = vdwg.mxu0
    %1721 = vmatpush.bf16.msra.mxu0 %v1257
    %1722 = vmatpush.bf16.msra.mxu0 %v1253
    %1723 = vmatpush.bf16.msra.mxu0 %v1249
    %1724 = vmatpush.bf16.msra.mxu0 %v1245
    %1725 = vmatpush.bf16.msra.mxu0 %v1241
    %1726 = vmatpush.bf16.msra.mxu0 %v1237
    %1727 = vmatpush.bf16.msra.mxu0 %v1233
    %1728 = vmatpush.bf16.msra.mxu0 %v1229
    %1729 = vmatmul.bf16.gmra.mxu0 %v1641
    %v1730 = vpop.f32.mrf.mxu0
    %v1731 = vadd.f32 %v643, %v1730
    %v1732 = vpop.f32.mrf.mxu0
    %1733 = vdwg.mxu0
    %1734 = vmatpush.bf16.msra.mxu0 %v1289
    %1735 = vmatpush.bf16.msra.mxu0 %v1285
    %1736 = vmatpush.bf16.msra.mxu0 %v1281
    %1737 = vmatpush.bf16.msra.mxu0 %v1277
    %1738 = vmatpush.bf16.msra.mxu0 %v1273
    %1739 = vmatpush.bf16.msra.mxu0 %v1269
    %1740 = vmatpush.bf16.msra.mxu0 %v1265
    %1741 = vmatpush.bf16.msra.mxu0 %v1261
    %1742 = vmatmul.bf16.gmra.mxu0 %v1642
    %v1743 = vpop.f32.mrf.mxu0
    %v1744 = vadd.f32 %v1731, %v1743
    %v1745 = vpop.f32.mrf.mxu0
    %1746 = vdwg.mxu0
    %v1747 = vxor.u32 %v1666, 2147483648
    %v1748 = vxor.u32 %v1692, 2147483648
    %v1749 = vxor.u32 %v1718, 2147483648
    %v1750 = vmul.f32 %v1747, 1.442695
    %v1751 = vpow.pop %v1750
    %v1752 = vmul.f32 %v1748, 1.442695
    %v1753 = vpow.pop %v1752
    %v1754 = vmul.f32 %v1749, 1.442695
    %v1755 = vpow.pop %v1754
    %v1756 = vadd.f32 %v1751, 1.0
    %v1757 = vadd.f32 %v1753, 1.0
    %v1758 = vadd.f32 %v1755, 1.0
    %v1759 = vrcp.pop %v1756
    %v1760 = vmul.f32 %v1756, %v1759
    %v1761 = vsub.f32 1.0, %v1760
    %v1762 = vmul.f32 %v1759, %v1761
    %v1763 = vadd.f32 %v1759, %v1762
    %vm1764 = vweird.f32 %v1756
    %vm1765 = vweird.f32 %v1759
    %vm1766 = vmor %vm1764, %vm1765
    %v1767 = vsel %vm1766, %v1759, %v1763
    %v1768 = vand.u32 2147483647, %v1756
    %vm1769 = vcmp.eq.f32.partialorder %v1768, 8.507059e+37
    %v1770 = vand.u32 %v1756, 2147483648
    %v1771 = vor.u32 1.1754944e-38, %v1770
    %v1772 = vsel %vm1769, %v1771, %v1767
    %v1773 = vmul.f32 1.0, %v1772
    %v1774 = vrcp.pop %v1757
    %v1775 = vmul.f32 %v1757, %v1774
    %v1776 = vsub.f32 1.0, %v1775
    %v1777 = vmul.f32 %v1774, %v1776
    %v1778 = vadd.f32 %v1774, %v1777
    %vm1779 = vweird.f32 %v1757
    %vm1780 = vweird.f32 %v1774
    %vm1781 = vmor %vm1779, %vm1780
    %v1782 = vsel %vm1781, %v1774, %v1778
    %v1783 = vand.u32 2147483647, %v1757
    %vm1784 = vcmp.eq.f32.partialorder %v1783, 8.507059e+37
    %v1785 = vand.u32 %v1757, 2147483648
    %v1786 = vor.u32 1.1754944e-38, %v1785
    %v1787 = vsel %vm1784, %v1786, %v1782
    %v1788 = vmul.f32 1.0, %v1787
    %v1789 = vrcp.pop %v1758
    %v1790 = vmul.f32 %v1758, %v1789
    %v1791 = vsub.f32 1.0, %v1790
    %v1792 = vmul.f32 %v1789, %v1791
    %v1793 = vadd.f32 %v1789, %v1792
    %vm1794 = vweird.f32 %v1758
    %vm1795 = vweird.f32 %v1789
    %vm1796 = vmor %vm1794, %vm1795
    %v1797 = vsel %vm1796, %v1789, %v1793
    %v1798 = vand.u32 2147483647, %v1758
    %vm1799 = vcmp.eq.f32.partialorder %v1798, 8.507059e+37
    %v1800 = vand.u32 %v1758, 2147483648
    %v1801 = vor.u32 1.1754944e-38, %v1800
    %v1802 = vsel %vm1799, %v1801, %v1797
    %v1803 = vmul.f32 1.0, %v1802
    %v1804 = vtanh.pop %v1744
    %v1805 = vmul.f32 %v1788, %v1518
    %v1806 = vmul.f32 %v1773, %v1804
    %v1807 = vadd.f32 %v1805, %v1806
    %v1808 = vtanh.pop %v1807
    %v1809 = vmul.f32 %v1803, %v1808
    %1810 = vst [vmem:[#allocation2 + $0x8] sm:$0xff] %v1809
    %1811 = vmatpush.bf16.msra.mxu0 %v809
    %1812 = vmatpush.bf16.msra.mxu0 %v805
    %1813 = vmatpush.bf16.msra.mxu0 %v801
    %1814 = vmatpush.bf16.msra.mxu0 %v797
    %1815 = vmatpush.bf16.msra.mxu0 %v793
    %1816 = vmatpush.bf16.msra.mxu0 %v789
    %1817 = vmatpush.bf16.msra.mxu0 %v785
    %1818 = vmatpush.bf16.msra.mxu0 %v781
    %1819 = vmatmul.bf16.gmra.mxu0 %v1641
    %v1820 = vpop.f32.mrf.mxu0
    %v1821 = vadd.f32 0.0, %v1820
    %v1822 = vpop.f32.mrf.mxu0
    %1823 = vdwg.mxu0
    %1824 = vmatpush.bf16.msra.mxu0 %v810
    %1825 = vmatpush.bf16.msra.mxu0 %v806
    %1826 = vmatpush.bf16.msra.mxu0 %v802
    %1827 = vmatpush.bf16.msra.mxu0 %v798
    %1828 = vmatpush.bf16.msra.mxu0 %v794
    %1829 = vmatpush.bf16.msra.mxu0 %v790
    %1830 = vmatpush.bf16.msra.mxu0 %v786
    %1831 = vmatpush.bf16.msra.mxu0 %v782
    %1832 = vmatmul.bf16.gmra.mxu0 %v1641
    %v1833 = vpop.f32.mrf.mxu0
    %v1834 = vadd.f32 0.0, %v1833
    %v1835 = vpop.f32.mrf.mxu0
    %1836 = vdwg.mxu0
    %1837 = vmatpush.bf16.msra.mxu0 %v811
    %1838 = vmatpush.bf16.msra.mxu0 %v807
    %1839 = vmatpush.bf16.msra.mxu0 %v803
    %1840 = vmatpush.bf16.msra.mxu0 %v799
    %1841 = vmatpush.bf16.msra.mxu0 %v795
    %1842 = vmatpush.bf16.msra.mxu0 %v791
    %1843 = vmatpush.bf16.msra.mxu0 %v787
    %1844 = vmatpush.bf16.msra.mxu0 %v783
    %1845 = vmatmul.bf16.gmra.mxu0 %v1641
    %v1846 = vpop.f32.mrf.mxu0
    %v1847 = vadd.f32 0.0, %v1846
    %v1848 = vpop.f32.mrf.mxu0
    %1849 = vdwg.mxu0
    %1850 = vmatpush.bf16.msra.mxu0 %v812
    %1851 = vmatpush.bf16.msra.mxu0 %v808
    %1852 = vmatpush.bf16.msra.mxu0 %v804
    %1853 = vmatpush.bf16.msra.mxu0 %v800
    %1854 = vmatpush.bf16.msra.mxu0 %v796
    %1855 = vmatpush.bf16.msra.mxu0 %v792
    %1856 = vmatpush.bf16.msra.mxu0 %v788
    %1857 = vmatpush.bf16.msra.mxu0 %v784
    %1858 = vmatmul.bf16.gmra.mxu0 %v1641
    %v1859 = vpop.f32.mrf.mxu0
    %v1860 = vadd.f32 0.0, %v1859
    %v1861 = vpop.f32.mrf.mxu0
    %1862 = vdwg.mxu0
    %v1863 = vadd.f32 %v537, %v1821
    %v1864 = vadd.f32 %v566, %v1834
    %v1865 = vadd.f32 %v595, %v1847
    %v1866 = vadd.f32 %v624, %v1860
    %v1867 = vxor.u32 %v1863, 2147483648
    %v1868 = vxor.u32 %v1864, 2147483648
    %v1869 = vxor.u32 %v1865, 2147483648
    %v1870 = vmul.f32 %v1867, 1.442695
    %v1871 = vpow.pop %v1870
    %v1872 = vmul.f32 %v1868, 1.442695
    %v1873 = vpow.pop %v1872
    %v1874 = vmul.f32 %v1869, 1.442695
    %v1875 = vpow.pop %v1874
    %v1876 = vadd.f32 %v1871, 1.0
    %v1877 = vadd.f32 %v1873, 1.0
    %v1878 = vadd.f32 %v1875, 1.0
    %v1879 = vrcp.pop %v1876
    %v1880 = vmul.f32 %v1876, %v1879
    %v1881 = vsub.f32 1.0, %v1880
    %v1882 = vmul.f32 %v1879, %v1881
    %v1883 = vadd.f32 %v1879, %v1882
    %vm1884 = vweird.f32 %v1876
    %vm1885 = vweird.f32 %v1879
    %vm1886 = vmor %vm1884, %vm1885
    %v1887 = vsel %vm1886, %v1879, %v1883
    %v1888 = vand.u32 2147483647, %v1876
    %vm1889 = vcmp.eq.f32.partialorder %v1888, 8.507059e+37
    %v1890 = vand.u32 %v1876, 2147483648
    %v1891 = vor.u32 1.1754944e-38, %v1890
    %v1892 = vsel %vm1889, %v1891, %v1887
    %v1893 = vmul.f32 1.0, %v1892
    %v1894 = vrcp.pop %v1877
    %v1895 = vmul.f32 %v1877, %v1894
    %v1896 = vsub.f32 1.0, %v1895
    %v1897 = vmul.f32 %v1894, %v1896
    %v1898 = vadd.f32 %v1894, %v1897
    %vm1899 = vweird.f32 %v1877
    %vm1900 = vweird.f32 %v1894
    %vm1901 = vmor %vm1899, %vm1900
    %v1902 = vsel %vm1901, %v1894, %v1898
    %v1903 = vand.u32 2147483647, %v1877
    %vm1904 = vcmp.eq.f32.partialorder %v1903, 8.507059e+37
    %v1905 = vand.u32 %v1877, 2147483648
    %v1906 = vor.u32 1.1754944e-38, %v1905
    %v1907 = vsel %vm1904, %v1906, %v1902
    %v1908 = vmul.f32 1.0, %v1907
    %v1909 = vrcp.pop %v1878
    %v1910 = vmul.f32 %v1878, %v1909
    %v1911 = vsub.f32 1.0, %v1910
    %v1912 = vmul.f32 %v1909, %v1911
    %v1913 = vadd.f32 %v1909, %v1912
    %vm1914 = vweird.f32 %v1878
    %vm1915 = vweird.f32 %v1909
    %vm1916 = vmor %vm1914, %vm1915
    %v1917 = vsel %vm1916, %v1909, %v1913
    %v1918 = vand.u32 2147483647, %v1878
    %vm1919 = vcmp.eq.f32.partialorder %v1918, 8.507059e+37
    %v1920 = vand.u32 %v1878, 2147483648
    %v1921 = vor.u32 1.1754944e-38, %v1920
    %v1922 = vsel %vm1919, %v1921, %v1917
    %v1923 = vmul.f32 1.0, %v1922
    %v1924 = vtanh.pop %v1866
    %v1925 = vmul.f32 %v1908, %v1638
    %v1926 = vmul.f32 %v1893, %v1924
    %v1927 = vadd.f32 %v1925, %v1926
    %v1928 = vtanh.pop %v1927
    %v1929 = vmul.f32 %v1923, %v1928
    %v1930 = vpack.c.bf16 %v1929, %v1929
    %v1931 = vpack.c.bf16 %v1809, %v1809
    %1932 = vmatpush.bf16.msra.mxu0 %v1254
    %1933 = vmatpush.bf16.msra.mxu0 %v1250
    %1934 = vmatpush.bf16.msra.mxu0 %v1246
    %1935 = vmatpush.bf16.msra.mxu0 %v1242
    %1936 = vmatpush.bf16.msra.mxu0 %v1238
    %1937 = vmatpush.bf16.msra.mxu0 %v1234
    %1938 = vmatpush.bf16.msra.mxu0 %v1230
    %1939 = vmatpush.bf16.msra.mxu0 %v1226
    %1940 = vmatmul.bf16.gmra.mxu0 %v1930
    %v1941 = vpop.f32.mrf.mxu0
    %v1942 = vadd.f32 %v640, %v1941
    %v1943 = vpop.f32.mrf.mxu0
    %1944 = vdwg.mxu0
    %1945 = vmatpush.bf16.msra.mxu0 %v1286
    %1946 = vmatpush.bf16.msra.mxu0 %v1282
    %1947 = vmatpush.bf16.msra.mxu0 %v1278
    %1948 = vmatpush.bf16.msra.mxu0 %v1274
    %1949 = vmatpush.bf16.msra.mxu0 %v1270
    %1950 = vmatpush.bf16.msra.mxu0 %v1266
    %1951 = vmatpush.bf16.msra.mxu0 %v1262
    %1952 = vmatpush.bf16.msra.mxu0 %v1258
    %1953 = vmatmul.bf16.gmra.mxu0 %v1931
    %v1954 = vpop.f32.mrf.mxu0
    %v1955 = vadd.f32 %v1942, %v1954
    %v1956 = vpop.f32.mrf.mxu0
    %1957 = vdwg.mxu0
    %1958 = vmatpush.bf16.msra.mxu0 %v1255
    %1959 = vmatpush.bf16.msra.mxu0 %v1251
    %1960 = vmatpush.bf16.msra.mxu0 %v1247
    %1961 = vmatpush.bf16.msra.mxu0 %v1243
    %1962 = vmatpush.bf16.msra.mxu0 %v1239
    %1963 = vmatpush.bf16.msra.mxu0 %v1235
    %1964 = vmatpush.bf16.msra.mxu0 %v1231
    %1965 = vmatpush.bf16.msra.mxu0 %v1227
    %1966 = vmatmul.bf16.gmra.mxu0 %v1930
    %v1967 = vpop.f32.mrf.mxu0
    %v1968 = vadd.f32 %v641, %v1967
    %v1969 = vpop.f32.mrf.mxu0
    %1970 = vdwg.mxu0
    %1971 = vmatpush.bf16.msra.mxu0 %v1287
    %1972 = vmatpush.bf16.msra.mxu0 %v1283
    %1973 = vmatpush.bf16.msra.mxu0 %v1279
    %1974 = vmatpush.bf16.msra.mxu0 %v1275
    %1975 = vmatpush.bf16.msra.mxu0 %v1271
    %1976 = vmatpush.bf16.msra.mxu0 %v1267
    %1977 = vmatpush.bf16.msra.mxu0 %v1263
    %1978 = vmatpush.bf16.msra.mxu0 %v1259
    %1979 = vmatmul.bf16.gmra.mxu0 %v1931
    %v1980 = vpop.f32.mrf.mxu0
    %v1981 = vadd.f32 %v1968, %v1980
    %v1982 = vpop.f32.mrf.mxu0
    %1983 = vdwg.mxu0
    %1984 = vmatpush.bf16.msra.mxu0 %v1256
    %1985 = vmatpush.bf16.msra.mxu0 %v1252
    %1986 = vmatpush.bf16.msra.mxu0 %v1248
    %1987 = vmatpush.bf16.msra.mxu0 %v1244
    %1988 = vmatpush.bf16.msra.mxu0 %v1240
    %1989 = vmatpush.bf16.msra.mxu0 %v1236
    %1990 = vmatpush.bf16.msra.mxu0 %v1232
    %1991 = vmatpush.bf16.msra.mxu0 %v1228
    %1992 = vmatmul.bf16.gmra.mxu0 %v1930
    %v1993 = vpop.f32.mrf.mxu0
    %v1994 = vadd.f32 %v642, %v1993
    %v1995 = vpop.f32.mrf.mxu0
    %1996 = vdwg.mxu0
    %1997 = vmatpush.bf16.msra.mxu0 %v1288
    %1998 = vmatpush.bf16.msra.mxu0 %v1284
    %1999 = vmatpush.bf16.msra.mxu0 %v1280
    %2000 = vmatpush.bf16.msra.mxu0 %v1276
    %2001 = vmatpush.bf16.msra.mxu0 %v1272
    %2002 = vmatpush.bf16.msra.mxu0 %v1268
    %2003 = vmatpush.bf16.msra.mxu0 %v1264
    %2004 = vmatpush.bf16.msra.mxu0 %v1260
    %2005 = vmatmul.bf16.gmra.mxu0 %v1931
    %v2006 = vpop.f32.mrf.mxu0
    %v2007 = vadd.f32 %v1994, %v2006
    %v2008 = vpop.f32.mrf.mxu0
    %2009 = vdwg.mxu0
    %2010 = vmatpush.bf16.msra.mxu0 %v1257
    %2011 = vmatpush.bf16.msra.mxu0 %v1253
    %2012 = vmatpush.bf16.msra.mxu0 %v1249
    %2013 = vmatpush.bf16.msra.mxu0 %v1245
    %2014 = vmatpush.bf16.msra.mxu0 %v1241
    %2015 = vmatpush.bf16.msra.mxu0 %v1237
    %2016 = vmatpush.bf16.msra.mxu0 %v1233
    %2017 = vmatpush.bf16.msra.mxu0 %v1229
    %2018 = vmatmul.bf16.gmra.mxu0 %v1930
    %v2019 = vpop.f32.mrf.mxu0
    %v2020 = vadd.f32 %v643, %v2019
    %v2021 = vpop.f32.mrf.mxu0
    %2022 = vdwg.mxu0
    %2023 = vmatpush.bf16.msra.mxu0 %v1289
    %2024 = vmatpush.bf16.msra.mxu0 %v1285
    %2025 = vmatpush.bf16.msra.mxu0 %v1281
    %2026 = vmatpush.bf16.msra.mxu0 %v1277
    %2027 = vmatpush.bf16.msra.mxu0 %v1273
    %2028 = vmatpush.bf16.msra.mxu0 %v1269
    %2029 = vmatpush.bf16.msra.mxu0 %v1265
    %2030 = vmatpush.bf16.msra.mxu0 %v1261
    %2031 = vmatmul.bf16.gmra.mxu0 %v1931
    %v2032 = vpop.f32.mrf.mxu0
    %v2033 = vadd.f32 %v2020, %v2032
    %v2034 = vpop.f32.mrf.mxu0
    %2035 = vdwg.mxu0
    %v2036 = vxor.u32 %v1955, 2147483648
    %v2037 = vxor.u32 %v1981, 2147483648
    %v2038 = vxor.u32 %v2007, 2147483648
    %v2039 = vmul.f32 %v2036, 1.442695
    %v2040 = vpow.pop %v2039
    %v2041 = vmul.f32 %v2037, 1.442695
    %v2042 = vpow.pop %v2041
    %v2043 = vmul.f32 %v2038, 1.442695
    %v2044 = vpow.pop %v2043
    %v2045 = vadd.f32 %v2040, 1.0
    %v2046 = vadd.f32 %v2042, 1.0
    %v2047 = vadd.f32 %v2044, 1.0
    %v2048 = vrcp.pop %v2045
    %v2049 = vmul.f32 %v2045, %v2048
    %v2050 = vsub.f32 1.0, %v2049
    %v2051 = vmul.f32 %v2048, %v2050
    %v2052 = vadd.f32 %v2048, %v2051
    %vm2053 = vweird.f32 %v2045
    %vm2054 = vweird.f32 %v2048
    %vm2055 = vmor %vm2053, %vm2054
    %v2056 = vsel %vm2055, %v2048, %v2052
    %v2057 = vand.u32 2147483647, %v2045
    %vm2058 = vcmp.eq.f32.partialorder %v2057, 8.507059e+37
    %v2059 = vand.u32 %v2045, 2147483648
    %v2060 = vor.u32 1.1754944e-38, %v2059
    %v2061 = vsel %vm2058, %v2060, %v2056
    %v2062 = vmul.f32 1.0, %v2061
    %v2063 = vrcp.pop %v2046
    %v2064 = vmul.f32 %v2046, %v2063
    %v2065 = vsub.f32 1.0, %v2064
    %v2066 = vmul.f32 %v2063, %v2065
    %v2067 = vadd.f32 %v2063, %v2066
    %vm2068 = vweird.f32 %v2046
    %vm2069 = vweird.f32 %v2063
    %vm2070 = vmor %vm2068, %vm2069
    %v2071 = vsel %vm2070, %v2063, %v2067
    %v2072 = vand.u32 2147483647, %v2046
    %vm2073 = vcmp.eq.f32.partialorder %v2072, 8.507059e+37
    %v2074 = vand.u32 %v2046, 2147483648
    %v2075 = vor.u32 1.1754944e-38, %v2074
    %v2076 = vsel %vm2073, %v2075, %v2071
    %v2077 = vmul.f32 1.0, %v2076
    %v2078 = vrcp.pop %v2047
    %v2079 = vmul.f32 %v2047, %v2078
    %v2080 = vsub.f32 1.0, %v2079
    %v2081 = vmul.f32 %v2078, %v2080
    %v2082 = vadd.f32 %v2078, %v2081
    %vm2083 = vweird.f32 %v2047
    %vm2084 = vweird.f32 %v2078
    %vm2085 = vmor %vm2083, %vm2084
    %v2086 = vsel %vm2085, %v2078, %v2082
    %v2087 = vand.u32 2147483647, %v2047
    %vm2088 = vcmp.eq.f32.partialorder %v2087, 8.507059e+37
    %v2089 = vand.u32 %v2047, 2147483648
    %v2090 = vor.u32 1.1754944e-38, %v2089
    %v2091 = vsel %vm2088, %v2090, %v2086
    %v2092 = vmul.f32 1.0, %v2091
    %v2093 = vtanh.pop %v2033
    %v2094 = vmul.f32 %v2077, %v1807
    %v2095 = vmul.f32 %v2062, %v2093
    %v2096 = vadd.f32 %v2094, %v2095
    %v2097 = vtanh.pop %v2096
    %v2098 = vmul.f32 %v2092, %v2097
    %2099 = vst [vmem:[#allocation2 + $0x10] sm:$0xff] %v2098
    %2100 = vmatpush.bf16.msra.mxu0 %v809
    %2101 = vmatpush.bf16.msra.mxu0 %v805
    %2102 = vmatpush.bf16.msra.mxu0 %v801
    %2103 = vmatpush.bf16.msra.mxu0 %v797
    %2104 = vmatpush.bf16.msra.mxu0 %v793
    %2105 = vmatpush.bf16.msra.mxu0 %v789
    %2106 = vmatpush.bf16.msra.mxu0 %v785
    %2107 = vmatpush.bf16.msra.mxu0 %v781
    %2108 = vmatmul.bf16.gmra.mxu0 %v1930
    %v2109 = vpop.f32.mrf.mxu0
    %v2110 = vadd.f32 0.0, %v2109
    %v2111 = vpop.f32.mrf.mxu0
    %2112 = vdwg.mxu0
    %2113 = vmatpush.bf16.msra.mxu0 %v810
    %2114 = vmatpush.bf16.msra.mxu0 %v806
    %2115 = vmatpush.bf16.msra.mxu0 %v802
    %2116 = vmatpush.bf16.msra.mxu0 %v798
    %2117 = vmatpush.bf16.msra.mxu0 %v794
    %2118 = vmatpush.bf16.msra.mxu0 %v790
    %2119 = vmatpush.bf16.msra.mxu0 %v786
    %2120 = vmatpush.bf16.msra.mxu0 %v782
    %2121 = vmatmul.bf16.gmra.mxu0 %v1930
    %v2122 = vpop.f32.mrf.mxu0
    %v2123 = vadd.f32 0.0, %v2122
    %v2124 = vpop.f32.mrf.mxu0
    %2125 = vdwg.mxu0
    %2126 = vmatpush.bf16.msra.mxu0 %v811
    %2127 = vmatpush.bf16.msra.mxu0 %v807
    %2128 = vmatpush.bf16.msra.mxu0 %v803
    %2129 = vmatpush.bf16.msra.mxu0 %v799
    %2130 = vmatpush.bf16.msra.mxu0 %v795
    %2131 = vmatpush.bf16.msra.mxu0 %v791
    %2132 = vmatpush.bf16.msra.mxu0 %v787
    %2133 = vmatpush.bf16.msra.mxu0 %v783
    %2134 = vmatmul.bf16.gmra.mxu0 %v1930
    %v2135 = vpop.f32.mrf.mxu0
    %v2136 = vadd.f32 0.0, %v2135
    %v2137 = vpop.f32.mrf.mxu0
    %2138 = vdwg.mxu0
    %2139 = vmatpush.bf16.msra.mxu0 %v812
    %2140 = vmatpush.bf16.msra.mxu0 %v808
    %2141 = vmatpush.bf16.msra.mxu0 %v804
    %2142 = vmatpush.bf16.msra.mxu0 %v800
    %2143 = vmatpush.bf16.msra.mxu0 %v796
    %2144 = vmatpush.bf16.msra.mxu0 %v792
    %2145 = vmatpush.bf16.msra.mxu0 %v788
    %2146 = vmatpush.bf16.msra.mxu0 %v784
    %2147 = vmatmul.bf16.gmra.mxu0 %v1930
    %v2148 = vpop.f32.mrf.mxu0
    %v2149 = vadd.f32 0.0, %v2148
    %v2150 = vpop.f32.mrf.mxu0
    %2151 = vdwg.mxu0
    %v2152 = vadd.f32 %v539, %v2110
    %v2153 = vadd.f32 %v568, %v2123
    %v2154 = vadd.f32 %v597, %v2136
    %v2155 = vadd.f32 %v626, %v2149
    %v2156 = vxor.u32 %v2152, 2147483648
    %v2157 = vxor.u32 %v2153, 2147483648
    %v2158 = vxor.u32 %v2154, 2147483648
    %v2159 = vmul.f32 %v2156, 1.442695
    %v2160 = vpow.pop %v2159
    %v2161 = vmul.f32 %v2157, 1.442695
    %v2162 = vpow.pop %v2161
    %v2163 = vmul.f32 %v2158, 1.442695
    %v2164 = vpow.pop %v2163
    %v2165 = vadd.f32 %v2160, 1.0
    %v2166 = vadd.f32 %v2162, 1.0
    %v2167 = vadd.f32 %v2164, 1.0
    %v2168 = vrcp.pop %v2165
    %v2169 = vmul.f32 %v2165, %v2168
    %v2170 = vsub.f32 1.0, %v2169
    %v2171 = vmul.f32 %v2168, %v2170
    %v2172 = vadd.f32 %v2168, %v2171
    %vm2173 = vweird.f32 %v2165
    %vm2174 = vweird.f32 %v2168
    %vm2175 = vmor %vm2173, %vm2174
    %v2176 = vsel %vm2175, %v2168, %v2172
    %v2177 = vand.u32 2147483647, %v2165
    %vm2178 = vcmp.eq.f32.partialorder %v2177, 8.507059e+37
    %v2179 = vand.u32 %v2165, 2147483648
    %v2180 = vor.u32 1.1754944e-38, %v2179
    %v2181 = vsel %vm2178, %v2180, %v2176
    %v2182 = vmul.f32 1.0, %v2181
    %v2183 = vrcp.pop %v2166
    %v2184 = vmul.f32 %v2166, %v2183
    %v2185 = vsub.f32 1.0, %v2184
    %v2186 = vmul.f32 %v2183, %v2185
    %v2187 = vadd.f32 %v2183, %v2186
    %vm2188 = vweird.f32 %v2166
    %vm2189 = vweird.f32 %v2183
    %vm2190 = vmor %vm2188, %vm2189
    %v2191 = vsel %vm2190, %v2183, %v2187
    %v2192 = vand.u32 2147483647, %v2166
    %vm2193 = vcmp.eq.f32.partialorder %v2192, 8.507059e+37
    %v2194 = vand.u32 %v2166, 2147483648
    %v2195 = vor.u32 1.1754944e-38, %v2194
    %v2196 = vsel %vm2193, %v2195, %v2191
    %v2197 = vmul.f32 1.0, %v2196
    %v2198 = vrcp.pop %v2167
    %v2199 = vmul.f32 %v2167, %v2198
    %v2200 = vsub.f32 1.0, %v2199
    %v2201 = vmul.f32 %v2198, %v2200
    %v2202 = vadd.f32 %v2198, %v2201
    %vm2203 = vweird.f32 %v2167
    %vm2204 = vweird.f32 %v2198
    %vm2205 = vmor %vm2203, %vm2204
    %v2206 = vsel %vm2205, %v2198, %v2202
    %v2207 = vand.u32 2147483647, %v2167
    %vm2208 = vcmp.eq.f32.partialorder %v2207, 8.507059e+37
    %v2209 = vand.u32 %v2167, 2147483648
    %v2210 = vor.u32 1.1754944e-38, %v2209
    %v2211 = vsel %vm2208, %v2210, %v2206
    %v2212 = vmul.f32 1.0, %v2211
    %v2213 = vtanh.pop %v2155
    %v2214 = vmul.f32 %v2197, %v1927
    %v2215 = vmul.f32 %v2182, %v2213
    %v2216 = vadd.f32 %v2214, %v2215
    %v2217 = vtanh.pop %v2216
    %v2218 = vmul.f32 %v2212, %v2217
    %v2219 = vpack.c.bf16 %v2218, %v2218
    %v2220 = vpack.c.bf16 %v2098, %v2098
    %2221 = vmatpush.bf16.msra.mxu0 %v1254
    %2222 = vmatpush.bf16.msra.mxu0 %v1250
    %2223 = vmatpush.bf16.msra.mxu0 %v1246
    %2224 = vmatpush.bf16.msra.mxu0 %v1242
    %2225 = vmatpush.bf16.msra.mxu0 %v1238
    %2226 = vmatpush.bf16.msra.mxu0 %v1234
    %2227 = vmatpush.bf16.msra.mxu0 %v1230
    %2228 = vmatpush.bf16.msra.mxu0 %v1226
    %2229 = vmatmul.bf16.gmra.mxu0 %v2219
    %v2230 = vpop.f32.mrf.mxu0
    %v2231 = vadd.f32 %v640, %v2230
    %v2232 = vpop.f32.mrf.mxu0
    %2233 = vdwg.mxu0
    %2234 = vmatpush.bf16.msra.mxu0 %v1286
    %2235 = vmatpush.bf16.msra.mxu0 %v1282
    %2236 = vmatpush.bf16.msra.mxu0 %v1278
    %2237 = vmatpush.bf16.msra.mxu0 %v1274
    %2238 = vmatpush.bf16.msra.mxu0 %v1270
    %2239 = vmatpush.bf16.msra.mxu0 %v1266
    %2240 = vmatpush.bf16.msra.mxu0 %v1262
    %2241 = vmatpush.bf16.msra.mxu0 %v1258
    %2242 = vmatmul.bf16.gmra.mxu0 %v2220
    %v2243 = vpop.f32.mrf.mxu0
    %v2244 = vadd.f32 %v2231, %v2243
    %v2245 = vpop.f32.mrf.mxu0
    %2246 = vdwg.mxu0
    %2247 = vmatpush.bf16.msra.mxu0 %v1255
    %2248 = vmatpush.bf16.msra.mxu0 %v1251
    %2249 = vmatpush.bf16.msra.mxu0 %v1247
    %2250 = vmatpush.bf16.msra.mxu0 %v1243
    %2251 = vmatpush.bf16.msra.mxu0 %v1239
    %2252 = vmatpush.bf16.msra.mxu0 %v1235
    %2253 = vmatpush.bf16.msra.mxu0 %v1231
    %2254 = vmatpush.bf16.msra.mxu0 %v1227
    %2255 = vmatmul.bf16.gmra.mxu0 %v2219
    %v2256 = vpop.f32.mrf.mxu0
    %v2257 = vadd.f32 %v641, %v2256
    %v2258 = vpop.f32.mrf.mxu0
    %2259 = vdwg.mxu0
    %2260 = vmatpush.bf16.msra.mxu0 %v1287
    %2261 = vmatpush.bf16.msra.mxu0 %v1283
    %2262 = vmatpush.bf16.msra.mxu0 %v1279
    %2263 = vmatpush.bf16.msra.mxu0 %v1275
    %2264 = vmatpush.bf16.msra.mxu0 %v1271
    %2265 = vmatpush.bf16.msra.mxu0 %v1267
    %2266 = vmatpush.bf16.msra.mxu0 %v1263
    %2267 = vmatpush.bf16.msra.mxu0 %v1259
    %2268 = vmatmul.bf16.gmra.mxu0 %v2220
    %v2269 = vpop.f32.mrf.mxu0
    %v2270 = vadd.f32 %v2257, %v2269
    %v2271 = vpop.f32.mrf.mxu0
    %2272 = vdwg.mxu0
    %2273 = vmatpush.bf16.msra.mxu0 %v1256
    %2274 = vmatpush.bf16.msra.mxu0 %v1252
    %2275 = vmatpush.bf16.msra.mxu0 %v1248
    %2276 = vmatpush.bf16.msra.mxu0 %v1244
    %2277 = vmatpush.bf16.msra.mxu0 %v1240
    %2278 = vmatpush.bf16.msra.mxu0 %v1236
    %2279 = vmatpush.bf16.msra.mxu0 %v1232
    %2280 = vmatpush.bf16.msra.mxu0 %v1228
    %2281 = vmatmul.bf16.gmra.mxu0 %v2219
    %v2282 = vpop.f32.mrf.mxu0
    %v2283 = vadd.f32 %v642, %v2282
    %v2284 = vpop.f32.mrf.mxu0
    %2285 = vdwg.mxu0
    %2286 = vmatpush.bf16.msra.mxu0 %v1288
    %2287 = vmatpush.bf16.msra.mxu0 %v1284
    %2288 = vmatpush.bf16.msra.mxu0 %v1280
    %2289 = vmatpush.bf16.msra.mxu0 %v1276
    %2290 = vmatpush.bf16.msra.mxu0 %v1272
    %2291 = vmatpush.bf16.msra.mxu0 %v1268
    %2292 = vmatpush.bf16.msra.mxu0 %v1264
    %2293 = vmatpush.bf16.msra.mxu0 %v1260
    %2294 = vmatmul.bf16.gmra.mxu0 %v2220
    %v2295 = vpop.f32.mrf.mxu0
    %v2296 = vadd.f32 %v2283, %v2295
    %v2297 = vpop.f32.mrf.mxu0
    %2298 = vdwg.mxu0
    %2299 = vmatpush.bf16.msra.mxu0 %v1257
    %2300 = vmatpush.bf16.msra.mxu0 %v1253
    %2301 = vmatpush.bf16.msra.mxu0 %v1249
    %2302 = vmatpush.bf16.msra.mxu0 %v1245
    %2303 = vmatpush.bf16.msra.mxu0 %v1241
    %2304 = vmatpush.bf16.msra.mxu0 %v1237
    %2305 = vmatpush.bf16.msra.mxu0 %v1233
    %2306 = vmatpush.bf16.msra.mxu0 %v1229
    %2307 = vmatmul.bf16.gmra.mxu0 %v2219
    %v2308 = vpop.f32.mrf.mxu0
    %v2309 = vadd.f32 %v643, %v2308
    %v2310 = vpop.f32.mrf.mxu0
    %2311 = vdwg.mxu0
    %2312 = vmatpush.bf16.msra.mxu0 %v1289
    %2313 = vmatpush.bf16.msra.mxu0 %v1285
    %2314 = vmatpush.bf16.msra.mxu0 %v1281
    %2315 = vmatpush.bf16.msra.mxu0 %v1277
    %2316 = vmatpush.bf16.msra.mxu0 %v1273
    %2317 = vmatpush.bf16.msra.mxu0 %v1269
    %2318 = vmatpush.bf16.msra.mxu0 %v1265
    %2319 = vmatpush.bf16.msra.mxu0 %v1261
    %2320 = vmatmul.bf16.gmra.mxu0 %v2220
    %v2321 = vpop.f32.mrf.mxu0
    %v2322 = vadd.f32 %v2309, %v2321
    %v2323 = vpop.f32.mrf.mxu0
    %2324 = vdwg.mxu0
    %v2325 = vxor.u32 %v2244, 2147483648
    %v2326 = vxor.u32 %v2270, 2147483648
    %v2327 = vxor.u32 %v2296, 2147483648
    %v2328 = vmul.f32 %v2325, 1.442695
    %v2329 = vpow.pop %v2328
    %v2330 = vmul.f32 %v2326, 1.442695
    %v2331 = vpow.pop %v2330
    %v2332 = vmul.f32 %v2327, 1.442695
    %v2333 = vpow.pop %v2332
    %v2334 = vadd.f32 %v2329, 1.0
    %v2335 = vadd.f32 %v2331, 1.0
    %v2336 = vadd.f32 %v2333, 1.0
    %v2337 = vrcp.pop %v2334
    %v2338 = vmul.f32 %v2334, %v2337
    %v2339 = vsub.f32 1.0, %v2338
    %v2340 = vmul.f32 %v2337, %v2339
    %v2341 = vadd.f32 %v2337, %v2340
    %vm2342 = vweird.f32 %v2334
    %vm2343 = vweird.f32 %v2337
    %vm2344 = vmor %vm2342, %vm2343
    %v2345 = vsel %vm2344, %v2337, %v2341
    %v2346 = vand.u32 2147483647, %v2334
    %vm2347 = vcmp.eq.f32.partialorder %v2346, 8.507059e+37
    %v2348 = vand.u32 %v2334, 2147483648
    %v2349 = vor.u32 1.1754944e-38, %v2348
    %v2350 = vsel %vm2347, %v2349, %v2345
    %v2351 = vmul.f32 1.0, %v2350
    %v2352 = vrcp.pop %v2335
    %v2353 = vmul.f32 %v2335, %v2352
    %v2354 = vsub.f32 1.0, %v2353
    %v2355 = vmul.f32 %v2352, %v2354
    %v2356 = vadd.f32 %v2352, %v2355
    %vm2357 = vweird.f32 %v2335
    %vm2358 = vweird.f32 %v2352
    %vm2359 = vmor %vm2357, %vm2358
    %v2360 = vsel %vm2359, %v2352, %v2356
    %v2361 = vand.u32 2147483647, %v2335
    %vm2362 = vcmp.eq.f32.partialorder %v2361, 8.507059e+37
    %v2363 = vand.u32 %v2335, 2147483648
    %v2364 = vor.u32 1.1754944e-38, %v2363
    %v2365 = vsel %vm2362, %v2364, %v2360
    %v2366 = vmul.f32 1.0, %v2365
    %v2367 = vrcp.pop %v2336
    %v2368 = vmul.f32 %v2336, %v2367
    %v2369 = vsub.f32 1.0, %v2368
    %v2370 = vmul.f32 %v2367, %v2369
    %v2371 = vadd.f32 %v2367, %v2370
    %vm2372 = vweird.f32 %v2336
    %vm2373 = vweird.f32 %v2367
    %vm2374 = vmor %vm2372, %vm2373
    %v2375 = vsel %vm2374, %v2367, %v2371
    %v2376 = vand.u32 2147483647, %v2336
    %vm2377 = vcmp.eq.f32.partialorder %v2376, 8.507059e+37
    %v2378 = vand.u32 %v2336, 2147483648
    %v2379 = vor.u32 1.1754944e-38, %v2378
    %v2380 = vsel %vm2377, %v2379, %v2375
    %v2381 = vmul.f32 1.0, %v2380
    %v2382 = vtanh.pop %v2322
    %v2383 = vmul.f32 %v2366, %v2096
    %v2384 = vmul.f32 %v2351, %v2382
    %v2385 = vadd.f32 %v2383, %v2384
    %v2386 = vtanh.pop %v2385
    %v2387 = vmul.f32 %v2381, %v2386
    %2388 = vst [vmem:[#allocation2 + $0x18] sm:$0xff] %v2387
    %2389 = vmatpush.bf16.msra.mxu0 %v809
    %2390 = vmatpush.bf16.msra.mxu0 %v805
    %2391 = vmatpush.bf16.msra.mxu0 %v801
    %2392 = vmatpush.bf16.msra.mxu0 %v797
    %2393 = vmatpush.bf16.msra.mxu0 %v793
    %2394 = vmatpush.bf16.msra.mxu0 %v789
    %2395 = vmatpush.bf16.msra.mxu0 %v785
    %2396 = vmatpush.bf16.msra.mxu0 %v781
    %2397 = vmatmul.bf16.gmra.mxu0 %v2219
    %v2398 = vpop.f32.mrf.mxu0
    %v2399 = vadd.f32 0.0, %v2398
    %v2400 = vpop.f32.mrf.mxu0
    %2401 = vdwg.mxu0
    %2402 = vmatpush.bf16.msra.mxu0 %v810
    %2403 = vmatpush.bf16.msra.mxu0 %v806
    %2404 = vmatpush.bf16.msra.mxu0 %v802
    %2405 = vmatpush.bf16.msra.mxu0 %v798
    %2406 = vmatpush.bf16.msra.mxu0 %v794
    %2407 = vmatpush.bf16.msra.mxu0 %v790
    %2408 = vmatpush.bf16.msra.mxu0 %v786
    %2409 = vmatpush.bf16.msra.mxu0 %v782
    %2410 = vmatmul.bf16.gmra.mxu0 %v2219
    %v2411 = vpop.f32.mrf.mxu0
    %v2412 = vadd.f32 0.0, %v2411
    %v2413 = vpop.f32.mrf.mxu0
    %2414 = vdwg.mxu0
    %2415 = vmatpush.bf16.msra.mxu0 %v811
    %2416 = vmatpush.bf16.msra.mxu0 %v807
    %2417 = vmatpush.bf16.msra.mxu0 %v803
    %2418 = vmatpush.bf16.msra.mxu0 %v799
    %2419 = vmatpush.bf16.msra.mxu0 %v795
    %2420 = vmatpush.bf16.msra.mxu0 %v791
    %2421 = vmatpush.bf16.msra.mxu0 %v787
    %2422 = vmatpush.bf16.msra.mxu0 %v783
    %2423 = vmatmul.bf16.gmra.mxu0 %v2219
    %v2424 = vpop.f32.mrf.mxu0
    %v2425 = vadd.f32 0.0, %v2424
    %v2426 = vpop.f32.mrf.mxu0
    %2427 = vdwg.mxu0
    %2428 = vmatpush.bf16.msra.mxu0 %v812
    %2429 = vmatpush.bf16.msra.mxu0 %v808
    %2430 = vmatpush.bf16.msra.mxu0 %v804
    %2431 = vmatpush.bf16.msra.mxu0 %v800
    %2432 = vmatpush.bf16.msra.mxu0 %v796
    %2433 = vmatpush.bf16.msra.mxu0 %v792
    %2434 = vmatpush.bf16.msra.mxu0 %v788
    %2435 = vmatpush.bf16.msra.mxu0 %v784
    %2436 = vmatmul.bf16.gmra.mxu0 %v2219
    %v2437 = vpop.f32.mrf.mxu0
    %v2438 = vadd.f32 0.0, %v2437
    %v2439 = vpop.f32.mrf.mxu0
    %2440 = vdwg.mxu0
    %v2441 = vadd.f32 %v542, %v2399
    %v2442 = vadd.f32 %v571, %v2412
    %v2443 = vadd.f32 %v600, %v2425
    %v2444 = vadd.f32 %v629, %v2438
    %v2445 = vxor.u32 %v2441, 2147483648
    %v2446 = vxor.u32 %v2442, 2147483648
    %v2447 = vxor.u32 %v2443, 2147483648
    %v2448 = vmul.f32 %v2445, 1.442695
    %v2449 = vpow.pop %v2448
    %v2450 = vmul.f32 %v2446, 1.442695
    %v2451 = vpow.pop %v2450
    %v2452 = vmul.f32 %v2447, 1.442695
    %v2453 = vpow.pop %v2452
    %v2454 = vadd.f32 %v2449, 1.0
    %v2455 = vadd.f32 %v2451, 1.0
    %v2456 = vadd.f32 %v2453, 1.0
    %v2457 = vrcp.pop %v2454
    %v2458 = vmul.f32 %v2454, %v2457
    %v2459 = vsub.f32 1.0, %v2458
    %v2460 = vmul.f32 %v2457, %v2459
    %v2461 = vadd.f32 %v2457, %v2460
    %vm2462 = vweird.f32 %v2454
    %vm2463 = vweird.f32 %v2457
    %vm2464 = vmor %vm2462, %vm2463
    %v2465 = vsel %vm2464, %v2457, %v2461
    %v2466 = vand.u32 2147483647, %v2454
    %vm2467 = vcmp.eq.f32.partialorder %v2466, 8.507059e+37
    %v2468 = vand.u32 %v2454, 2147483648
    %v2469 = vor.u32 1.1754944e-38, %v2468
    %v2470 = vsel %vm2467, %v2469, %v2465
    %v2471 = vmul.f32 1.0, %v2470
    %v2472 = vrcp.pop %v2455
    %v2473 = vmul.f32 %v2455, %v2472
    %v2474 = vsub.f32 1.0, %v2473
    %v2475 = vmul.f32 %v2472, %v2474
    %v2476 = vadd.f32 %v2472, %v2475
    %vm2477 = vweird.f32 %v2455
    %vm2478 = vweird.f32 %v2472
    %vm2479 = vmor %vm2477, %vm2478
    %v2480 = vsel %vm2479, %v2472, %v2476
    %v2481 = vand.u32 2147483647, %v2455
    %vm2482 = vcmp.eq.f32.partialorder %v2481, 8.507059e+37
    %v2483 = vand.u32 %v2455, 2147483648
    %v2484 = vor.u32 1.1754944e-38, %v2483
    %v2485 = vsel %vm2482, %v2484, %v2480
    %v2486 = vmul.f32 1.0, %v2485
    %v2487 = vrcp.pop %v2456
    %v2488 = vmul.f32 %v2456, %v2487
    %v2489 = vsub.f32 1.0, %v2488
    %v2490 = vmul.f32 %v2487, %v2489
    %v2491 = vadd.f32 %v2487, %v2490
    %vm2492 = vweird.f32 %v2456
    %vm2493 = vweird.f32 %v2487
    %vm2494 = vmor %vm2492, %vm2493
    %v2495 = vsel %vm2494, %v2487, %v2491
    %v2496 = vand.u32 2147483647, %v2456
    %vm2497 = vcmp.eq.f32.partialorder %v2496, 8.507059e+37
    %v2498 = vand.u32 %v2456, 2147483648
    %v2499 = vor.u32 1.1754944e-38, %v2498
    %v2500 = vsel %vm2497, %v2499, %v2495
    %v2501 = vmul.f32 1.0, %v2500
    %v2502 = vtanh.pop %v2444
    %v2503 = vmul.f32 %v2486, %v2216
    %v2504 = vmul.f32 %v2471, %v2502
    %v2505 = vadd.f32 %v2503, %v2504
    %v2506 = vtanh.pop %v2505
    %v2507 = vmul.f32 %v2501, %v2506
    %v2508 = vpack.c.bf16 %v2507, %v2507
    %v2509 = vpack.c.bf16 %v2387, %v2387
    %2510 = vmatpush.bf16.msra.mxu0 %v1254
    %2511 = vmatpush.bf16.msra.mxu0 %v1250
    %2512 = vmatpush.bf16.msra.mxu0 %v1246
    %2513 = vmatpush.bf16.msra.mxu0 %v1242
    %2514 = vmatpush.bf16.msra.mxu0 %v1238
    %2515 = vmatpush.bf16.msra.mxu0 %v1234
    %2516 = vmatpush.bf16.msra.mxu0 %v1230
    %2517 = vmatpush.bf16.msra.mxu0 %v1226
    %2518 = vmatmul.bf16.gmra.mxu0 %v2508
    %v2519 = vpop.f32.mrf.mxu0
    %v2520 = vadd.f32 %v640, %v2519
    %v2521 = vpop.f32.mrf.mxu0
    %2522 = vdwg.mxu0
    %2523 = vmatpush.bf16.msra.mxu0 %v1286
    %2524 = vmatpush.bf16.msra.mxu0 %v1282
    %2525 = vmatpush.bf16.msra.mxu0 %v1278
    %2526 = vmatpush.bf16.msra.mxu0 %v1274
    %2527 = vmatpush.bf16.msra.mxu0 %v1270
    %2528 = vmatpush.bf16.msra.mxu0 %v1266
    %2529 = vmatpush.bf16.msra.mxu0 %v1262
    %2530 = vmatpush.bf16.msra.mxu0 %v1258
    %2531 = vmatmul.bf16.gmra.mxu0 %v2509
    %v2532 = vpop.f32.mrf.mxu0
    %v2533 = vadd.f32 %v2520, %v2532
    %v2534 = vpop.f32.mrf.mxu0
    %2535 = vdwg.mxu0
    %2536 = vmatpush.bf16.msra.mxu0 %v1255
    %2537 = vmatpush.bf16.msra.mxu0 %v1251
    %2538 = vmatpush.bf16.msra.mxu0 %v1247
    %2539 = vmatpush.bf16.msra.mxu0 %v1243
    %2540 = vmatpush.bf16.msra.mxu0 %v1239
    %2541 = vmatpush.bf16.msra.mxu0 %v1235
    %2542 = vmatpush.bf16.msra.mxu0 %v1231
    %2543 = vmatpush.bf16.msra.mxu0 %v1227
    %2544 = vmatmul.bf16.gmra.mxu0 %v2508
    %v2545 = vpop.f32.mrf.mxu0
    %v2546 = vadd.f32 %v641, %v2545
    %v2547 = vpop.f32.mrf.mxu0
    %2548 = vdwg.mxu0
    %2549 = vmatpush.bf16.msra.mxu0 %v1287
    %2550 = vmatpush.bf16.msra.mxu0 %v1283
    %2551 = vmatpush.bf16.msra.mxu0 %v1279
    %2552 = vmatpush.bf16.msra.mxu0 %v1275
    %2553 = vmatpush.bf16.msra.mxu0 %v1271
    %2554 = vmatpush.bf16.msra.mxu0 %v1267
    %2555 = vmatpush.bf16.msra.mxu0 %v1263
    %2556 = vmatpush.bf16.msra.mxu0 %v1259
    %2557 = vmatmul.bf16.gmra.mxu0 %v2509
    %v2558 = vpop.f32.mrf.mxu0
    %v2559 = vadd.f32 %v2546, %v2558
    %v2560 = vpop.f32.mrf.mxu0
    %2561 = vdwg.mxu0
    %2562 = vmatpush.bf16.msra.mxu0 %v1256
    %2563 = vmatpush.bf16.msra.mxu0 %v1252
    %2564 = vmatpush.bf16.msra.mxu0 %v1248
    %2565 = vmatpush.bf16.msra.mxu0 %v1244
    %2566 = vmatpush.bf16.msra.mxu0 %v1240
    %2567 = vmatpush.bf16.msra.mxu0 %v1236
    %2568 = vmatpush.bf16.msra.mxu0 %v1232
    %2569 = vmatpush.bf16.msra.mxu0 %v1228
    %2570 = vmatmul.bf16.gmra.mxu0 %v2508
    %v2571 = vpop.f32.mrf.mxu0
    %v2572 = vadd.f32 %v642, %v2571
    %v2573 = vpop.f32.mrf.mxu0
    %2574 = vdwg.mxu0
    %2575 = vmatpush.bf16.msra.mxu0 %v1288
    %2576 = vmatpush.bf16.msra.mxu0 %v1284
    %2577 = vmatpush.bf16.msra.mxu0 %v1280
    %2578 = vmatpush.bf16.msra.mxu0 %v1276
    %2579 = vmatpush.bf16.msra.mxu0 %v1272
    %2580 = vmatpush.bf16.msra.mxu0 %v1268
    %2581 = vmatpush.bf16.msra.mxu0 %v1264
    %2582 = vmatpush.bf16.msra.mxu0 %v1260
    %2583 = vmatmul.bf16.gmra.mxu0 %v2509
    %v2584 = vpop.f32.mrf.mxu0
    %v2585 = vadd.f32 %v2572, %v2584
    %v2586 = vpop.f32.mrf.mxu0
    %2587 = vdwg.mxu0
    %2588 = vmatpush.bf16.msra.mxu0 %v1257
    %2589 = vmatpush.bf16.msra.mxu0 %v1253
    %2590 = vmatpush.bf16.msra.mxu0 %v1249
    %2591 = vmatpush.bf16.msra.mxu0 %v1245
    %2592 = vmatpush.bf16.msra.mxu0 %v1241
    %2593 = vmatpush.bf16.msra.mxu0 %v1237
    %2594 = vmatpush.bf16.msra.mxu0 %v1233
    %2595 = vmatpush.bf16.msra.mxu0 %v1229
    %2596 = vmatmul.bf16.gmra.mxu0 %v2508
    %v2597 = vpop.f32.mrf.mxu0
    %v2598 = vadd.f32 %v643, %v2597
    %v2599 = vpop.f32.mrf.mxu0
    %2600 = vdwg.mxu0
    %2601 = vmatpush.bf16.msra.mxu0 %v1289
    %2602 = vmatpush.bf16.msra.mxu0 %v1285
    %2603 = vmatpush.bf16.msra.mxu0 %v1281
    %2604 = vmatpush.bf16.msra.mxu0 %v1277
    %2605 = vmatpush.bf16.msra.mxu0 %v1273
    %2606 = vmatpush.bf16.msra.mxu0 %v1269
    %2607 = vmatpush.bf16.msra.mxu0 %v1265
    %2608 = vmatpush.bf16.msra.mxu0 %v1261
    %2609 = vmatmul.bf16.gmra.mxu0 %v2509
    %v2610 = vpop.f32.mrf.mxu0
    %v2611 = vadd.f32 %v2598, %v2610
    %v2612 = vpop.f32.mrf.mxu0
    %2613 = vdwg.mxu0
    %v2614 = vxor.u32 %v2533, 2147483648
    %v2615 = vxor.u32 %v2559, 2147483648
    %v2616 = vxor.u32 %v2585, 2147483648
    %v2617 = vmul.f32 %v2614, 1.442695
    %v2618 = vpow.pop %v2617
    %v2619 = vmul.f32 %v2615, 1.442695
    %v2620 = vpow.pop %v2619
    %v2621 = vmul.f32 %v2616, 1.442695
    %v2622 = vpow.pop %v2621
    %v2623 = vadd.f32 %v2618, 1.0
    %v2624 = vadd.f32 %v2620, 1.0
    %v2625 = vadd.f32 %v2622, 1.0
    %v2626 = vrcp.pop %v2623
    %v2627 = vmul.f32 %v2623, %v2626
    %v2628 = vsub.f32 1.0, %v2627
    %v2629 = vmul.f32 %v2626, %v2628
    %v2630 = vadd.f32 %v2626, %v2629
    %vm2631 = vweird.f32 %v2623
    %vm2632 = vweird.f32 %v2626
    %vm2633 = vmor %vm2631, %vm2632
    %v2634 = vsel %vm2633, %v2626, %v2630
    %v2635 = vand.u32 2147483647, %v2623
    %vm2636 = vcmp.eq.f32.partialorder %v2635, 8.507059e+37
    %v2637 = vand.u32 %v2623, 2147483648
    %v2638 = vor.u32 1.1754944e-38, %v2637
    %v2639 = vsel %vm2636, %v2638, %v2634
    %v2640 = vmul.f32 1.0, %v2639
    %v2641 = vrcp.pop %v2624
    %v2642 = vmul.f32 %v2624, %v2641
    %v2643 = vsub.f32 1.0, %v2642
    %v2644 = vmul.f32 %v2641, %v2643
    %v2645 = vadd.f32 %v2641, %v2644
    %vm2646 = vweird.f32 %v2624
    %vm2647 = vweird.f32 %v2641
    %vm2648 = vmor %vm2646, %vm2647
    %v2649 = vsel %vm2648, %v2641, %v2645
    %v2650 = vand.u32 2147483647, %v2624
    %vm2651 = vcmp.eq.f32.partialorder %v2650, 8.507059e+37
    %v2652 = vand.u32 %v2624, 2147483648
    %v2653 = vor.u32 1.1754944e-38, %v2652
    %v2654 = vsel %vm2651, %v2653, %v2649
    %v2655 = vmul.f32 1.0, %v2654
    %v2656 = vrcp.pop %v2625
    %v2657 = vmul.f32 %v2625, %v2656
    %v2658 = vsub.f32 1.0, %v2657
    %v2659 = vmul.f32 %v2656, %v2658
    %v2660 = vadd.f32 %v2656, %v2659
    %vm2661 = vweird.f32 %v2625
    %vm2662 = vweird.f32 %v2656
    %vm2663 = vmor %vm2661, %vm2662
    %v2664 = vsel %vm2663, %v2656, %v2660
    %v2665 = vand.u32 2147483647, %v2625
    %vm2666 = vcmp.eq.f32.partialorder %v2665, 8.507059e+37
    %v2667 = vand.u32 %v2625, 2147483648
    %v2668 = vor.u32 1.1754944e-38, %v2667
    %v2669 = vsel %vm2666, %v2668, %v2664
    %v2670 = vmul.f32 1.0, %v2669
    %v2671 = vtanh.pop %v2611
    %v2672 = vmul.f32 %v2655, %v2385
    %v2673 = vmul.f32 %v2640, %v2671
    %v2674 = vadd.f32 %v2672, %v2673
    %v2675 = vtanh.pop %v2674
    %v2676 = vmul.f32 %v2670, %v2675
    %2677 = vst [vmem:[#allocation2 + $0x20] sm:$0xff] %v2676
    %2678 = vmatpush.bf16.msra.mxu0 %v809
    %2679 = vmatpush.bf16.msra.mxu0 %v805
    %2680 = vmatpush.bf16.msra.mxu0 %v801
    %2681 = vmatpush.bf16.msra.mxu0 %v797
    %2682 = vmatpush.bf16.msra.mxu0 %v793
    %2683 = vmatpush.bf16.msra.mxu0 %v789
    %2684 = vmatpush.bf16.msra.mxu0 %v785
    %2685 = vmatpush.bf16.msra.mxu0 %v781
    %2686 = vmatmul.bf16.gmra.mxu0 %v2508
    %v2687 = vpop.f32.mrf.mxu0
    %v2688 = vadd.f32 0.0, %v2687
    %v2689 = vpop.f32.mrf.mxu0
    %2690 = vdwg.mxu0
    %2691 = vmatpush.bf16.msra.mxu0 %v810
    %2692 = vmatpush.bf16.msra.mxu0 %v806
    %2693 = vmatpush.bf16.msra.mxu0 %v802
    %2694 = vmatpush.bf16.msra.mxu0 %v798
    %2695 = vmatpush.bf16.msra.mxu0 %v794
    %2696 = vmatpush.bf16.msra.mxu0 %v790
    %2697 = vmatpush.bf16.msra.mxu0 %v786
    %2698 = vmatpush.bf16.msra.mxu0 %v782
    %2699 = vmatmul.bf16.gmra.mxu0 %v2508
    %v2700 = vpop.f32.mrf.mxu0
    %v2701 = vadd.f32 0.0, %v2700
    %v2702 = vpop.f32.mrf.mxu0
    %2703 = vdwg.mxu0
    %2704 = vmatpush.bf16.msra.mxu0 %v811
    %2705 = vmatpush.bf16.msra.mxu0 %v807
    %2706 = vmatpush.bf16.msra.mxu0 %v803
    %2707 = vmatpush.bf16.msra.mxu0 %v799
    %2708 = vmatpush.bf16.msra.mxu0 %v795
    %2709 = vmatpush.bf16.msra.mxu0 %v791
    %2710 = vmatpush.bf16.msra.mxu0 %v787
    %2711 = vmatpush.bf16.msra.mxu0 %v783
    %2712 = vmatmul.bf16.gmra.mxu0 %v2508
    %v2713 = vpop.f32.mrf.mxu0
    %v2714 = vadd.f32 0.0, %v2713
    %v2715 = vpop.f32.mrf.mxu0
    %2716 = vdwg.mxu0
    %2717 = vmatpush.bf16.msra.mxu0 %v812
    %2718 = vmatpush.bf16.msra.mxu0 %v808
    %2719 = vmatpush.bf16.msra.mxu0 %v804
    %2720 = vmatpush.bf16.msra.mxu0 %v800
    %2721 = vmatpush.bf16.msra.mxu0 %v796
    %2722 = vmatpush.bf16.msra.mxu0 %v792
    %2723 = vmatpush.bf16.msra.mxu0 %v788
    %2724 = vmatpush.bf16.msra.mxu0 %v784
    %2725 = vmatmul.bf16.gmra.mxu0 %v2508
    %v2726 = vpop.f32.mrf.mxu0
    %v2727 = vadd.f32 0.0, %v2726
    %v2728 = vpop.f32.mrf.mxu0
    %2729 = vdwg.mxu0
    %v2730 = vadd.f32 %v544, %v2688
    %v2731 = vadd.f32 %v573, %v2701
    %v2732 = vadd.f32 %v602, %v2714
    %v2733 = vadd.f32 %v631, %v2727
    %v2734 = vxor.u32 %v2730, 2147483648
    %v2735 = vxor.u32 %v2731, 2147483648
    %v2736 = vxor.u32 %v2732, 2147483648
    %v2737 = vmul.f32 %v2734, 1.442695
    %v2738 = vpow.pop %v2737
    %v2739 = vmul.f32 %v2735, 1.442695
    %v2740 = vpow.pop %v2739
    %v2741 = vmul.f32 %v2736, 1.442695
    %v2742 = vpow.pop %v2741
    %v2743 = vadd.f32 %v2738, 1.0
    %v2744 = vadd.f32 %v2740, 1.0
    %v2745 = vadd.f32 %v2742, 1.0
    %v2746 = vrcp.pop %v2743
    %v2747 = vmul.f32 %v2743, %v2746
    %v2748 = vsub.f32 1.0, %v2747
    %v2749 = vmul.f32 %v2746, %v2748
    %v2750 = vadd.f32 %v2746, %v2749
    %vm2751 = vweird.f32 %v2743
    %vm2752 = vweird.f32 %v2746
    %vm2753 = vmor %vm2751, %vm2752
    %v2754 = vsel %vm2753, %v2746, %v2750
    %v2755 = vand.u32 2147483647, %v2743
    %vm2756 = vcmp.eq.f32.partialorder %v2755, 8.507059e+37
    %v2757 = vand.u32 %v2743, 2147483648
    %v2758 = vor.u32 1.1754944e-38, %v2757
    %v2759 = vsel %vm2756, %v2758, %v2754
    %v2760 = vmul.f32 1.0, %v2759
    %v2761 = vrcp.pop %v2744
    %v2762 = vmul.f32 %v2744, %v2761
    %v2763 = vsub.f32 1.0, %v2762
    %v2764 = vmul.f32 %v2761, %v2763
    %v2765 = vadd.f32 %v2761, %v2764
    %vm2766 = vweird.f32 %v2744
    %vm2767 = vweird.f32 %v2761
    %vm2768 = vmor %vm2766, %vm2767
    %v2769 = vsel %vm2768, %v2761, %v2765
    %v2770 = vand.u32 2147483647, %v2744
    %vm2771 = vcmp.eq.f32.partialorder %v2770, 8.507059e+37
    %v2772 = vand.u32 %v2744, 2147483648
    %v2773 = vor.u32 1.1754944e-38, %v2772
    %v2774 = vsel %vm2771, %v2773, %v2769
    %v2775 = vmul.f32 1.0, %v2774
    %v2776 = vrcp.pop %v2745
    %v2777 = vmul.f32 %v2745, %v2776
    %v2778 = vsub.f32 1.0, %v2777
    %v2779 = vmul.f32 %v2776, %v2778
    %v2780 = vadd.f32 %v2776, %v2779
    %vm2781 = vweird.f32 %v2745
    %vm2782 = vweird.f32 %v2776
    %vm2783 = vmor %vm2781, %vm2782
    %v2784 = vsel %vm2783, %v2776, %v2780
    %v2785 = vand.u32 2147483647, %v2745
    %vm2786 = vcmp.eq.f32.partialorder %v2785, 8.507059e+37
    %v2787 = vand.u32 %v2745, 2147483648
    %v2788 = vor.u32 1.1754944e-38, %v2787
    %v2789 = vsel %vm2786, %v2788, %v2784
    %v2790 = vmul.f32 1.0, %v2789
    %v2791 = vtanh.pop %v2733
    %v2792 = vmul.f32 %v2775, %v2505
    %v2793 = vmul.f32 %v2760, %v2791
    %v2794 = vadd.f32 %v2792, %v2793
    %v2795 = vtanh.pop %v2794
    %v2796 = vmul.f32 %v2790, %v2795
    %v2797 = vpack.c.bf16 %v2796, %v2796
    %v2798 = vpack.c.bf16 %v2676, %v2676
    %2799 = vmatpush.bf16.msra.mxu0 %v1254
    %2800 = vmatpush.bf16.msra.mxu0 %v1250
    %2801 = vmatpush.bf16.msra.mxu0 %v1246
    %2802 = vmatpush.bf16.msra.mxu0 %v1242
    %2803 = vmatpush.bf16.msra.mxu0 %v1238
    %2804 = vmatpush.bf16.msra.mxu0 %v1234
    %2805 = vmatpush.bf16.msra.mxu0 %v1230
    %2806 = vmatpush.bf16.msra.mxu0 %v1226
    %2807 = vmatmul.bf16.gmra.mxu0 %v2797
    %v2808 = vpop.f32.mrf.mxu0
    %v2809 = vadd.f32 %v640, %v2808
    %v2810 = vpop.f32.mrf.mxu0
    %2811 = vdwg.mxu0
    %2812 = vmatpush.bf16.msra.mxu0 %v1286
    %2813 = vmatpush.bf16.msra.mxu0 %v1282
    %2814 = vmatpush.bf16.msra.mxu0 %v1278
    %2815 = vmatpush.bf16.msra.mxu0 %v1274
    %2816 = vmatpush.bf16.msra.mxu0 %v1270
    %2817 = vmatpush.bf16.msra.mxu0 %v1266
    %2818 = vmatpush.bf16.msra.mxu0 %v1262
    %2819 = vmatpush.bf16.msra.mxu0 %v1258
    %2820 = vmatmul.bf16.gmra.mxu0 %v2798
    %v2821 = vpop.f32.mrf.mxu0
    %v2822 = vadd.f32 %v2809, %v2821
    %v2823 = vpop.f32.mrf.mxu0
    %2824 = vdwg.mxu0
    %2825 = vmatpush.bf16.msra.mxu0 %v1255
    %2826 = vmatpush.bf16.msra.mxu0 %v1251
    %2827 = vmatpush.bf16.msra.mxu0 %v1247
    %2828 = vmatpush.bf16.msra.mxu0 %v1243
    %2829 = vmatpush.bf16.msra.mxu0 %v1239
    %2830 = vmatpush.bf16.msra.mxu0 %v1235
    %2831 = vmatpush.bf16.msra.mxu0 %v1231
    %2832 = vmatpush.bf16.msra.mxu0 %v1227
    %2833 = vmatmul.bf16.gmra.mxu0 %v2797
    %v2834 = vpop.f32.mrf.mxu0
    %v2835 = vadd.f32 %v641, %v2834
    %v2836 = vpop.f32.mrf.mxu0
    %2837 = vdwg.mxu0
    %2838 = vmatpush.bf16.msra.mxu0 %v1287
    %2839 = vmatpush.bf16.msra.mxu0 %v1283
    %2840 = vmatpush.bf16.msra.mxu0 %v1279
    %2841 = vmatpush.bf16.msra.mxu0 %v1275
    %2842 = vmatpush.bf16.msra.mxu0 %v1271
    %2843 = vmatpush.bf16.msra.mxu0 %v1267
    %2844 = vmatpush.bf16.msra.mxu0 %v1263
    %2845 = vmatpush.bf16.msra.mxu0 %v1259
    %2846 = vmatmul.bf16.gmra.mxu0 %v2798
    %v2847 = vpop.f32.mrf.mxu0
    %v2848 = vadd.f32 %v2835, %v2847
    %v2849 = vpop.f32.mrf.mxu0
    %2850 = vdwg.mxu0
    %2851 = vmatpush.bf16.msra.mxu0 %v1256
    %2852 = vmatpush.bf16.msra.mxu0 %v1252
    %2853 = vmatpush.bf16.msra.mxu0 %v1248
    %2854 = vmatpush.bf16.msra.mxu0 %v1244
    %2855 = vmatpush.bf16.msra.mxu0 %v1240
    %2856 = vmatpush.bf16.msra.mxu0 %v1236
    %2857 = vmatpush.bf16.msra.mxu0 %v1232
    %2858 = vmatpush.bf16.msra.mxu0 %v1228
    %2859 = vmatmul.bf16.gmra.mxu0 %v2797
    %v2860 = vpop.f32.mrf.mxu0
    %v2861 = vadd.f32 %v642, %v2860
    %v2862 = vpop.f32.mrf.mxu0
    %2863 = vdwg.mxu0
    %2864 = vmatpush.bf16.msra.mxu0 %v1288
    %2865 = vmatpush.bf16.msra.mxu0 %v1284
    %2866 = vmatpush.bf16.msra.mxu0 %v1280
    %2867 = vmatpush.bf16.msra.mxu0 %v1276
    %2868 = vmatpush.bf16.msra.mxu0 %v1272
    %2869 = vmatpush.bf16.msra.mxu0 %v1268
    %2870 = vmatpush.bf16.msra.mxu0 %v1264
    %2871 = vmatpush.bf16.msra.mxu0 %v1260
    %2872 = vmatmul.bf16.gmra.mxu0 %v2798
    %v2873 = vpop.f32.mrf.mxu0
    %v2874 = vadd.f32 %v2861, %v2873
    %v2875 = vpop.f32.mrf.mxu0
    %2876 = vdwg.mxu0
    %2877 = vmatpush.bf16.msra.mxu0 %v1257
    %2878 = vmatpush.bf16.msra.mxu0 %v1253
    %2879 = vmatpush.bf16.msra.mxu0 %v1249
    %2880 = vmatpush.bf16.msra.mxu0 %v1245
    %2881 = vmatpush.bf16.msra.mxu0 %v1241
    %2882 = vmatpush.bf16.msra.mxu0 %v1237
    %2883 = vmatpush.bf16.msra.mxu0 %v1233
    %2884 = vmatpush.bf16.msra.mxu0 %v1229
    %2885 = vmatmul.bf16.gmra.mxu0 %v2797
    %v2886 = vpop.f32.mrf.mxu0
    %v2887 = vadd.f32 %v643, %v2886
    %v2888 = vpop.f32.mrf.mxu0
    %2889 = vdwg.mxu0
    %2890 = vmatpush.bf16.msra.mxu0 %v1289
    %2891 = vmatpush.bf16.msra.mxu0 %v1285
    %2892 = vmatpush.bf16.msra.mxu0 %v1281
    %2893 = vmatpush.bf16.msra.mxu0 %v1277
    %2894 = vmatpush.bf16.msra.mxu0 %v1273
    %2895 = vmatpush.bf16.msra.mxu0 %v1269
    %2896 = vmatpush.bf16.msra.mxu0 %v1265
    %2897 = vmatpush.bf16.msra.mxu0 %v1261
    %2898 = vmatmul.bf16.gmra.mxu0 %v2798
    %v2899 = vpop.f32.mrf.mxu0
    %v2900 = vadd.f32 %v2887, %v2899
    %v2901 = vpop.f32.mrf.mxu0
    %2902 = vdwg.mxu0
    %v2903 = vxor.u32 %v2822, 2147483648
    %v2904 = vxor.u32 %v2848, 2147483648
    %v2905 = vxor.u32 %v2874, 2147483648
    %v2906 = vmul.f32 %v2903, 1.442695
    %v2907 = vpow.pop %v2906
    %v2908 = vmul.f32 %v2904, 1.442695
    %v2909 = vpow.pop %v2908
    %v2910 = vmul.f32 %v2905, 1.442695
    %v2911 = vpow.pop %v2910
    %v2912 = vadd.f32 %v2907, 1.0
    %v2913 = vadd.f32 %v2909, 1.0
    %v2914 = vadd.f32 %v2911, 1.0
    %v2915 = vrcp.pop %v2912
    %v2916 = vmul.f32 %v2912, %v2915
    %v2917 = vsub.f32 1.0, %v2916
    %v2918 = vmul.f32 %v2915, %v2917
    %v2919 = vadd.f32 %v2915, %v2918
    %vm2920 = vweird.f32 %v2912
    %vm2921 = vweird.f32 %v2915
    %vm2922 = vmor %vm2920, %vm2921
    %v2923 = vsel %vm2922, %v2915, %v2919
    %v2924 = vand.u32 2147483647, %v2912
    %vm2925 = vcmp.eq.f32.partialorder %v2924, 8.507059e+37
    %v2926 = vand.u32 %v2912, 2147483648
    %v2927 = vor.u32 1.1754944e-38, %v2926
    %v2928 = vsel %vm2925, %v2927, %v2923
    %v2929 = vmul.f32 1.0, %v2928
    %v2930 = vrcp.pop %v2913
    %v2931 = vmul.f32 %v2913, %v2930
    %v2932 = vsub.f32 1.0, %v2931
    %v2933 = vmul.f32 %v2930, %v2932
    %v2934 = vadd.f32 %v2930, %v2933
    %vm2935 = vweird.f32 %v2913
    %vm2936 = vweird.f32 %v2930
    %vm2937 = vmor %vm2935, %vm2936
    %v2938 = vsel %vm2937, %v2930, %v2934
    %v2939 = vand.u32 2147483647, %v2913
    %vm2940 = vcmp.eq.f32.partialorder %v2939, 8.507059e+37
    %v2941 = vand.u32 %v2913, 2147483648
    %v2942 = vor.u32 1.1754944e-38, %v2941
    %v2943 = vsel %vm2940, %v2942, %v2938
    %v2944 = vmul.f32 1.0, %v2943
    %v2945 = vrcp.pop %v2914
    %v2946 = vmul.f32 %v2914, %v2945
    %v2947 = vsub.f32 1.0, %v2946
    %v2948 = vmul.f32 %v2945, %v2947
    %v2949 = vadd.f32 %v2945, %v2948
    %vm2950 = vweird.f32 %v2914
    %vm2951 = vweird.f32 %v2945
    %vm2952 = vmor %vm2950, %vm2951
    %v2953 = vsel %vm2952, %v2945, %v2949
    %v2954 = vand.u32 2147483647, %v2914
    %vm2955 = vcmp.eq.f32.partialorder %v2954, 8.507059e+37
    %v2956 = vand.u32 %v2914, 2147483648
    %v2957 = vor.u32 1.1754944e-38, %v2956
    %v2958 = vsel %vm2955, %v2957, %v2953
    %v2959 = vmul.f32 1.0, %v2958
    %v2960 = vtanh.pop %v2900
    %v2961 = vmul.f32 %v2944, %v2674
    %v2962 = vmul.f32 %v2929, %v2960
    %v2963 = vadd.f32 %v2961, %v2962
    %v2964 = vtanh.pop %v2963
    %v2965 = vmul.f32 %v2959, %v2964
    %2966 = vst [vmem:[#allocation2 + $0x28] sm:$0xff] %v2965
    %2967 = vmatpush.bf16.msra.mxu0 %v809
    %2968 = vmatpush.bf16.msra.mxu0 %v805
    %2969 = vmatpush.bf16.msra.mxu0 %v801
    %2970 = vmatpush.bf16.msra.mxu0 %v797
    %2971 = vmatpush.bf16.msra.mxu0 %v793
    %2972 = vmatpush.bf16.msra.mxu0 %v789
    %2973 = vmatpush.bf16.msra.mxu0 %v785
    %2974 = vmatpush.bf16.msra.mxu0 %v781
    %2975 = vmatmul.bf16.gmra.mxu0 %v2797
    %v2976 = vpop.f32.mrf.mxu0
    %v2977 = vadd.f32 0.0, %v2976
    %v2978 = vpop.f32.mrf.mxu0
    %2979 = vdwg.mxu0
    %2980 = vmatpush.bf16.msra.mxu0 %v810
    %2981 = vmatpush.bf16.msra.mxu0 %v806
    %2982 = vmatpush.bf16.msra.mxu0 %v802
    %2983 = vmatpush.bf16.msra.mxu0 %v798
    %2984 = vmatpush.bf16.msra.mxu0 %v794
    %2985 = vmatpush.bf16.msra.mxu0 %v790
    %2986 = vmatpush.bf16.msra.mxu0 %v786
    %2987 = vmatpush.bf16.msra.mxu0 %v782
    %2988 = vmatmul.bf16.gmra.mxu0 %v2797
    %v2989 = vpop.f32.mrf.mxu0
    %v2990 = vadd.f32 0.0, %v2989
    %v2991 = vpop.f32.mrf.mxu0
    %2992 = vdwg.mxu0
    %2993 = vmatpush.bf16.msra.mxu0 %v811
    %2994 = vmatpush.bf16.msra.mxu0 %v807
    %2995 = vmatpush.bf16.msra.mxu0 %v803
    %2996 = vmatpush.bf16.msra.mxu0 %v799
    %2997 = vmatpush.bf16.msra.mxu0 %v795
    %2998 = vmatpush.bf16.msra.mxu0 %v791
    %2999 = vmatpush.bf16.msra.mxu0 %v787
    %3000 = vmatpush.bf16.msra.mxu0 %v783
    %3001 = vmatmul.bf16.gmra.mxu0 %v2797
    %v3002 = vpop.f32.mrf.mxu0
    %v3003 = vadd.f32 0.0, %v3002
    %v3004 = vpop.f32.mrf.mxu0
    %3005 = vdwg.mxu0
    %3006 = vmatpush.bf16.msra.mxu0 %v812
    %3007 = vmatpush.bf16.msra.mxu0 %v808
    %3008 = vmatpush.bf16.msra.mxu0 %v804
    %3009 = vmatpush.bf16.msra.mxu0 %v800
    %3010 = vmatpush.bf16.msra.mxu0 %v796
    %3011 = vmatpush.bf16.msra.mxu0 %v792
    %3012 = vmatpush.bf16.msra.mxu0 %v788
    %3013 = vmatpush.bf16.msra.mxu0 %v784
    %3014 = vmatmul.bf16.gmra.mxu0 %v2797
    %v3015 = vpop.f32.mrf.mxu0
    %v3016 = vadd.f32 0.0, %v3015
    %v3017 = vpop.f32.mrf.mxu0
    %3018 = vdwg.mxu0
    %v3019 = vadd.f32 %v547, %v2977
    %v3020 = vadd.f32 %v576, %v2990
    %v3021 = vadd.f32 %v605, %v3003
    %v3022 = vadd.f32 %v634, %v3016
    %v3023 = vxor.u32 %v3019, 2147483648
    %v3024 = vxor.u32 %v3020, 2147483648
    %v3025 = vxor.u32 %v3021, 2147483648
    %v3026 = vmul.f32 %v3023, 1.442695
    %v3027 = vpow.pop %v3026
    %v3028 = vmul.f32 %v3024, 1.442695
    %v3029 = vpow.pop %v3028
    %v3030 = vmul.f32 %v3025, 1.442695
    %v3031 = vpow.pop %v3030
    %v3032 = vadd.f32 %v3027, 1.0
    %v3033 = vadd.f32 %v3029, 1.0
    %v3034 = vadd.f32 %v3031, 1.0
    %v3035 = vrcp.pop %v3032
    %v3036 = vmul.f32 %v3032, %v3035
    %v3037 = vsub.f32 1.0, %v3036
    %v3038 = vmul.f32 %v3035, %v3037
    %v3039 = vadd.f32 %v3035, %v3038
    %vm3040 = vweird.f32 %v3032
    %vm3041 = vweird.f32 %v3035
    %vm3042 = vmor %vm3040, %vm3041
    %v3043 = vsel %vm3042, %v3035, %v3039
    %v3044 = vand.u32 2147483647, %v3032
    %vm3045 = vcmp.eq.f32.partialorder %v3044, 8.507059e+37
    %v3046 = vand.u32 %v3032, 2147483648
    %v3047 = vor.u32 1.1754944e-38, %v3046
    %v3048 = vsel %vm3045, %v3047, %v3043
    %v3049 = vmul.f32 1.0, %v3048
    %v3050 = vrcp.pop %v3033
    %v3051 = vmul.f32 %v3033, %v3050
    %v3052 = vsub.f32 1.0, %v3051
    %v3053 = vmul.f32 %v3050, %v3052
    %v3054 = vadd.f32 %v3050, %v3053
    %vm3055 = vweird.f32 %v3033
    %vm3056 = vweird.f32 %v3050
    %vm3057 = vmor %vm3055, %vm3056
    %v3058 = vsel %vm3057, %v3050, %v3054
    %v3059 = vand.u32 2147483647, %v3033
    %vm3060 = vcmp.eq.f32.partialorder %v3059, 8.507059e+37
    %v3061 = vand.u32 %v3033, 2147483648
    %v3062 = vor.u32 1.1754944e-38, %v3061
    %v3063 = vsel %vm3060, %v3062, %v3058
    %v3064 = vmul.f32 1.0, %v3063
    %v3065 = vrcp.pop %v3034
    %v3066 = vmul.f32 %v3034, %v3065
    %v3067 = vsub.f32 1.0, %v3066
    %v3068 = vmul.f32 %v3065, %v3067
    %v3069 = vadd.f32 %v3065, %v3068
    %vm3070 = vweird.f32 %v3034
    %vm3071 = vweird.f32 %v3065
    %vm3072 = vmor %vm3070, %vm3071
    %v3073 = vsel %vm3072, %v3065, %v3069
    %v3074 = vand.u32 2147483647, %v3034
    %vm3075 = vcmp.eq.f32.partialorder %v3074, 8.507059e+37
    %v3076 = vand.u32 %v3034, 2147483648
    %v3077 = vor.u32 1.1754944e-38, %v3076
    %v3078 = vsel %vm3075, %v3077, %v3073
    %v3079 = vmul.f32 1.0, %v3078
    %v3080 = vtanh.pop %v3022
    %v3081 = vmul.f32 %v3064, %v2794
    %v3082 = vmul.f32 %v3049, %v3080
    %v3083 = vadd.f32 %v3081, %v3082
    %v3084 = vtanh.pop %v3083
    %v3085 = vmul.f32 %v3079, %v3084
    %v3086 = vpack.c.bf16 %v3085, %v3085
    %v3087 = vpack.c.bf16 %v2965, %v2965
    %3088 = vmatpush.bf16.msra.mxu0 %v1254
    %3089 = vmatpush.bf16.msra.mxu0 %v1250
    %3090 = vmatpush.bf16.msra.mxu0 %v1246
    %3091 = vmatpush.bf16.msra.mxu0 %v1242
    %3092 = vmatpush.bf16.msra.mxu0 %v1238
    %3093 = vmatpush.bf16.msra.mxu0 %v1234
    %3094 = vmatpush.bf16.msra.mxu0 %v1230
    %3095 = vmatpush.bf16.msra.mxu0 %v1226
    %3096 = vmatmul.bf16.gmra.mxu0 %v3086
    %v3097 = vpop.f32.mrf.mxu0
    %v3098 = vadd.f32 %v640, %v3097
    %v3099 = vpop.f32.mrf.mxu0
    %3100 = vdwg.mxu0
    %3101 = vmatpush.bf16.msra.mxu0 %v1286
    %3102 = vmatpush.bf16.msra.mxu0 %v1282
    %3103 = vmatpush.bf16.msra.mxu0 %v1278
    %3104 = vmatpush.bf16.msra.mxu0 %v1274
    %3105 = vmatpush.bf16.msra.mxu0 %v1270
    %3106 = vmatpush.bf16.msra.mxu0 %v1266
    %3107 = vmatpush.bf16.msra.mxu0 %v1262
    %3108 = vmatpush.bf16.msra.mxu0 %v1258
    %3109 = vmatmul.bf16.gmra.mxu0 %v3087
    %v3110 = vpop.f32.mrf.mxu0
    %v3111 = vadd.f32 %v3098, %v3110
    %v3112 = vpop.f32.mrf.mxu0
    %3113 = vdwg.mxu0
    %3114 = vmatpush.bf16.msra.mxu0 %v1255
    %3115 = vmatpush.bf16.msra.mxu0 %v1251
    %3116 = vmatpush.bf16.msra.mxu0 %v1247
    %3117 = vmatpush.bf16.msra.mxu0 %v1243
    %3118 = vmatpush.bf16.msra.mxu0 %v1239
    %3119 = vmatpush.bf16.msra.mxu0 %v1235
    %3120 = vmatpush.bf16.msra.mxu0 %v1231
    %3121 = vmatpush.bf16.msra.mxu0 %v1227
    %3122 = vmatmul.bf16.gmra.mxu0 %v3086
    %v3123 = vpop.f32.mrf.mxu0
    %v3124 = vadd.f32 %v641, %v3123
    %v3125 = vpop.f32.mrf.mxu0
    %3126 = vdwg.mxu0
    %3127 = vmatpush.bf16.msra.mxu0 %v1287
    %3128 = vmatpush.bf16.msra.mxu0 %v1283
    %3129 = vmatpush.bf16.msra.mxu0 %v1279
    %3130 = vmatpush.bf16.msra.mxu0 %v1275
    %3131 = vmatpush.bf16.msra.mxu0 %v1271
    %3132 = vmatpush.bf16.msra.mxu0 %v1267
    %3133 = vmatpush.bf16.msra.mxu0 %v1263
    %3134 = vmatpush.bf16.msra.mxu0 %v1259
    %3135 = vmatmul.bf16.gmra.mxu0 %v3087
    %v3136 = vpop.f32.mrf.mxu0
    %v3137 = vadd.f32 %v3124, %v3136
    %v3138 = vpop.f32.mrf.mxu0
    %3139 = vdwg.mxu0
    %3140 = vmatpush.bf16.msra.mxu0 %v1256
    %3141 = vmatpush.bf16.msra.mxu0 %v1252
    %3142 = vmatpush.bf16.msra.mxu0 %v1248
    %3143 = vmatpush.bf16.msra.mxu0 %v1244
    %3144 = vmatpush.bf16.msra.mxu0 %v1240
    %3145 = vmatpush.bf16.msra.mxu0 %v1236
    %3146 = vmatpush.bf16.msra.mxu0 %v1232
    %3147 = vmatpush.bf16.msra.mxu0 %v1228
    %3148 = vmatmul.bf16.gmra.mxu0 %v3086
    %v3149 = vpop.f32.mrf.mxu0
    %v3150 = vadd.f32 %v642, %v3149
    %v3151 = vpop.f32.mrf.mxu0
    %3152 = vdwg.mxu0
    %3153 = vmatpush.bf16.msra.mxu0 %v1288
    %3154 = vmatpush.bf16.msra.mxu0 %v1284
    %3155 = vmatpush.bf16.msra.mxu0 %v1280
    %3156 = vmatpush.bf16.msra.mxu0 %v1276
    %3157 = vmatpush.bf16.msra.mxu0 %v1272
    %3158 = vmatpush.bf16.msra.mxu0 %v1268
    %3159 = vmatpush.bf16.msra.mxu0 %v1264
    %3160 = vmatpush.bf16.msra.mxu0 %v1260
    %3161 = vmatmul.bf16.gmra.mxu0 %v3087
    %v3162 = vpop.f32.mrf.mxu0
    %v3163 = vadd.f32 %v3150, %v3162
    %v3164 = vpop.f32.mrf.mxu0
    %3165 = vdwg.mxu0
    %3166 = vmatpush.bf16.msra.mxu0 %v1257
    %3167 = vmatpush.bf16.msra.mxu0 %v1253
    %3168 = vmatpush.bf16.msra.mxu0 %v1249
    %3169 = vmatpush.bf16.msra.mxu0 %v1245
    %3170 = vmatpush.bf16.msra.mxu0 %v1241
    %3171 = vmatpush.bf16.msra.mxu0 %v1237
    %3172 = vmatpush.bf16.msra.mxu0 %v1233
    %3173 = vmatpush.bf16.msra.mxu0 %v1229
    %3174 = vmatmul.bf16.gmra.mxu0 %v3086
    %v3175 = vpop.f32.mrf.mxu0
    %v3176 = vadd.f32 %v643, %v3175
    %v3177 = vpop.f32.mrf.mxu0
    %3178 = vdwg.mxu0
    %3179 = vmatpush.bf16.msra.mxu0 %v1289
    %3180 = vmatpush.bf16.msra.mxu0 %v1285
    %3181 = vmatpush.bf16.msra.mxu0 %v1281
    %3182 = vmatpush.bf16.msra.mxu0 %v1277
    %3183 = vmatpush.bf16.msra.mxu0 %v1273
    %3184 = vmatpush.bf16.msra.mxu0 %v1269
    %3185 = vmatpush.bf16.msra.mxu0 %v1265
    %3186 = vmatpush.bf16.msra.mxu0 %v1261
    %3187 = vmatmul.bf16.gmra.mxu0 %v3087
    %v3188 = vpop.f32.mrf.mxu0
    %v3189 = vadd.f32 %v3176, %v3188
    %v3190 = vpop.f32.mrf.mxu0
    %3191 = vdwg.mxu0
    %v3192 = vxor.u32 %v3111, 2147483648
    %v3193 = vxor.u32 %v3137, 2147483648
    %v3194 = vxor.u32 %v3163, 2147483648
    %v3195 = vmul.f32 %v3192, 1.442695
    %v3196 = vpow.pop %v3195
    %v3197 = vmul.f32 %v3193, 1.442695
    %v3198 = vpow.pop %v3197
    %v3199 = vmul.f32 %v3194, 1.442695
    %v3200 = vpow.pop %v3199
    %v3201 = vadd.f32 %v3196, 1.0
    %v3202 = vadd.f32 %v3198, 1.0
    %v3203 = vadd.f32 %v3200, 1.0
    %v3204 = vrcp.pop %v3201
    %v3205 = vmul.f32 %v3201, %v3204
    %v3206 = vsub.f32 1.0, %v3205
    %v3207 = vmul.f32 %v3204, %v3206
    %v3208 = vadd.f32 %v3204, %v3207
    %vm3209 = vweird.f32 %v3201
    %vm3210 = vweird.f32 %v3204
    %vm3211 = vmor %vm3209, %vm3210
    %v3212 = vsel %vm3211, %v3204, %v3208
    %v3213 = vand.u32 2147483647, %v3201
    %vm3214 = vcmp.eq.f32.partialorder %v3213, 8.507059e+37
    %v3215 = vand.u32 %v3201, 2147483648
    %v3216 = vor.u32 1.1754944e-38, %v3215
    %v3217 = vsel %vm3214, %v3216, %v3212
    %v3218 = vmul.f32 1.0, %v3217
    %v3219 = vrcp.pop %v3202
    %v3220 = vmul.f32 %v3202, %v3219
    %v3221 = vsub.f32 1.0, %v3220
    %v3222 = vmul.f32 %v3219, %v3221
    %v3223 = vadd.f32 %v3219, %v3222
    %vm3224 = vweird.f32 %v3202
    %vm3225 = vweird.f32 %v3219
    %vm3226 = vmor %vm3224, %vm3225
    %v3227 = vsel %vm3226, %v3219, %v3223
    %v3228 = vand.u32 2147483647, %v3202
    %vm3229 = vcmp.eq.f32.partialorder %v3228, 8.507059e+37
    %v3230 = vand.u32 %v3202, 2147483648
    %v3231 = vor.u32 1.1754944e-38, %v3230
    %v3232 = vsel %vm3229, %v3231, %v3227
    %v3233 = vmul.f32 1.0, %v3232
    %v3234 = vrcp.pop %v3203
    %v3235 = vmul.f32 %v3203, %v3234
    %v3236 = vsub.f32 1.0, %v3235
    %v3237 = vmul.f32 %v3234, %v3236
    %v3238 = vadd.f32 %v3234, %v3237
    %vm3239 = vweird.f32 %v3203
    %vm3240 = vweird.f32 %v3234
    %vm3241 = vmor %vm3239, %vm3240
    %v3242 = vsel %vm3241, %v3234, %v3238
    %v3243 = vand.u32 2147483647, %v3203
    %vm3244 = vcmp.eq.f32.partialorder %v3243, 8.507059e+37
    %v3245 = vand.u32 %v3203, 2147483648
    %v3246 = vor.u32 1.1754944e-38, %v3245
    %v3247 = vsel %vm3244, %v3246, %v3242
    %v3248 = vmul.f32 1.0, %v3247
    %v3249 = vtanh.pop %v3189
    %v3250 = vmul.f32 %v3233, %v2963
    %v3251 = vmul.f32 %v3218, %v3249
    %v3252 = vadd.f32 %v3250, %v3251
    %v3253 = vtanh.pop %v3252
    %v3254 = vmul.f32 %v3248, %v3253
    %3255 = vst [vmem:[#allocation2 + $0x30] sm:$0xff] %v3254
    %3256 = vmatpush.bf16.msra.mxu0 %v809
    %3257 = vmatpush.bf16.msra.mxu0 %v805
    %3258 = vmatpush.bf16.msra.mxu0 %v801
    %3259 = vmatpush.bf16.msra.mxu0 %v797
    %3260 = vmatpush.bf16.msra.mxu0 %v793
    %3261 = vmatpush.bf16.msra.mxu0 %v789
    %3262 = vmatpush.bf16.msra.mxu0 %v785
    %3263 = vmatpush.bf16.msra.mxu0 %v781
    %3264 = vmatmul.bf16.gmra.mxu0 %v3086
    %v3265 = vpop.f32.mrf.mxu0
    %v3266 = vadd.f32 0.0, %v3265
    %v3267 = vpop.f32.mrf.mxu0
    %3268 = vdwg.mxu0
    %3269 = vmatpush.bf16.msra.mxu0 %v810
    %3270 = vmatpush.bf16.msra.mxu0 %v806
    %3271 = vmatpush.bf16.msra.mxu0 %v802
    %3272 = vmatpush.bf16.msra.mxu0 %v798
    %3273 = vmatpush.bf16.msra.mxu0 %v794
    %3274 = vmatpush.bf16.msra.mxu0 %v790
    %3275 = vmatpush.bf16.msra.mxu0 %v786
    %3276 = vmatpush.bf16.msra.mxu0 %v782
    %3277 = vmatmul.bf16.gmra.mxu0 %v3086
    %v3278 = vpop.f32.mrf.mxu0
    %v3279 = vadd.f32 0.0, %v3278
    %v3280 = vpop.f32.mrf.mxu0
    %3281 = vdwg.mxu0
    %3282 = vmatpush.bf16.msra.mxu0 %v811
    %3283 = vmatpush.bf16.msra.mxu0 %v807
    %3284 = vmatpush.bf16.msra.mxu0 %v803
    %3285 = vmatpush.bf16.msra.mxu0 %v799
    %3286 = vmatpush.bf16.msra.mxu0 %v795
    %3287 = vmatpush.bf16.msra.mxu0 %v791
    %3288 = vmatpush.bf16.msra.mxu0 %v787
    %3289 = vmatpush.bf16.msra.mxu0 %v783
    %3290 = vmatmul.bf16.gmra.mxu0 %v3086
    %v3291 = vpop.f32.mrf.mxu0
    %v3292 = vadd.f32 0.0, %v3291
    %v3293 = vpop.f32.mrf.mxu0
    %3294 = vdwg.mxu0
    %3295 = vmatpush.bf16.msra.mxu0 %v812
    %3296 = vmatpush.bf16.msra.mxu0 %v808
    %3297 = vmatpush.bf16.msra.mxu0 %v804
    %3298 = vmatpush.bf16.msra.mxu0 %v800
    %3299 = vmatpush.bf16.msra.mxu0 %v796
    %3300 = vmatpush.bf16.msra.mxu0 %v792
    %3301 = vmatpush.bf16.msra.mxu0 %v788
    %3302 = vmatpush.bf16.msra.mxu0 %v784
    %3303 = vmatmul.bf16.gmra.mxu0 %v3086
    %v3304 = vpop.f32.mrf.mxu0
    %v3305 = vadd.f32 0.0, %v3304
    %v3306 = vpop.f32.mrf.mxu0
    %3307 = vdwg.mxu0
    %v3308 = vadd.f32 %v549, %v3266
    %v3309 = vadd.f32 %v578, %v3279
    %v3310 = vadd.f32 %v607, %v3292
    %v3311 = vadd.f32 %v636, %v3305
    %v3312 = vxor.u32 %v3308, 2147483648
    %v3313 = vxor.u32 %v3309, 2147483648
    %v3314 = vxor.u32 %v3310, 2147483648
    %v3315 = vmul.f32 %v3312, 1.442695
    %v3316 = vpow.pop %v3315
    %v3317 = vmul.f32 %v3313, 1.442695
    %v3318 = vpow.pop %v3317
    %v3319 = vmul.f32 %v3314, 1.442695
    %v3320 = vpow.pop %v3319
    %v3321 = vadd.f32 %v3316, 1.0
    %v3322 = vadd.f32 %v3318, 1.0
    %v3323 = vadd.f32 %v3320, 1.0
    %v3324 = vrcp.pop %v3321
    %v3325 = vmul.f32 %v3321, %v3324
    %v3326 = vsub.f32 1.0, %v3325
    %v3327 = vmul.f32 %v3324, %v3326
    %v3328 = vadd.f32 %v3324, %v3327
    %vm3329 = vweird.f32 %v3321
    %vm3330 = vweird.f32 %v3324
    %vm3331 = vmor %vm3329, %vm3330
    %v3332 = vsel %vm3331, %v3324, %v3328
    %v3333 = vand.u32 2147483647, %v3321
    %vm3334 = vcmp.eq.f32.partialorder %v3333, 8.507059e+37
    %v3335 = vand.u32 %v3321, 2147483648
    %v3336 = vor.u32 1.1754944e-38, %v3335
    %v3337 = vsel %vm3334, %v3336, %v3332
    %v3338 = vmul.f32 1.0, %v3337
    %v3339 = vrcp.pop %v3322
    %v3340 = vmul.f32 %v3322, %v3339
    %v3341 = vsub.f32 1.0, %v3340
    %v3342 = vmul.f32 %v3339, %v3341
    %v3343 = vadd.f32 %v3339, %v3342
    %vm3344 = vweird.f32 %v3322
    %vm3345 = vweird.f32 %v3339
    %vm3346 = vmor %vm3344, %vm3345
    %v3347 = vsel %vm3346, %v3339, %v3343
    %v3348 = vand.u32 2147483647, %v3322
    %vm3349 = vcmp.eq.f32.partialorder %v3348, 8.507059e+37
    %v3350 = vand.u32 %v3322, 2147483648
    %v3351 = vor.u32 1.1754944e-38, %v3350
    %v3352 = vsel %vm3349, %v3351, %v3347
    %v3353 = vmul.f32 1.0, %v3352
    %v3354 = vrcp.pop %v3323
    %v3355 = vmul.f32 %v3323, %v3354
    %v3356 = vsub.f32 1.0, %v3355
    %v3357 = vmul.f32 %v3354, %v3356
    %v3358 = vadd.f32 %v3354, %v3357
    %vm3359 = vweird.f32 %v3323
    %vm3360 = vweird.f32 %v3354
    %vm3361 = vmor %vm3359, %vm3360
    %v3362 = vsel %vm3361, %v3354, %v3358
    %v3363 = vand.u32 2147483647, %v3323
    %vm3364 = vcmp.eq.f32.partialorder %v3363, 8.507059e+37
    %v3365 = vand.u32 %v3323, 2147483648
    %v3366 = vor.u32 1.1754944e-38, %v3365
    %v3367 = vsel %vm3364, %v3366, %v3362
    %v3368 = vmul.f32 1.0, %v3367
    %v3369 = vtanh.pop %v3311
    %v3370 = vmul.f32 %v3353, %v3083
    %v3371 = vmul.f32 %v3338, %v3369
    %v3372 = vadd.f32 %v3370, %v3371
    %v3373 = vtanh.pop %v3372
    %v3374 = vmul.f32 %v3368, %v3373
    %v3375 = vpack.c.bf16 %v3374, %v3374
    %v3376 = vpack.c.bf16 %v3254, %v3254
    %3377 = vmatpush.bf16.msra.mxu0 %v1254
    %3378 = vmatpush.bf16.msra.mxu0 %v1250
    %3379 = vmatpush.bf16.msra.mxu0 %v1246
    %3380 = vmatpush.bf16.msra.mxu0 %v1242
    %3381 = vmatpush.bf16.msra.mxu0 %v1238
    %3382 = vmatpush.bf16.msra.mxu0 %v1234
    %3383 = vmatpush.bf16.msra.mxu0 %v1230
    %3384 = vmatpush.bf16.msra.mxu0 %v1226
    %3385 = vmatmul.bf16.gmra.mxu0 %v3375
    %v3386 = vpop.f32.mrf.mxu0
    %v3387 = vadd.f32 %v640, %v3386
    %v3388 = vpop.f32.mrf.mxu0
    %3389 = vdwg.mxu0
    %3390 = vmatpush.bf16.msra.mxu0 %v1286
    %3391 = vmatpush.bf16.msra.mxu0 %v1282
    %3392 = vmatpush.bf16.msra.mxu0 %v1278
    %3393 = vmatpush.bf16.msra.mxu0 %v1274
    %3394 = vmatpush.bf16.msra.mxu0 %v1270
    %3395 = vmatpush.bf16.msra.mxu0 %v1266
    %3396 = vmatpush.bf16.msra.mxu0 %v1262
    %3397 = vmatpush.bf16.msra.mxu0 %v1258
    %3398 = vmatmul.bf16.gmra.mxu0 %v3376
    %v3399 = vpop.f32.mrf.mxu0
    %v3400 = vadd.f32 %v3387, %v3399
    %v3401 = vpop.f32.mrf.mxu0
    %3402 = vdwg.mxu0
    %3403 = vmatpush.bf16.msra.mxu0 %v1255
    %3404 = vmatpush.bf16.msra.mxu0 %v1251
    %3405 = vmatpush.bf16.msra.mxu0 %v1247
    %3406 = vmatpush.bf16.msra.mxu0 %v1243
    %3407 = vmatpush.bf16.msra.mxu0 %v1239
    %3408 = vmatpush.bf16.msra.mxu0 %v1235
    %3409 = vmatpush.bf16.msra.mxu0 %v1231
    %3410 = vmatpush.bf16.msra.mxu0 %v1227
    %3411 = vmatmul.bf16.gmra.mxu0 %v3375
    %v3412 = vpop.f32.mrf.mxu0
    %v3413 = vadd.f32 %v641, %v3412
    %v3414 = vpop.f32.mrf.mxu0
    %3415 = vdwg.mxu0
    %3416 = vmatpush.bf16.msra.mxu0 %v1287
    %3417 = vmatpush.bf16.msra.mxu0 %v1283
    %3418 = vmatpush.bf16.msra.mxu0 %v1279
    %3419 = vmatpush.bf16.msra.mxu0 %v1275
    %3420 = vmatpush.bf16.msra.mxu0 %v1271
    %3421 = vmatpush.bf16.msra.mxu0 %v1267
    %3422 = vmatpush.bf16.msra.mxu0 %v1263
    %3423 = vmatpush.bf16.msra.mxu0 %v1259
    %3424 = vmatmul.bf16.gmra.mxu0 %v3376
    %v3425 = vpop.f32.mrf.mxu0
    %v3426 = vadd.f32 %v3413, %v3425
    %v3427 = vpop.f32.mrf.mxu0
    %3428 = vdwg.mxu0
    %3429 = vmatpush.bf16.msra.mxu0 %v1256
    %3430 = vmatpush.bf16.msra.mxu0 %v1252
    %3431 = vmatpush.bf16.msra.mxu0 %v1248
    %3432 = vmatpush.bf16.msra.mxu0 %v1244
    %3433 = vmatpush.bf16.msra.mxu0 %v1240
    %3434 = vmatpush.bf16.msra.mxu0 %v1236
    %3435 = vmatpush.bf16.msra.mxu0 %v1232
    %3436 = vmatpush.bf16.msra.mxu0 %v1228
    %3437 = vmatmul.bf16.gmra.mxu0 %v3375
    %v3438 = vpop.f32.mrf.mxu0
    %v3439 = vadd.f32 %v642, %v3438
    %v3440 = vpop.f32.mrf.mxu0
    %3441 = vdwg.mxu0
    %3442 = vmatpush.bf16.msra.mxu0 %v1288
    %3443 = vmatpush.bf16.msra.mxu0 %v1284
    %3444 = vmatpush.bf16.msra.mxu0 %v1280
    %3445 = vmatpush.bf16.msra.mxu0 %v1276
    %3446 = vmatpush.bf16.msra.mxu0 %v1272
    %3447 = vmatpush.bf16.msra.mxu0 %v1268
    %3448 = vmatpush.bf16.msra.mxu0 %v1264
    %3449 = vmatpush.bf16.msra.mxu0 %v1260
    %3450 = vmatmul.bf16.gmra.mxu0 %v3376
    %v3451 = vpop.f32.mrf.mxu0
    %v3452 = vadd.f32 %v3439, %v3451
    %v3453 = vpop.f32.mrf.mxu0
    %3454 = vdwg.mxu0
    %3455 = vmatpush.bf16.msra.mxu0 %v1257
    %3456 = vmatpush.bf16.msra.mxu0 %v1253
    %3457 = vmatpush.bf16.msra.mxu0 %v1249
    %3458 = vmatpush.bf16.msra.mxu0 %v1245
    %3459 = vmatpush.bf16.msra.mxu0 %v1241
    %3460 = vmatpush.bf16.msra.mxu0 %v1237
    %3461 = vmatpush.bf16.msra.mxu0 %v1233
    %3462 = vmatpush.bf16.msra.mxu0 %v1229
    %3463 = vmatmul.bf16.gmra.mxu0 %v3375
    %v3464 = vpop.f32.mrf.mxu0
    %v3465 = vadd.f32 %v643, %v3464
    %v3466 = vpop.f32.mrf.mxu0
    %3467 = vdwg.mxu0
    %3468 = vmatpush.bf16.msra.mxu0 %v1289
    %3469 = vmatpush.bf16.msra.mxu0 %v1285
    %3470 = vmatpush.bf16.msra.mxu0 %v1281
    %3471 = vmatpush.bf16.msra.mxu0 %v1277
    %3472 = vmatpush.bf16.msra.mxu0 %v1273
    %3473 = vmatpush.bf16.msra.mxu0 %v1269
    %3474 = vmatpush.bf16.msra.mxu0 %v1265
    %3475 = vmatpush.bf16.msra.mxu0 %v1261
    %3476 = vmatmul.bf16.gmra.mxu0 %v3376
    %v3477 = vpop.f32.mrf.mxu0
    %v3478 = vadd.f32 %v3465, %v3477
    %v3479 = vpop.f32.mrf.mxu0
    %3480 = vdwg.mxu0
    %v3481 = vxor.u32 %v3400, 2147483648
    %v3482 = vxor.u32 %v3426, 2147483648
    %v3483 = vxor.u32 %v3452, 2147483648
    %v3484 = vmul.f32 %v3481, 1.442695
    %v3485 = vpow.pop %v3484
    %v3486 = vmul.f32 %v3482, 1.442695
    %v3487 = vpow.pop %v3486
    %v3488 = vmul.f32 %v3483, 1.442695
    %v3489 = vpow.pop %v3488
    %v3490 = vadd.f32 %v3485, 1.0
    %v3491 = vadd.f32 %v3487, 1.0
    %v3492 = vadd.f32 %v3489, 1.0
    %v3493 = vrcp.pop %v3490
    %v3494 = vmul.f32 %v3490, %v3493
    %v3495 = vsub.f32 1.0, %v3494
    %v3496 = vmul.f32 %v3493, %v3495
    %v3497 = vadd.f32 %v3493, %v3496
    %vm3498 = vweird.f32 %v3490
    %vm3499 = vweird.f32 %v3493
    %vm3500 = vmor %vm3498, %vm3499
    %v3501 = vsel %vm3500, %v3493, %v3497
    %v3502 = vand.u32 2147483647, %v3490
    %vm3503 = vcmp.eq.f32.partialorder %v3502, 8.507059e+37
    %v3504 = vand.u32 %v3490, 2147483648
    %v3505 = vor.u32 1.1754944e-38, %v3504
    %v3506 = vsel %vm3503, %v3505, %v3501
    %v3507 = vmul.f32 1.0, %v3506
    %v3508 = vrcp.pop %v3491
    %v3509 = vmul.f32 %v3491, %v3508
    %v3510 = vsub.f32 1.0, %v3509
    %v3511 = vmul.f32 %v3508, %v3510
    %v3512 = vadd.f32 %v3508, %v3511
    %vm3513 = vweird.f32 %v3491
    %vm3514 = vweird.f32 %v3508
    %vm3515 = vmor %vm3513, %vm3514
    %v3516 = vsel %vm3515, %v3508, %v3512
    %v3517 = vand.u32 2147483647, %v3491
    %vm3518 = vcmp.eq.f32.partialorder %v3517, 8.507059e+37
    %v3519 = vand.u32 %v3491, 2147483648
    %v3520 = vor.u32 1.1754944e-38, %v3519
    %v3521 = vsel %vm3518, %v3520, %v3516
    %v3522 = vmul.f32 1.0, %v3521
    %v3523 = vrcp.pop %v3492
    %v3524 = vmul.f32 %v3492, %v3523
    %v3525 = vsub.f32 1.0, %v3524
    %v3526 = vmul.f32 %v3523, %v3525
    %v3527 = vadd.f32 %v3523, %v3526
    %vm3528 = vweird.f32 %v3492
    %vm3529 = vweird.f32 %v3523
    %vm3530 = vmor %vm3528, %vm3529
    %v3531 = vsel %vm3530, %v3523, %v3527
    %v3532 = vand.u32 2147483647, %v3492
    %vm3533 = vcmp.eq.f32.partialorder %v3532, 8.507059e+37
    %v3534 = vand.u32 %v3492, 2147483648
    %v3535 = vor.u32 1.1754944e-38, %v3534
    %v3536 = vsel %vm3533, %v3535, %v3531
    %v3537 = vmul.f32 1.0, %v3536
    %v3538 = vtanh.pop %v3478
    %v3539 = vmul.f32 %v3522, %v3252
    %v3540 = vmul.f32 %v3507, %v3538
    %v3541 = vadd.f32 %v3539, %v3540
    %v3542 = vtanh.pop %v3541
    %v3543 = vmul.f32 %v3537, %v3542
    %3544 = vst [vmem:[#allocation2 + $0x38] sm:$0xff] %v3543
    %s3545 = smul.u32 %s648, 1
    %s3546 = sshll.u32 %s3545, 4
    %3547 = dma.done %s110, %s3546
    %v3548 = vld [vmem:[#allocation2] sm:$0xff]
    %v3549 = vld [vmem:[#allocation2 + $0x8] sm:$0xff]
    %v3550 = vld [vmem:[#allocation2 + $0x10] sm:$0xff]
    %v3551 = vld [vmem:[#allocation2 + $0x18] sm:$0xff]
    %v3552 = vld [vmem:[#allocation2 + $0x20] sm:$0xff]
    %v3553 = vld [vmem:[#allocation2 + $0x28] sm:$0xff]
    %v3554 = vld [vmem:[#allocation2 + $0x30] sm:$0xff]
    %v3555 = vld [vmem:[#allocation2 + $0x38] sm:$0xff]
    %v3556 = vpack.c.bf16 %v3549, %v3548
    %v3557 = vpack.c.bf16 %v3551, %v3550
    %v3558 = vpack.c.bf16 %v3553, %v3552
    %v3559 = vpack.c.bf16 %v3555, %v3554
    %v3560 = vld [vmem:[#allocation5] sm:$0xf]
    %v3561 = vld [vmem:[#allocation5 + $0x4] sm:$0xf]
    %v3562 = vld [vmem:[#allocation5 + $0x8] sm:$0xf]
    %v3563 = vld [vmem:[#allocation5 + $0xc] sm:$0xf]
    %v3564 = vld [vmem:[#allocation5 + $0x10] sm:$0xf]
    %v3565 = vld [vmem:[#allocation5 + $0x14] sm:$0xf]
    %v3566 = vld [vmem:[#allocation5 + $0x18] sm:$0xf]
    %v3567 = vld [vmem:[#allocation5 + $0x1c] sm:$0xf]
    %v3568 = vld [vmem:[#allocation5 + $0x20] sm:$0xf]
    %v3569 = vld [vmem:[#allocation5 + $0x24] sm:$0xf]
    %v3570 = vld [vmem:[#allocation5 + $0x28] sm:$0xf]
    %v3571 = vld [vmem:[#allocation5 + $0x2c] sm:$0xf]
    %v3572 = vld [vmem:[#allocation5 + $0x30] sm:$0xf]
    %v3573 = vld [vmem:[#allocation5 + $0x34] sm:$0xf]
    %v3574 = vld [vmem:[#allocation5 + $0x38] sm:$0xf]
    %v3575 = vld [vmem:[#allocation5 + $0x3c] sm:$0xf]
    %v3576 = vld [vmem:[%s7] sm:$0x1]
    %v3578 = vperm.slane %v3576, 0
    %v3596 = vunpack.c.l.b16 %v3560
    %v3597 = vunpack.c.l.b16 %v3561
    %v3598 = vunpack.c.l.b16 %v3562
    %v3599 = vunpack.c.l.b16 %v3563
    %v3600 = vunpack.c.l.b16 %v3564
    %v3601 = vunpack.c.l.b16 %v3565
    %v3602 = vunpack.c.l.b16 %v3566
    %v3603 = vunpack.c.l.b16 %v3567
    %v3604 = vunpack.c.l.b16 %v3568
    %v3605 = vunpack.c.l.b16 %v3569
    %v3606 = vunpack.c.l.b16 %v3570
    %v3607 = vunpack.c.l.b16 %v3571
    %v3608 = vunpack.c.l.b16 %v3572
    %v3609 = vunpack.c.l.b16 %v3573
    %v3610 = vunpack.c.l.b16 %v3574
    %v3611 = vunpack.c.l.b16 %v3575
    %v3612 = vpack.c.b16 %v3597, %v3596
    %v3613 = vpack.c.b16 %v3599, %v3598
    %v3614 = vpack.c.b16 %v3601, %v3600
    %v3615 = vpack.c.b16 %v3603, %v3602
    %v3616 = vpack.c.b16 %v3605, %v3604
    %v3617 = vpack.c.b16 %v3607, %v3606
    %v3618 = vpack.c.b16 %v3609, %v3608
    %v3619 = vpack.c.b16 %v3611, %v3610
    %3628 = vmatpush.bf16.msra.mxu0 %v3619
    %3629 = vmatpush.bf16.msra.mxu0 %v3618
    %3630 = vmatpush.bf16.msra.mxu0 %v3617
    %3631 = vmatpush.bf16.msra.mxu0 %v3616
    %3632 = vmatpush.bf16.msra.mxu0 %v3615
    %3633 = vmatpush.bf16.msra.mxu0 %v3614
    %3634 = vmatpush.bf16.msra.mxu0 %v3613
    %3635 = vmatpush.bf16.msra.mxu0 %v3612
    %3636 = vmatmul.bf16.gmra.mxu0 %v3556
    %v3637 = vpop.f32.mrf.mxu0
    %v3638 = vadd.f32 %v3578, %v3637
    %v3639 = vpop.f32.mrf.mxu0
    %v3640 = vadd.f32 %v3578, %v3639
    %3641 = vmatmul.bf16.gmra.mxu0 %v3557
    %v3642 = vpop.f32.mrf.mxu0
    %v3643 = vadd.f32 %v3578, %v3642
    %v3644 = vpop.f32.mrf.mxu0
    %v3645 = vadd.f32 %v3578, %v3644
    %3646 = vmatmul.bf16.gmra.mxu0 %v3558
    %v3647 = vpop.f32.mrf.mxu0
    %v3648 = vadd.f32 %v3578, %v3647
    %v3649 = vpop.f32.mrf.mxu0
    %v3650 = vadd.f32 %v3578, %v3649
    %3651 = vmatmul.bf16.gmra.mxu0 %v3559
    %v3652 = vpop.f32.mrf.mxu0
    %v3653 = vadd.f32 %v3578, %v3652
    %v3654 = vpop.f32.mrf.mxu0
    %v3655 = vadd.f32 %v3578, %v3654
    %3656 = vdwg.mxu0
    %3657 = vst [vmem:[#allocation13] sm:$0xff] %v3638
    %3658 = vst [vmem:[#allocation13 + $0x8] sm:$0xff] %v3640
    %3659 = vst [vmem:[#allocation13 + $0x10] sm:$0xff] %v3643
    %3660 = vst [vmem:[#allocation13 + $0x18] sm:$0xff] %v3645
    %3661 = vst [vmem:[#allocation13 + $0x20] sm:$0xff] %v3648
    %3662 = vst [vmem:[#allocation13 + $0x28] sm:$0xff] %v3650
    %3663 = vst [vmem:[#allocation13 + $0x30] sm:$0xff] %v3653
    %3664 = vst [vmem:[#allocation13 + $0x38] sm:$0xff] %v3655
    %3665 = vst [vmem:[#allocation14] sm:$0xff] %v3374
    %s3666 = scalar_lea.vmem [#allocation14], 8
    %3667 = vst [vmem:[%s3666] sm:$0xff] %v3543
    %3668 = vst [vmem:[#allocation16] sm:$0xff] %v3372
    %s3669 = scalar_lea.vmem [#allocation16], 8
    %3670 = vst [vmem:[%s3669] sm:$0xff] %v3541
    // Predicated region
    $region73: #{tpu_custom_call.1} parent=1 // pred_check
      _
    $region74: #{tpu_custom_call.1} parent=1 // pred_check_branch
      %3672 = sbr.rel (0) target = $region76
    $region75: #{tpu_custom_call.1} parent=1 // pred_region
      %3674 = vsyncadd [#allocation9], 0
      %s3675 = sshll.u32 [#allocation13], 4
      %s3676 = int_to_ptr.vmem [resolvable:$true] %s3675
      %s3677 = sshll.u32 %s11, 4
      %s3678 = int_to_ptr.hbm [resolvable:$true] %s3677
      %3683 = dma.vmem_to_hbm [thread:$0]  %s3676, 1024, %s3678, [#allocation9], 128, 128, 8
    $region76: #{tpu_custom_call.1} parent=1 // pred_fallthru
      _
    // Predicated region
    $region77: #{tpu_custom_call.1} parent=1 // pred_check
      _
    $region78: #{tpu_custom_call.1} parent=1 // pred_check_branch
      %3685 = sbr.rel (0) target = $region80
    $region79: #{tpu_custom_call.1} parent=1 // pred_region
      %3687 = vsyncadd [#allocation15], 0
      %s3688 = sshll.u32 [#allocation14], 4
      %s3689 = int_to_ptr.vmem [resolvable:$true] %s3688
      %s3690 = sshll.u32 %s12, 4
      %s3691 = int_to_ptr.hbm [resolvable:$true] %s3690
      %3696 = dma.vmem_to_hbm [thread:$0]  %s3689, 256, %s3691, [#allocation15], 128, 128, 8
    $region80: #{tpu_custom_call.1} parent=1 // pred_fallthru
      _
    // Predicated region
    $region81: #{tpu_custom_call.1} parent=1 // pred_check
      _
    $region82: #{tpu_custom_call.1} parent=1 // pred_check_branch
      %3698 = sbr.rel (0) target = $region84
    $region83: #{tpu_custom_call.1} parent=1 // pred_region
      %3700 = vsyncadd [#allocation15], 0
      %s3701 = sshll.u32 [#allocation16], 4
      %s3702 = int_to_ptr.vmem [resolvable:$true] %s3701
      %s3703 = sshll.u32 %s13, 4
      %s3704 = int_to_ptr.hbm [resolvable:$true] %s3703
      %3709 = dma.vmem_to_hbm [thread:$0]  %s3702, 256, %s3704, [#allocation15], 128, 128, 8
    $region84: #{tpu_custom_call.1} parent=1 // pred_fallthru
      _
    // Predicated region
    $region85: #{tpu_custom_call.1} parent=1 // pred_check
      _
    $region86: #{tpu_custom_call.1} parent=1 // pred_check_branch
      %3711 = sbr.rel (0) target = $region88
    $region87: #{tpu_custom_call.1} parent=1 // pred_region
      %3713 = dma.done [#allocation9], 1024
    $region88: #{tpu_custom_call.1} parent=1 // pred_fallthru
      _
    // Predicated region
    $region89: #{tpu_custom_call.1} parent=1 // pred_check
      _
    $region90: #{tpu_custom_call.1} parent=1 // pred_check_branch
      %3715 = sbr.rel (0) target = $region92
    $region91: #{tpu_custom_call.1} parent=1 // pred_region
      %3717 = dma.done [#allocation15], 256
    $region92: #{tpu_custom_call.1} parent=1 // pred_fallthru
      _
    // Predicated region
    $region93: #{tpu_custom_call.1} parent=1 // pred_check
      _
    $region94: #{tpu_custom_call.1} parent=1 // pred_check_branch
      %3719 = sbr.rel (0) target = $region96
    $region95: #{tpu_custom_call.1} parent=1 // pred_region
      %3721 = dma.done [#allocation15], 256
    $region96: #{tpu_custom_call.1} parent=1 // pred_fallthru
      _
    %3722 = vsyncpa [#allocation8], 1
    %3723 = vsyncpa [#allocation11], 1
    %3724 = vsyncpa [#allocation9], 1
    %3725 = vsyncpa [#allocation15], 1
  %3726 = vsyncmov [#allocation6]
  %s3727 = vpop.sfrf %3726
  %p3728 = scmp.eq.s32.totalorder %s3727, 0
  %p3729 = pneg %p3728
  %3731 = shalt.err (%p3729)
  %s3732 = scalar_lea.sflag [#allocation6], 1
  %3733 = vsyncmov %s3732
  %s3734 = vpop.sfrf %3733
  %p3735 = scmp.eq.s32.totalorder %s3734, 0
  %p3736 = pneg %p3735
  %3738 = shalt.err (%p3736)
  %s3739 = scalar_lea.sflag [#allocation6], 2
  %3740 = vsyncmov %s3739
  %s3741 = vpop.sfrf %3740
  %p3742 = scmp.eq.s32.totalorder %s3741, 0
  %p3743 = pneg %p3742
  %3745 = shalt.err (%p3743)

</llo_original>
